<compile_context>
chip_gen: v7x
topology: tpu7x:2x2x1
jax: 0.10.0
libtpu: 0.0.40
codegen_flags: <defaults>
</compile_context>

<pallas_src>
import jax
import jax.numpy as jnp
from jax.experimental import pallas as pl
from jax.experimental.pallas import tpu as pltpu

VEC_DIM = 50                       # logical embedding dim (PyTorch)
DPAD = 64                          # embedding dim padded so 2 positions pack into 128 lanes
H1, H2, OUT = 600, 300, 2          # logical (PyTorch) sizes
H1P, H2P, OUTP = 640, 384, 128     # lane-padded sizes used inside the kernel
BN_EPS = 1e-5                      # PyTorch BatchNorm1d default

# VMEM budgeting: conservative across generations (v5e/v6e: 128 MiB physical,
# 16/32 MiB default scoped; v7x: 64 MiB physical).  We budget ~24 MiB for the
# batch-tiled buffers and set the scoped limit to 40 MiB (leaves headroom on
# v7x's 64 MiB while comfortably covering weights + compiler scratch).
_TILE_VMEM_BUDGET = 24 * 1024 * 1024
_VMEM_LIMIT_BYTES = 40 * 1024 * 1024


def _round_up(a, m):
    return (a + m - 1) // m * m


# ----------------------------------------------------------------------------
# Kernel: one batch tile per grid step.  Weights are VMEM-resident across steps.
#   x_ref       : (TB, Lh, 128) bf16  -- two consecutive seq positions per row
#   inv_len_ref : (TB, 1)       f32
#   out_ref     : (TB, 128)     bf16  -- only the first 2 columns are real
# ----------------------------------------------------------------------------
def dan_kernel(x_ref, inv_len_ref,
               w1_ref, b1_ref, w2_ref, b2_ref, w3_ref, b3_ref,
               out_ref):
    # ---- DAN pooling: dense-lane sum over the packed sequence axis (f32 acc),
    #      then scale by 1/length.  Lanes 0..63 hold the even-position sum,
    #      lanes 64..127 the odd-position sum; W1 is stacked to match. ----
    pooled = jnp.sum(x_ref[...], axis=1, dtype=jnp.float32) * inv_len_ref[...]   # (TB, 128)

    # ---- Linear(50 -> 640 padded, BN folded, W1 stacked over 128 lanes) + ReLU ----
    h = jnp.dot(pooled.astype(jnp.bfloat16), w1_ref[...],
                preferred_element_type=jnp.float32) + b1_ref[...]                 # (TB, 640)
    h = jnp.maximum(h, 0.0)

    # ---- Linear(640 -> 384 padded, BN folded) + ReLU ----
    h = jnp.dot(h.astype(jnp.bfloat16), w2_ref[...],
                preferred_element_type=jnp.float32) + b2_ref[...]                 # (TB, 384)
    h = jnp.maximum(h, 0.0)

    # ---- Linear(384 -> 128 padded; only first 2 columns are real) ----
    out = jnp.dot(h.astype(jnp.bfloat16), w3_ref[...],
                  preferred_element_type=jnp.float32) + b3_ref[...]               # (TB, 128)
    out_ref[...] = out.astype(out_ref.dtype)  # bf16 store, full-lane unmasked vst


# ----------------------------------------------------------------------------
# Wrapper helpers: BN folding + padding + W1 stacking, tile sizing.
# ----------------------------------------------------------------------------
def fold_and_pad_params(params):
    """Fold eval-mode BatchNorm into the Linears, pad to lane widths and stack W1."""
    (w1, b1, g1, be1, m1, v1,
     w2, b2, g2, be2, m2, v2,
     w3, b3) = params

    s1 = g1 * jax.lax.rsqrt(v1 + BN_EPS)            # (1, 600)
    w1f = w1 * s1                                   # (50, 600)
    b1f = (b1 - m1) * s1 + be1                      # (1, 600)

    s2 = g2 * jax.lax.rsqrt(v2 + BN_EPS)            # (1, 300)
    w2f = w2 * s2                                   # (600, 300)
    b2f = (b2 - m2) * s2 + be2                      # (1, 300)

    # Pad W1 to (64, 640) and stack twice -> (128, 640):
    #   pooled128 @ W1_stacked == (sum_even + sum_odd) @ W1.
    w1_64 = jnp.pad(w1f, ((0, DPAD - VEC_DIM), (0, H1P - H1)))
    w1p = jnp.concatenate([w1_64, w1_64], axis=0).astype(jnp.bfloat16)   # (128, 640)
    b1p = jnp.pad(b1f, ((0, 0), (0, H1P - H1))).astype(jnp.float32)
    w2p = jnp.pad(w2f, ((0, H1P - H1), (0, H2P - H2))).astype(jnp.bfloat16)
    b2p = jnp.pad(b2f, ((0, 0), (0, H2P - H2))).astype(jnp.float32)
    w3p = jnp.pad(w3, ((0, H2P - H2), (0, OUTP - OUT))).astype(jnp.bfloat16)
    b3p = jnp.pad(b3, ((0, 0), (0, OUTP - OUT))).astype(jnp.float32)
    return (w1p, b1p, w2p, b2p, w3p, b3p)


def _choose_tile_b(b_pad, l_half):
    """Derive the batch tile from L and the VMEM budget (per-row bytes, sublane/lane padded)."""
    x_row = _round_up(max(l_half, 1), 8) * 128 * 2          # bf16 x tile row, per buffer
    out_row = OUTP * 2                                       # bf16 output row, per buffer
    act_row = (128 + H1P + H2P) * 4 + (H1P + H2P) * 2        # f32 activations + bf16 copies (estimate)
    per_row = 2 * x_row + 2 * out_row + act_row              # double-buffered x and output
    cap = _TILE_VMEM_BUDGET // per_row
    cap = max(8, min(1024, (cap // 8) * 8))                  # overhead-bound: go big when L is small
    return int(min(cap, b_pad))


def _weight_specs(single_buffered):
    """Grid-invariant weight/bias blocks; request single buffering when supported."""
    def spec(shape):
        if single_buffered:
            return pl.BlockSpec(shape, lambda i: (0, 0), pipeline_mode=pl.Buffered(1))
        return pl.BlockSpec(shape, lambda i: (0, 0))
    return [spec((2 * DPAD, H1P)), spec((1, H1P)),
            spec((H1P, H2P)), spec((1, H2P)),
            spec((H2P, OUTP)), spec((1, OUTP))]


# ----------------------------------------------------------------------------
# Forward pass.
# ----------------------------------------------------------------------------
def dan_forward(x, length, kparams, tile_b=None):
    """x: (B, L, VEC_DIM) float, length: (B,) int.
    kparams: output of fold_and_pad_params.  Returns (B, 2) f32 logits."""
    B, L, D = x.shape
    assert D == VEC_DIM

    L2 = L + (L % 2)              # pad sequence to even so pairs pack into 128 lanes
    Lh = L2 // 2
    B_pad = _round_up(B, 8)       # sublane multiple only; remainder handled by cdiv grid

    # Lane-densify x in one fused wrapper pass: pad D 50->64 and L->even with
    # zeros (zeros do not affect the sum), cast bf16, pack pairs of positions.
    x_d = jnp.pad(x.astype(jnp.bfloat16),
                  ((0, B_pad - B), (0, L2 - L), (0, DPAD - VEC_DIM)))
    x_d = x_d.reshape(B_pad, Lh, 2 * DPAD)                                  # (B_pad, Lh, 128)

    # NOTE: length == 0 -> inv_len = 0 (bias-only path), not inf/NaN.
    inv_len = jnp.where(length > 0,
                        1.0 / jnp.maximum(length.astype(jnp.float32), 1.0),
                        0.0).reshape(B, 1)
    inv_len_p = jnp.pad(inv_len, ((0, B_pad - B), (0, 0)))

    if tile_b is None:
        tile_b = _choose_tile_b(B_pad, Lh)
    tile_b = max(8, min(_round_up(int(tile_b), 8), B_pad))
    num_tiles = pl.cdiv(B_pad, tile_b)   # partial last tile is masked by Pallas

    def _call(single_buffered_weights):
        return pl.pallas_call(
            dan_kernel,
            out_shape=jax.ShapeDtypeStruct((B_pad, OUTP), jnp.bfloat16),
            grid=(num_tiles,),
            in_specs=[
                pl.BlockSpec((tile_b, Lh, 2 * DPAD), lambda i: (i, 0, 0)),   # x tile
                pl.BlockSpec((tile_b, 1), lambda i: (i, 0)),                 # inv_len tile
            ] + _weight_specs(single_buffered_weights),
            out_specs=pl.BlockSpec((tile_b, OUTP), lambda i: (i, 0)),
            compiler_params=pltpu.CompilerParams(
                # Batch axis is independent -> split across TensorCores where
                # available (v7x has 2 TCs; no effect on v5e/v6e).
                dimension_semantics=("parallel",),
                vmem_limit_bytes=_VMEM_LIMIT_BYTES),
        )(x_d, inv_len_p, *kparams)

    try:
        out = _call(True)
    except Exception:
        # Fallback for jax versions that reject pipeline_mode=pl.Buffered(1);
        # double-buffered weights cost <1 MiB extra VMEM (already budgeted).
        out = _call(False)

    return out[:B, :OUT].astype(jnp.float32)


# ----------------------------------------------------------------------------
# Synthetic parameters + pure-JAX reference.
# ----------------------------------------------------------------------------
def init_params(key):
    """Deterministic synthetic parameters matching nn.Linear / nn.BatchNorm1d shapes."""
    ks = jax.random.split(key, 9)

    def linear(k, fan_in, fan_out):
        bound = 1.0 / jnp.sqrt(jnp.float32(fan_in))
        kw, kb = jax.random.split(k)
        w = jax.random.uniform(kw, (fan_in, fan_out), jnp.float32, -bound, bound)
        b = jax.random.uniform(kb, (1, fan_out), jnp.float32, -bound, bound)
        return w, b

    w1, b1 = linear(ks[0], VEC_DIM, H1)
    w2, b2 = linear(ks[1], H1, H2)
    w3, b3 = linear(ks[2], H2, OUT)

    def bn(kg, kb, n):
        gamma = 1.0 + 0.1 * jax.random.normal(kg, (1, n), jnp.float32)
        beta = 0.1 * jax.random.normal(kb, (1, n), jnp.float32)
        run_mean = 0.05 * jax.random.normal(jax.random.fold_in(kg, 7), (1, n), jnp.float32)
        run_var = jnp.abs(1.0 + 0.1 * jax.random.normal(jax.random.fold_in(kb, 7), (1, n),
                                                        jnp.float32))
        return gamma, beta, run_mean, run_var

    g1, be1, m1, v1 = bn(ks[3], ks[4], H1)
    g2, be2, m2, v2 = bn(ks[5], ks[6], H2)

    return (w1, b1, g1, be1, m1, v1,
            w2, b2, g2, be2, m2, v2,
            w3, b3)


def dan_reference(x, length, params):
    """Pure-JAX f32 reference (unfused, unpadded)."""
    (w1, b1, g1, be1, m1, v1,
     w2, b2, g2, be2, m2, v2,
     w3, b3) = params
    pooled = jnp.sum(x, axis=1).astype(jnp.float32) / length.astype(jnp.float32)[:, None]
    h = pooled @ w1 + b1
    h = (h - m1) * (g1 / jnp.sqrt(v1 + BN_EPS)) + be1
    h = jnp.maximum(h, 0.0)
    h = h @ w2 + b2
    h = (h - m2) * (g2 / jnp.sqrt(v2 + BN_EPS)) + be2
    h = jnp.maximum(h, 0.0)
    return h @ w3 + b3


if __name__ == "__main__":
    key = jax.random.PRNGKey(0)
    kx, kp = jax.random.split(key)

    B, L = 8, 8  # small batch / seq length
    x = jax.random.normal(kx, (B, L, VEC_DIM), jnp.float32)
    length = jnp.arange(1, B + 1, dtype=jnp.int32)  # per-example sequence lengths (> 0)

    params = init_params(kp)
    kparams = fold_and_pad_params(params)

    out = dan_forward(x, length, kparams)
    out = jax.block_until_ready(out)

    # Reference in f32; kernel streams x / runs matmuls in bf16 with f32
    # accumulation and stores bf16 logits, so use a loosened tolerance.
    ref = dan_reference(x, length, params)
    assert out.shape == (B, OUT)
    assert jnp.allclose(out, ref, atol=5e-2, rtol=5e-2), "mismatch vs pure-JAX reference"

    print("KERNEL_OK")
</pallas_src>

<mosaic_0001>
module attributes {stable_mosaic.version = 11 : i64} {
  func.func @dan_kernel(%arg0: i32, %arg1: memref<8x4x128xbf16, #tpu.memory_space<vmem>>, %arg2: memref<8x1xf32, #tpu.memory_space<vmem>>, %arg3: memref<128x640xbf16, #tpu.memory_space<vmem>>, %arg4: memref<1x640xf32, #tpu.memory_space<vmem>>, %arg5: memref<640x384xbf16, #tpu.memory_space<vmem>>, %arg6: memref<1x384xf32, #tpu.memory_space<vmem>>, %arg7: memref<384x128xbf16, #tpu.memory_space<vmem>>, %arg8: memref<1x128xf32, #tpu.memory_space<vmem>>, %arg9: memref<8x128xbf16, #tpu.memory_space<vmem>>) attributes {dimension_semantics = [#tpu.dimension_semantics<parallel>], iteration_bounds = array<i64: 1>, scalar_prefetch = 0 : i64, scratch_operands = 0 : i64, tpu.core_type = #tpu.core_type<tc>, window_params = [{transform_indices = @transform_0, window_bounds = array<i64: 8, 4, 128>}, {transform_indices = @transform_1, window_bounds = array<i64: 8, 1>}, {pipeline_mode = #tpu.pipeline_mode<synchronous>, transform_indices = @transform_2, window_bounds = array<i64: 128, 640>}, {pipeline_mode = #tpu.pipeline_mode<synchronous>, transform_indices = @transform_3, window_bounds = array<i64: 1, 640>}, {pipeline_mode = #tpu.pipeline_mode<synchronous>, transform_indices = @transform_4, window_bounds = array<i64: 640, 384>}, {pipeline_mode = #tpu.pipeline_mode<synchronous>, transform_indices = @transform_5, window_bounds = array<i64: 1, 384>}, {pipeline_mode = #tpu.pipeline_mode<synchronous>, transform_indices = @transform_6, window_bounds = array<i64: 384, 128>}, {pipeline_mode = #tpu.pipeline_mode<synchronous>, transform_indices = @transform_7, window_bounds = array<i64: 1, 128>}, {transform_indices = @transform_8, window_bounds = array<i64: 8, 128>}]} {
    %c0 = arith.constant 0 : index
    %c0_0 = arith.constant 0 : index
    %c0_1 = arith.constant 0 : index
    %0 = vector.load %arg1[%c0, %c0_0, %c0_1] : memref<8x4x128xbf16, #tpu.memory_space<vmem>>, vector<8x4x128xbf16>
    %1 = arith.extf %0 : vector<8x4x128xbf16> to vector<8x4x128xf32>
    %cst = arith.constant dense<0.000000e+00> : vector<8x128xf32>
    %2 = vector.multi_reduction <add>, %1, %cst [1] : vector<8x4x128xf32> to vector<8x128xf32>
    %c0_2 = arith.constant 0 : index
    %c0_3 = arith.constant 0 : index
    %3 = vector.load %arg2[%c0_2, %c0_3] : memref<8x1xf32, #tpu.memory_space<vmem>>, vector<8x1xf32>
    %4 = vector.broadcast %3 : vector<8x1xf32> to vector<8x128xf32>
    %5 = arith.mulf %2, %4 : vector<8x128xf32>
    %6 = arith.truncf %5 : vector<8x128xf32> to vector<8x128xbf16>
    %c0_4 = arith.constant 0 : index
    %c0_5 = arith.constant 0 : index
    %7 = vector.load %arg3[%c0_4, %c0_5] : memref<128x640xbf16, #tpu.memory_space<vmem>>, vector<128x640xbf16>
    %cst_6 = arith.constant dense<0.000000e+00> : vector<8x640xf32>
    %8 = tpu.matmul %6, %7, %cst_6 {dimension_numbers = #tpu.dot_dimension_numbers<[1], [0], [0], [1], [0, 0, 1, 1], [], []>} : vector<8x128xbf16>, vector<128x640xbf16>, vector<8x640xf32> -> vector<8x640xf32>
    %c0_7 = arith.constant 0 : index
    %c0_8 = arith.constant 0 : index
    %9 = vector.load %arg4[%c0_7, %c0_8] : memref<1x640xf32, #tpu.memory_space<vmem>>, vector<1x640xf32>
    %10 = vector.broadcast %9 : vector<1x640xf32> to vector<8x640xf32>
    %11 = arith.addf %8, %10 : vector<8x640xf32>
    %cst_9 = arith.constant 0.000000e+00 : f32
    %12 = vector.broadcast %cst_9 : f32 to vector<8x640xf32>
    %13 = arith.maximumf %11, %12 : vector<8x640xf32>
    %14 = arith.truncf %13 : vector<8x640xf32> to vector<8x640xbf16>
    %c0_10 = arith.constant 0 : index
    %c0_11 = arith.constant 0 : index
    %15 = vector.load %arg5[%c0_10, %c0_11] : memref<640x384xbf16, #tpu.memory_space<vmem>>, vector<640x384xbf16>
    %cst_12 = arith.constant dense<0.000000e+00> : vector<8x384xf32>
    %16 = tpu.matmul %14, %15, %cst_12 {dimension_numbers = #tpu.dot_dimension_numbers<[1], [0], [0], [1], [0, 0, 1, 1], [], []>} : vector<8x640xbf16>, vector<640x384xbf16>, vector<8x384xf32> -> vector<8x384xf32>
    %c0_13 = arith.constant 0 : index
    %c0_14 = arith.constant 0 : index
    %17 = vector.load %arg6[%c0_13, %c0_14] : memref<1x384xf32, #tpu.memory_space<vmem>>, vector<1x384xf32>
    %18 = vector.broadcast %17 : vector<1x384xf32> to vector<8x384xf32>
    %19 = arith.addf %16, %18 : vector<8x384xf32>
    %cst_15 = arith.constant 0.000000e+00 : f32
    %20 = vector.broadcast %cst_15 : f32 to vector<8x384xf32>
    %21 = arith.maximumf %19, %20 : vector<8x384xf32>
    %22 = arith.truncf %21 : vector<8x384xf32> to vector<8x384xbf16>
    %c0_16 = arith.constant 0 : index
    %c0_17 = arith.constant 0 : index
    %23 = vector.load %arg7[%c0_16, %c0_17] : memref<384x128xbf16, #tpu.memory_space<vmem>>, vector<384x128xbf16>
    %cst_18 = arith.constant dense<0.000000e+00> : vector<8x128xf32>
    %24 = tpu.matmul %22, %23, %cst_18 {dimension_numbers = #tpu.dot_dimension_numbers<[1], [0], [0], [1], [0, 0, 1, 1], [], []>} : vector<8x384xbf16>, vector<384x128xbf16>, vector<8x128xf32> -> vector<8x128xf32>
    %c0_19 = arith.constant 0 : index
    %c0_20 = arith.constant 0 : index
    %25 = vector.load %arg8[%c0_19, %c0_20] : memref<1x128xf32, #tpu.memory_space<vmem>>, vector<1x128xf32>
    %26 = vector.broadcast %25 : vector<1x128xf32> to vector<8x128xf32>
    %27 = arith.addf %24, %26 : vector<8x128xf32>
    %28 = arith.truncf %27 : vector<8x128xf32> to vector<8x128xbf16>
    %c0_21 = arith.constant 0 : index
    %c0_22 = arith.constant 0 : index
    %29 = vector.load %arg9[%c0_21, %c0_22] : memref<8x128xbf16, #tpu.memory_space<vmem>>, vector<8x128xbf16>
    tpu.vector_store %arg9[%c0_21, %c0_22], %28 {strides = array<i32>} : memref<8x128xbf16, #tpu.memory_space<vmem>>, vector<8x128xbf16>,
    return
  }
  func.func @transform_0(%arg0: i32) -> (i32, i32, i32) {
    %c0_i32 = arith.constant 0 : i32
    %c0_i32_0 = arith.constant 0 : i32
    %c0_i32_1 = arith.constant 0 : i32
    return %arg0, %c0_i32, %c0_i32_0 : i32, i32, i32
  }
  func.func @transform_1(%arg0: i32) -> (i32, i32) {
    %c0_i32 = arith.constant 0 : i32
    %c0_i32_0 = arith.constant 0 : i32
    return %arg0, %c0_i32 : i32, i32
  }
  func.func @transform_2(%arg0: i32) -> (i32, i32) {
    %c0_i32 = arith.constant 0 : i32
    %c0_i32_0 = arith.constant 0 : i32
    %c0_i32_1 = arith.constant 0 : i32
    return %c0_i32, %c0_i32_0 : i32, i32
  }
  func.func @transform_3(%arg0: i32) -> (i32, i32) {
    %c0_i32 = arith.constant 0 : i32
    %c0_i32_0 = arith.constant 0 : i32
    %c0_i32_1 = arith.constant 0 : i32
    return %c0_i32, %c0_i32_0 : i32, i32
  }
  func.func @transform_4(%arg0: i32) -> (i32, i32) {
    %c0_i32 = arith.constant 0 : i32
    %c0_i32_0 = arith.constant 0 : i32
    %c0_i32_1 = arith.constant 0 : i32
    return %c0_i32, %c0_i32_0 : i32, i32
  }
  func.func @transform_5(%arg0: i32) -> (i32, i32) {
    %c0_i32 = arith.constant 0 : i32
    %c0_i32_0 = arith.constant 0 : i32
    %c0_i32_1 = arith.constant 0 : i32
    return %c0_i32, %c0_i32_0 : i32, i32
  }
  func.func @transform_6(%arg0: i32) -> (i32, i32) {
    %c0_i32 = arith.constant 0 : i32
    %c0_i32_0 = arith.constant 0 : i32
    %c0_i32_1 = arith.constant 0 : i32
    return %c0_i32, %c0_i32_0 : i32, i32
  }
  func.func @transform_7(%arg0: i32) -> (i32, i32) {
    %c0_i32 = arith.constant 0 : i32
    %c0_i32_0 = arith.constant 0 : i32
    %c0_i32_1 = arith.constant 0 : i32
    return %c0_i32, %c0_i32_0 : i32, i32
  }
  func.func @transform_8(%arg0: i32) -> (i32, i32) {
    %c0_i32 = arith.constant 0 : i32
    %c0_i32_0 = arith.constant 0 : i32
    return %arg0, %c0_i32 : i32, i32
  }
}

module attributes {stable_mosaic.version = 11 : i64} {
  func.func @dan_kernel(%arg0: i32, %arg1: memref<8x4x128xbf16, #tpu.memory_space<vmem>>, %arg2: memref<8x1xf32, #tpu.memory_space<vmem>>, %arg3: memref<128x640xbf16, #tpu.memory_space<vmem>>, %arg4: memref<1x640xf32, #tpu.memory_space<vmem>>, %arg5: memref<640x384xbf16, #tpu.memory_space<vmem>>, %arg6: memref<1x384xf32, #tpu.memory_space<vmem>>, %arg7: memref<384x128xbf16, #tpu.memory_space<vmem>>, %arg8: memref<1x128xf32, #tpu.memory_space<vmem>>, %arg9: memref<8x128xbf16, #tpu.memory_space<vmem>>) attributes {dimension_semantics = [#tpu.dimension_semantics<parallel>], iteration_bounds = array<i64: 1>, scalar_prefetch = 0 : i64, scratch_operands = 0 : i64, tpu.core_type = #tpu.core_type<tc>, window_params = [{transform_indices = @transform_0, window_bounds = array<i64: 8, 4, 128>}, {transform_indices = @transform_1, window_bounds = array<i64: 8, 1>}, {pipeline_mode = #tpu.pipeline_mode<synchronous>, transform_indices = @transform_2, window_bounds = array<i64: 128, 640>}, {pipeline_mode = #tpu.pipeline_mode<synchronous>, transform_indices = @transform_3, window_bounds = array<i64: 1, 640>}, {pipeline_mode = #tpu.pipeline_mode<synchronous>, transform_indices = @transform_4, window_bounds = array<i64: 640, 384>}, {pipeline_mode = #tpu.pipeline_mode<synchronous>, transform_indices = @transform_5, window_bounds = array<i64: 1, 384>}, {pipeline_mode = #tpu.pipeline_mode<synchronous>, transform_indices = @transform_6, window_bounds = array<i64: 384, 128>}, {pipeline_mode = #tpu.pipeline_mode<synchronous>, transform_indices = @transform_7, window_bounds = array<i64: 1, 128>}, {transform_indices = @transform_8, window_bounds = array<i64: 8, 128>}]} {
    %c0 = arith.constant 0 : index
    %c0_0 = arith.constant 0 : index
    %c0_1 = arith.constant 0 : index
    %0 = vector.load %arg1[%c0, %c0_0, %c0_1] : memref<8x4x128xbf16, #tpu.memory_space<vmem>>, vector<8x4x128xbf16>
    %1 = arith.extf %0 : vector<8x4x128xbf16> to vector<8x4x128xf32>
    %cst = arith.constant dense<0.000000e+00> : vector<8x128xf32>
    %2 = vector.multi_reduction <add>, %1, %cst [1] : vector<8x4x128xf32> to vector<8x128xf32>
    %c0_2 = arith.constant 0 : index
    %c0_3 = arith.constant 0 : index
    %3 = vector.load %arg2[%c0_2, %c0_3] : memref<8x1xf32, #tpu.memory_space<vmem>>, vector<8x1xf32>
    %4 = vector.broadcast %3 : vector<8x1xf32> to vector<8x128xf32>
    %5 = arith.mulf %2, %4 : vector<8x128xf32>
    %6 = arith.truncf %5 : vector<8x128xf32> to vector<8x128xbf16>
    %c0_4 = arith.constant 0 : index
    %c0_5 = arith.constant 0 : index
    %7 = vector.load %arg3[%c0_4, %c0_5] : memref<128x640xbf16, #tpu.memory_space<vmem>>, vector<128x640xbf16>
    %cst_6 = arith.constant dense<0.000000e+00> : vector<8x640xf32>
    %8 = tpu.matmul %6, %7, %cst_6 {dimension_numbers = #tpu.dot_dimension_numbers<[1], [0], [0], [1], [0, 0, 1, 1], [], []>} : vector<8x128xbf16>, vector<128x640xbf16>, vector<8x640xf32> -> vector<8x640xf32>
    %c0_7 = arith.constant 0 : index
    %c0_8 = arith.constant 0 : index
    %9 = vector.load %arg4[%c0_7, %c0_8] : memref<1x640xf32, #tpu.memory_space<vmem>>, vector<1x640xf32>
    %10 = vector.broadcast %9 : vector<1x640xf32> to vector<8x640xf32>
    %11 = arith.addf %8, %10 : vector<8x640xf32>
    %cst_9 = arith.constant 0.000000e+00 : f32
    %12 = vector.broadcast %cst_9 : f32 to vector<8x640xf32>
    %13 = arith.maximumf %11, %12 : vector<8x640xf32>
    %14 = arith.truncf %13 : vector<8x640xf32> to vector<8x640xbf16>
    %c0_10 = arith.constant 0 : index
    %c0_11 = arith.constant 0 : index
    %15 = vector.load %arg5[%c0_10, %c0_11] : memref<640x384xbf16, #tpu.memory_space<vmem>>, vector<640x384xbf16>
    %cst_12 = arith.constant dense<0.000000e+00> : vector<8x384xf32>
    %16 = tpu.matmul %14, %15, %cst_12 {dimension_numbers = #tpu.dot_dimension_numbers<[1], [0], [0], [1], [0, 0, 1, 1], [], []>} : vector<8x640xbf16>, vector<640x384xbf16>, vector<8x384xf32> -> vector<8x384xf32>
    %c0_13 = arith.constant 0 : index
    %c0_14 = arith.constant 0 : index
    %17 = vector.load %arg6[%c0_13, %c0_14] : memref<1x384xf32, #tpu.memory_space<vmem>>, vector<1x384xf32>
    %18 = vector.broadcast %17 : vector<1x384xf32> to vector<8x384xf32>
    %19 = arith.addf %16, %18 : vector<8x384xf32>
    %cst_15 = arith.constant 0.000000e+00 : f32
    %20 = vector.broadcast %cst_15 : f32 to vector<8x384xf32>
    %21 = arith.maximumf %19, %20 : vector<8x384xf32>
    %22 = arith.truncf %21 : vector<8x384xf32> to vector<8x384xbf16>
    %c0_16 = arith.constant 0 : index
    %c0_17 = arith.constant 0 : index
    %23 = vector.load %arg7[%c0_16, %c0_17] : memref<384x128xbf16, #tpu.memory_space<vmem>>, vector<384x128xbf16>
    %cst_18 = arith.constant dense<0.000000e+00> : vector<8x128xf32>
    %24 = tpu.matmul %22, %23, %cst_18 {dimension_numbers = #tpu.dot_dimension_numbers<[1], [0], [0], [1], [0, 0, 1, 1], [], []>} : vector<8x384xbf16>, vector<384x128xbf16>, vector<8x128xf32> -> vector<8x128xf32>
    %c0_19 = arith.constant 0 : index
    %c0_20 = arith.constant 0 : index
    %25 = vector.load %arg8[%c0_19, %c0_20] : memref<1x128xf32, #tpu.memory_space<vmem>>, vector<1x128xf32>
    %26 = vector.broadcast %25 : vector<1x128xf32> to vector<8x128xf32>
    %27 = arith.addf %24, %26 : vector<8x128xf32>
    %28 = arith.truncf %27 : vector<8x128xf32> to vector<8x128xbf16>
    %c0_21 = arith.constant 0 : index
    %c0_22 = arith.constant 0 : index
    %29 = vector.load %arg9[%c0_21, %c0_22] : memref<8x128xbf16, #tpu.memory_space<vmem>>, vector<8x128xbf16>
    tpu.vector_store %arg9[%c0_21, %c0_22], %28 {strides = array<i32>} : memref<8x128xbf16, #tpu.memory_space<vmem>>, vector<8x128xbf16>,
    return
  }
  func.func @transform_0(%arg0: i32) -> (i32, i32, i32) {
    %c0_i32 = arith.constant 0 : i32
    %c0_i32_0 = arith.constant 0 : i32
    %c0_i32_1 = arith.constant 0 : i32
    return %arg0, %c0_i32, %c0_i32_0 : i32, i32, i32
  }
  func.func @transform_1(%arg0: i32) -> (i32, i32) {
    %c0_i32 = arith.constant 0 : i32
    %c0_i32_0 = arith.constant 0 : i32
    return %arg0, %c0_i32 : i32, i32
  }
  func.func @transform_2(%arg0: i32) -> (i32, i32) {
    %c0_i32 = arith.constant 0 : i32
    %c0_i32_0 = arith.constant 0 : i32
    %c0_i32_1 = arith.constant 0 : i32
    return %c0_i32, %c0_i32_0 : i32, i32
  }
  func.func @transform_3(%arg0: i32) -> (i32, i32) {
    %c0_i32 = arith.constant 0 : i32
    %c0_i32_0 = arith.constant 0 : i32
    %c0_i32_1 = arith.constant 0 : i32
    return %c0_i32, %c0_i32_0 : i32, i32
  }
  func.func @transform_4(%arg0: i32) -> (i32, i32) {
    %c0_i32 = arith.constant 0 : i32
    %c0_i32_0 = arith.constant 0 : i32
    %c0_i32_1 = arith.constant 0 : i32
    return %c0_i32, %c0_i32_0 : i32, i32
  }
  func.func @transform_5(%arg0: i32) -> (i32, i32) {
    %c0_i32 = arith.constant 0 : i32
    %c0_i32_0 = arith.constant 0 : i32
    %c0_i32_1 = arith.constant 0 : i32
    return %c0_i32, %c0_i32_0 : i32, i32
  }
  func.func @transform_6(%arg0: i32) -> (i32, i32) {
    %c0_i32 = arith.constant 0 : i32
    %c0_i32_0 = arith.constant 0 : i32
    %c0_i32_1 = arith.constant 0 : i32
    return %c0_i32, %c0_i32_0 : i32, i32
  }
  func.func @transform_7(%arg0: i32) -> (i32, i32) {
    %c0_i32 = arith.constant 0 : i32
    %c0_i32_0 = arith.constant 0 : i32
    %c0_i32_1 = arith.constant 0 : i32
    return %c0_i32, %c0_i32_0 : i32, i32
  }
  func.func @transform_8(%arg0: i32) -> (i32, i32) {
    %c0_i32 = arith.constant 0 : i32
    %c0_i32_0 = arith.constant 0 : i32
    return %arg0, %c0_i32 : i32, i32
  }
}

</mosaic_0001>

<llo_original>
// kernel: tpu_custom_call.1
$region0: #{tpu_custom_call.1}
  #allocation0 [shape = 'u32[]', space=smem, size = 0x4, offset = 0x4, fixed_abs, tag = 'smem constant byte address 0x4 - core index']
  #allocation1 [shape = 'u32[144,128]{1,0:T(1,128)}', space=vmem, size = 0x12000, scoped, tag = 'internal scratch']
  %s0 = inlined_call_operand.hbm [shape: bf16[8,4,128], index: 0, kind: input, shape index: {}]
  %s1 = inlined_call_operand.vmem [shape: f32[8,1], index: 1, kind: input, shape index: {}]
  %s2 = inlined_call_operand.hbm [shape: bf16[128,640], index: 2, kind: input, shape index: {}]
  %s3 = inlined_call_operand.vmem [shape: f32[1,640], index: 3, kind: input, shape index: {}]
  %s4 = inlined_call_operand.hbm [shape: bf16[640,384], index: 4, kind: input, shape index: {}]
  %s5 = inlined_call_operand.vmem [shape: f32[1,384], index: 5, kind: input, shape index: {}]
  %s6 = inlined_call_operand.hbm [shape: bf16[384,128], index: 6, kind: input, shape index: {}]
  %s7 = inlined_call_operand.vmem [shape: f32[1,128], index: 7, kind: input, shape index: {}]
  %s8 = inlined_call_operand.hbm [shape: bf16[8,128], index: 8, kind: output, shape index: {}]
  %s9 = sld [smem:[#allocation0]]
  $region58: #{tpu_custom_call.1} parent=0
    _
  %s11 = ssub.s32 1, %s9
  %s12 = scalar_select 0, %s11, %s9
  $region1: #{tpu_custom_call.1} parent=0
    #allocation2 [shape = 'u8[8192]{0}', space=vmem, size = 0x2000, scoped, tag = 'input window, operand 0, single buffered']
    #allocation3 [shape = 's32[1]{0}', space=sflag, size = 0x4, scoped, tag = 'scoped memory for tpu_custom_call.1']
    #allocation4 [shape = 's32[1]{0}', space=sflag, size = 0x4, scoped, tag = 'scoped memory for tpu_custom_call.1']
    #allocation5 [shape = 'u8[163840]{0}', space=vmem, size = 0x28000, scoped, tag = 'input window, operand 2, single buffered']
    #allocation6 [shape = 's32[1]{0}', space=sflag, size = 0x4, scoped, tag = 'scoped memory for tpu_custom_call.1']
    #allocation7 [shape = 'u8[491520]{0}', space=vmem, size = 0x78000, scoped, tag = 'input window, operand 4, single buffered']
    #allocation8 [shape = 'u8[98304]{0}', space=vmem, size = 0x18000, scoped, tag = 'input window, operand 6, single buffered']
    #allocation9 [shape = 's32[1]{0}', space=sflag, size = 0x4, scoped, tag = 'scoped memory for tpu_custom_call.1']
    #allocation10 [shape = 'u8[2048]{0}', space=vmem, size = 0x800, scoped, tag = 'output window, operand 0, single buffered']
    %13 = vsyncpa [#allocation3], 0
    %14 = vsyncpa [#allocation6], 0
    %15 = vsyncpa [#allocation9], 0
    %16 = vsyncpa [#allocation4], 0
    // Predicated region
    $region2: #{tpu_custom_call.1} parent=1 // pred_check
      _
    $region3: #{tpu_custom_call.1} parent=1 // pred_check_branch
      %18 = sbr.rel (0) target = $region5
    $region4: #{tpu_custom_call.1} parent=1 // pred_region
      %s20 = ssub.s32 256, 256
      %21 = vsyncadd [#allocation3], %s20
      %s22 = sshll.u32 [#allocation2], 4
      %s23 = int_to_ptr.vmem [resolvable:$true] %s22
      %28 = dma.hbm_to_vmem [thread:$0]  %s0, 256, %s23, [#allocation3], 32, 32, 2
    $region5: #{tpu_custom_call.1} parent=1 // pred_fallthru
      _
    // Predicated region
    $region6: #{tpu_custom_call.1} parent=1 // pred_check
      _
    $region7: #{tpu_custom_call.1} parent=1 // pred_check_branch
      %30 = sbr.rel (0) target = $region9
    $region8: #{tpu_custom_call.1} parent=1 // pred_region
      _
    $region9: #{tpu_custom_call.1} parent=1 // pred_fallthru
      _
    // Predicated region
    $region10: #{tpu_custom_call.1} parent=1 // pred_check
      _
    $region11: #{tpu_custom_call.1} parent=1 // pred_check_branch
      %32 = sbr.rel (0) target = $region13
    $region12: #{tpu_custom_call.1} parent=1 // pred_region
      %s34 = ssub.s32 5120, 5120
      %35 = vsyncadd [#allocation6], %s34
      %s36 = sshll.u32 [#allocation5], 4
      %s37 = int_to_ptr.vmem [resolvable:$true] %s36
      %42 = dma.hbm_to_vmem [thread:$0]  %s2, 5120, %s37, [#allocation6], 320, 320, 20
    $region13: #{tpu_custom_call.1} parent=1 // pred_fallthru
      _
    // Predicated region
    $region14: #{tpu_custom_call.1} parent=1 // pred_check
      _
    $region15: #{tpu_custom_call.1} parent=1 // pred_check_branch
      %44 = sbr.rel (0) target = $region17
    $region16: #{tpu_custom_call.1} parent=1 // pred_region
      _
    $region17: #{tpu_custom_call.1} parent=1 // pred_fallthru
      _
    // Predicated region
    $region18: #{tpu_custom_call.1} parent=1 // pred_check
      _
    $region19: #{tpu_custom_call.1} parent=1 // pred_check_branch
      %46 = sbr.rel (0) target = $region21
    $region20: #{tpu_custom_call.1} parent=1 // pred_region
      %s48 = ssub.s32 15360, 15360
      %49 = vsyncadd [#allocation6], %s48
      %s50 = sshll.u32 [#allocation7], 4
      %s51 = int_to_ptr.vmem [resolvable:$true] %s50
      %56 = dma.hbm_to_vmem [thread:$0]  %s4, 15360, %s51, [#allocation6], 192, 192, 12
    $region21: #{tpu_custom_call.1} parent=1 // pred_fallthru
      _
    // Predicated region
    $region22: #{tpu_custom_call.1} parent=1 // pred_check
      _
    $region23: #{tpu_custom_call.1} parent=1 // pred_check_branch
      %58 = sbr.rel (0) target = $region25
    $region24: #{tpu_custom_call.1} parent=1 // pred_region
      _
    $region25: #{tpu_custom_call.1} parent=1 // pred_fallthru
      _
    // Predicated region
    $region26: #{tpu_custom_call.1} parent=1 // pred_check
      _
    $region27: #{tpu_custom_call.1} parent=1 // pred_check_branch
      %60 = sbr.rel (0) target = $region29
    $region28: #{tpu_custom_call.1} parent=1 // pred_region
      %s62 = ssub.s32 3072, 3072
      %63 = vsyncadd [#allocation9], %s62
      %s64 = sshll.u32 [#allocation8], 4
      %s65 = int_to_ptr.vmem [resolvable:$true] %s64
      %70 = dma.hbm_to_vmem [thread:$0]  %s6, 3072, %s65, [#allocation9], 64, 64, 4
    $region29: #{tpu_custom_call.1} parent=1 // pred_fallthru
      _
    // Predicated region
    $region30: #{tpu_custom_call.1} parent=1 // pred_check
      _
    $region31: #{tpu_custom_call.1} parent=1 // pred_check_branch
      %72 = sbr.rel (0) target = $region33
    $region32: #{tpu_custom_call.1} parent=1 // pred_region
      _
    $region33: #{tpu_custom_call.1} parent=1 // pred_fallthru
      _
    // Predicated region
    $region34: #{tpu_custom_call.1} parent=1 // pred_check
      _
    $region35: #{tpu_custom_call.1} parent=1 // pred_check_branch
      %74 = sbr.rel (0) target = $region37
    $region36: #{tpu_custom_call.1} parent=1 // pred_region
      %75 = dma.done [#allocation3], 256
    $region37: #{tpu_custom_call.1} parent=1 // pred_fallthru
      _
    // Predicated region
    $region38: #{tpu_custom_call.1} parent=1 // pred_check
      _
    $region39: #{tpu_custom_call.1} parent=1 // pred_check_branch
      %77 = sbr.rel (0) target = $region41
    $region40: #{tpu_custom_call.1} parent=1 // pred_region
      %78 = dma.done [#allocation6], 5120
    $region41: #{tpu_custom_call.1} parent=1 // pred_fallthru
      _
    // Predicated region
    $region42: #{tpu_custom_call.1} parent=1 // pred_check
      _
    $region43: #{tpu_custom_call.1} parent=1 // pred_check_branch
      %80 = sbr.rel (0) target = $region45
    $region44: #{tpu_custom_call.1} parent=1 // pred_region
      %81 = dma.done [#allocation6], 15360
    $region45: #{tpu_custom_call.1} parent=1 // pred_fallthru
      _
    // Predicated region
    $region46: #{tpu_custom_call.1} parent=1 // pred_check
      _
    $region47: #{tpu_custom_call.1} parent=1 // pred_check_branch
      %83 = sbr.rel (0) target = $region49
    $region48: #{tpu_custom_call.1} parent=1 // pred_region
      %84 = dma.done [#allocation9], 3072
    $region49: #{tpu_custom_call.1} parent=1 // pred_fallthru
      _
    %v86 = vld [vmem:[#allocation2] sm:$0x3]
    %v87 = vld [vmem:[#allocation2 + $0x2] sm:$0x3]
    %v88 = vld [vmem:[#allocation2 + $0x4] sm:$0x3]
    %v89 = vld [vmem:[#allocation2 + $0x6] sm:$0x3]
    %v90 = vld [vmem:[#allocation2 + $0x8] sm:$0x3]
    %v91 = vld [vmem:[#allocation2 + $0xa] sm:$0x3]
    %v92 = vld [vmem:[#allocation2 + $0xc] sm:$0x3]
    %v93 = vld [vmem:[#allocation2 + $0xe] sm:$0x3]
    %v94 = vunpack.c.l.bf16 %v86
    %v95 = vunpack.c.l.bf16 %v87
    %v96 = vunpack.c.l.bf16 %v88
    %v97 = vunpack.c.l.bf16 %v89
    %v98 = vunpack.c.l.bf16 %v90
    %v99 = vunpack.c.l.bf16 %v91
    %v100 = vunpack.c.l.bf16 %v92
    %v101 = vunpack.c.l.bf16 %v93
    %vm102 = vcmask 1043456
    %v103 = vsel %vm102, %v94, 0.0
    %v104 = vrot.slane %v103, 4
    %v105 = vadd.f32 %v103, %v104
    %v106 = vrot.slane %v105, 2
    %v107 = vadd.f32 %v105, %v106
    %v108 = vrot.slane %v107, 1
    %v109 = vadd.f32 %v107, %v108
    %v110 = vsel %vm102, %v95, 0.0
    %v111 = vrot.slane %v110, 4
    %v112 = vadd.f32 %v110, %v111
    %v113 = vrot.slane %v112, 2
    %v114 = vadd.f32 %v112, %v113
    %v115 = vrot.slane %v114, 1
    %v116 = vadd.f32 %v114, %v115
    %v117 = vsel %vm102, %v96, 0.0
    %v118 = vrot.slane %v117, 4
    %v119 = vadd.f32 %v117, %v118
    %v120 = vrot.slane %v119, 2
    %v121 = vadd.f32 %v119, %v120
    %v122 = vrot.slane %v121, 1
    %v123 = vadd.f32 %v121, %v122
    %v124 = vsel %vm102, %v97, 0.0
    %v125 = vrot.slane %v124, 4
    %v126 = vadd.f32 %v124, %v125
    %v127 = vrot.slane %v126, 2
    %v128 = vadd.f32 %v126, %v127
    %v129 = vrot.slane %v128, 1
    %v130 = vadd.f32 %v128, %v129
    %v131 = vsel %vm102, %v98, 0.0
    %v132 = vrot.slane %v131, 4
    %v133 = vadd.f32 %v131, %v132
    %v134 = vrot.slane %v133, 2
    %v135 = vadd.f32 %v133, %v134
    %v136 = vrot.slane %v135, 1
    %v137 = vadd.f32 %v135, %v136
    %v138 = vsel %vm102, %v99, 0.0
    %v139 = vrot.slane %v138, 4
    %v140 = vadd.f32 %v138, %v139
    %v141 = vrot.slane %v140, 2
    %v142 = vadd.f32 %v140, %v141
    %v143 = vrot.slane %v142, 1
    %v144 = vadd.f32 %v142, %v143
    %v145 = vsel %vm102, %v100, 0.0
    %v146 = vrot.slane %v145, 4
    %v147 = vadd.f32 %v145, %v146
    %v148 = vrot.slane %v147, 2
    %v149 = vadd.f32 %v147, %v148
    %v150 = vrot.slane %v149, 1
    %v151 = vadd.f32 %v149, %v150
    %v152 = vsel %vm102, %v101, 0.0
    %v153 = vrot.slane %v152, 4
    %v154 = vadd.f32 %v152, %v153
    %v155 = vrot.slane %v154, 2
    %v156 = vadd.f32 %v154, %v155
    %v157 = vrot.slane %v156, 1
    %v158 = vadd.f32 %v156, %v157
    %v159 = vld [vmem:[%s1] sm:$0xff]
    %161 = vset.pattern.permute.xlu0 0
    %162 = vperm.xlu0 %161, %v159
    %v163 = vpop.permute.xlu0 %162
    %v164 = vrot.slane %v163, 1
    %v165 = vrot.slane %v163, 2
    %v166 = vrot.slane %v163, 3
    %v167 = vrot.slane %v163, 4
    %v168 = vrot.slane %v163, 5
    %v169 = vrot.slane %v163, 6
    %v170 = vrot.slane %v163, 7
    %v179 = vmul.f32 %v109, %v163
    %v180 = vmul.f32 %v116, %v164
    %v181 = vmul.f32 %v123, %v165
    %v182 = vmul.f32 %v130, %v166
    %v183 = vmul.f32 %v137, %v167
    %v184 = vmul.f32 %v144, %v168
    %v185 = vmul.f32 %v151, %v169
    %v186 = vmul.f32 %v158, %v170
    %v187 = vpack.c.bf16 %v179, %v179
    %v188 = vpack.c.bf16 %v180, %v180
    %v189 = vpack.c.bf16 %v181, %v181
    %v190 = vpack.c.bf16 %v182, %v182
    %v191 = vpack.c.bf16 %v183, %v183
    %v192 = vpack.c.bf16 %v184, %v184
    %v193 = vpack.c.bf16 %v185, %v185
    %v194 = vpack.c.bf16 %v186, %v186
    %v195 = vld [vmem:[#allocation5] sm:$0xff]
    %v196 = vld [vmem:[#allocation5 + $0x8] sm:$0xff]
    %v197 = vld [vmem:[#allocation5 + $0x10] sm:$0xf]
    %v198 = vld [vmem:[#allocation5 + $0x14] sm:$0xff]
    %v199 = vld [vmem:[#allocation5 + $0x1c] sm:$0xff]
    %v200 = vld [vmem:[#allocation5 + $0x24] sm:$0xf]
    %v201 = vld [vmem:[#allocation5 + $0x28] sm:$0xff]
    %v202 = vld [vmem:[#allocation5 + $0x30] sm:$0xff]
    %v203 = vld [vmem:[#allocation5 + $0x38] sm:$0xf]
    %v204 = vld [vmem:[#allocation5 + $0x3c] sm:$0xff]
    %v205 = vld [vmem:[#allocation5 + $0x44] sm:$0xff]
    %v206 = vld [vmem:[#allocation5 + $0x4c] sm:$0xf]
    %v207 = vld [vmem:[#allocation5 + $0x50] sm:$0xff]
    %v208 = vld [vmem:[#allocation5 + $0x58] sm:$0xff]
    %v209 = vld [vmem:[#allocation5 + $0x60] sm:$0xf]
    %v210 = vld [vmem:[#allocation5 + $0x64] sm:$0xff]
    %v211 = vld [vmem:[#allocation5 + $0x6c] sm:$0xff]
    %v212 = vld [vmem:[#allocation5 + $0x74] sm:$0xf]
    %v213 = vld [vmem:[#allocation5 + $0x78] sm:$0xff]
    %v214 = vld [vmem:[#allocation5 + $0x80] sm:$0xff]
    %v215 = vld [vmem:[#allocation5 + $0x88] sm:$0xf]
    %v216 = vld [vmem:[#allocation5 + $0x8c] sm:$0xff]
    %v217 = vld [vmem:[#allocation5 + $0x94] sm:$0xff]
    %v218 = vld [vmem:[#allocation5 + $0x9c] sm:$0xf]
    %v219 = vld [vmem:[#allocation5 + $0xa0] sm:$0xff]
    %v220 = vld [vmem:[#allocation5 + $0xa8] sm:$0xff]
    %v221 = vld [vmem:[#allocation5 + $0xb0] sm:$0xf]
    %v222 = vld [vmem:[#allocation5 + $0xb4] sm:$0xff]
    %v223 = vld [vmem:[#allocation5 + $0xbc] sm:$0xff]
    %v224 = vld [vmem:[#allocation5 + $0xc4] sm:$0xf]
    %v225 = vld [vmem:[#allocation5 + $0xc8] sm:$0xff]
    %v226 = vld [vmem:[#allocation5 + $0xd0] sm:$0xff]
    %v227 = vld [vmem:[#allocation5 + $0xd8] sm:$0xf]
    %v228 = vld [vmem:[#allocation5 + $0xdc] sm:$0xff]
    %v229 = vld [vmem:[#allocation5 + $0xe4] sm:$0xff]
    %v230 = vld [vmem:[#allocation5 + $0xec] sm:$0xf]
    %v231 = vld [vmem:[#allocation5 + $0xf0] sm:$0xff]
    %v232 = vld [vmem:[#allocation5 + $0xf8] sm:$0xff]
    %v233 = vld [vmem:[#allocation5 + $0x100] sm:$0xf]
    %v234 = vld [vmem:[#allocation5 + $0x104] sm:$0xff]
    %v235 = vld [vmem:[#allocation5 + $0x10c] sm:$0xff]
    %v236 = vld [vmem:[#allocation5 + $0x114] sm:$0xf]
    %v237 = vld [vmem:[#allocation5 + $0x118] sm:$0xff]
    %v238 = vld [vmem:[#allocation5 + $0x120] sm:$0xff]
    %v239 = vld [vmem:[#allocation5 + $0x128] sm:$0xf]
    %v240 = vld [vmem:[#allocation5 + $0x12c] sm:$0xff]
    %v241 = vld [vmem:[#allocation5 + $0x134] sm:$0xff]
    %v242 = vld [vmem:[#allocation5 + $0x13c] sm:$0xf]
    %v243 = vld [vmem:[%s3] sm:$0x1f]
    %v245 = vlaneseq
    %v246 = vshrl.u32 %v245, 7
    %v247 = vsub.s32 0, %v246
    %v248 = vrot.slane %v243, %v247
    %v249 = vlaneseq
    %v250 = vshrl.u32 %v249, 7
    %v251 = vsub.s32 1, %v250
    %v252 = vrot.slane %v243, %v251
    %v253 = vlaneseq
    %v254 = vshrl.u32 %v253, 7
    %v255 = vsub.s32 2, %v254
    %v256 = vrot.slane %v243, %v255
    %v257 = vlaneseq
    %v258 = vshrl.u32 %v257, 7
    %v259 = vsub.s32 3, %v258
    %v260 = vrot.slane %v243, %v259
    %v261 = vlaneseq
    %v262 = vshrl.u32 %v261, 7
    %v263 = vsub.s32 4, %v262
    %v264 = vrot.slane %v243, %v263
    %v278 = vunpack.c.l.b16 %v187
    %v279 = vunpack.c.l.b16 %v188
    %v280 = vunpack.c.l.b16 %v189
    %v281 = vunpack.c.l.b16 %v190
    %v282 = vunpack.c.l.b16 %v191
    %v283 = vunpack.c.l.b16 %v192
    %v284 = vunpack.c.l.b16 %v193
    %v285 = vunpack.c.l.b16 %v194
    %v286 = vrot.slane %v279, 7
    %vm287 = vcmask 1041409
    %v288 = vsel %vm287, %v286, %v278
    %v289 = vrot.slane %v280, 6
    %vm290 = vcmask 1042434
    %v291 = vsel %vm290, %v289, %v288
    %v292 = vrot.slane %v281, 5
    %vm293 = vcmask 1043459
    %v294 = vsel %vm293, %v292, %v291
    %v295 = vrot.slane %v282, 4
    %vm296 = vcmask 1044484
    %v297 = vsel %vm296, %v295, %v294
    %v298 = vrot.slane %v283, 3
    %vm299 = vcmask 1045509
    %v300 = vsel %vm299, %v298, %v297
    %v301 = vrot.slane %v284, 2
    %vm302 = vcmask 1046534
    %v303 = vsel %vm302, %v301, %v300
    %v304 = vrot.slane %v285, 1
    %vm305 = vcmask 1047559
    %v306 = vsel %vm305, %v304, %v303
    %v307 = vpack.c.b16 %v306, %v306
    %v357 = vunpack.c.l.b16 %v195
    %v358 = vunpack.c.h.b16 %v195
    %v359 = vunpack.c.l.b16 %v196
    %v360 = vunpack.c.h.b16 %v196
    %v361 = vunpack.c.l.b16 %v197
    %v362 = vunpack.c.l.b16 %v198
    %v363 = vunpack.c.h.b16 %v198
    %v364 = vunpack.c.l.b16 %v199
    %v365 = vunpack.c.h.b16 %v199
    %v366 = vunpack.c.l.b16 %v200
    %v367 = vunpack.c.l.b16 %v201
    %v368 = vunpack.c.h.b16 %v201
    %v369 = vunpack.c.l.b16 %v202
    %v370 = vunpack.c.h.b16 %v202
    %v371 = vunpack.c.l.b16 %v203
    %v372 = vunpack.c.l.b16 %v204
    %v373 = vunpack.c.h.b16 %v204
    %v374 = vunpack.c.l.b16 %v205
    %v375 = vunpack.c.h.b16 %v205
    %v376 = vunpack.c.l.b16 %v206
    %v377 = vunpack.c.l.b16 %v207
    %v378 = vunpack.c.h.b16 %v207
    %v379 = vunpack.c.l.b16 %v208
    %v380 = vunpack.c.h.b16 %v208
    %v381 = vunpack.c.l.b16 %v209
    %v382 = vunpack.c.l.b16 %v210
    %v383 = vunpack.c.h.b16 %v210
    %v384 = vunpack.c.l.b16 %v211
    %v385 = vunpack.c.h.b16 %v211
    %v386 = vunpack.c.l.b16 %v212
    %v387 = vunpack.c.l.b16 %v213
    %v388 = vunpack.c.h.b16 %v213
    %v389 = vunpack.c.l.b16 %v214
    %v390 = vunpack.c.h.b16 %v214
    %v391 = vunpack.c.l.b16 %v215
    %v392 = vunpack.c.l.b16 %v216
    %v393 = vunpack.c.h.b16 %v216
    %v394 = vunpack.c.l.b16 %v217
    %v395 = vunpack.c.h.b16 %v217
    %v396 = vunpack.c.l.b16 %v218
    %v397 = vunpack.c.l.b16 %v219
    %v398 = vunpack.c.h.b16 %v219
    %v399 = vunpack.c.l.b16 %v220
    %v400 = vunpack.c.h.b16 %v220
    %v401 = vunpack.c.l.b16 %v221
    %v402 = vunpack.c.l.b16 %v222
    %v403 = vunpack.c.h.b16 %v222
    %v404 = vunpack.c.l.b16 %v223
    %v405 = vunpack.c.h.b16 %v223
    %v406 = vunpack.c.l.b16 %v224
    %v407 = vunpack.c.l.b16 %v225
    %v408 = vunpack.c.h.b16 %v225
    %v409 = vunpack.c.l.b16 %v226
    %v410 = vunpack.c.h.b16 %v226
    %v411 = vunpack.c.l.b16 %v227
    %v412 = vunpack.c.l.b16 %v228
    %v413 = vunpack.c.h.b16 %v228
    %v414 = vunpack.c.l.b16 %v229
    %v415 = vunpack.c.h.b16 %v229
    %v416 = vunpack.c.l.b16 %v230
    %v417 = vunpack.c.l.b16 %v231
    %v418 = vunpack.c.h.b16 %v231
    %v419 = vunpack.c.l.b16 %v232
    %v420 = vunpack.c.h.b16 %v232
    %v421 = vunpack.c.l.b16 %v233
    %v422 = vunpack.c.l.b16 %v234
    %v423 = vunpack.c.h.b16 %v234
    %v424 = vunpack.c.l.b16 %v235
    %v425 = vunpack.c.h.b16 %v235
    %v426 = vunpack.c.l.b16 %v236
    %v427 = vunpack.c.l.b16 %v237
    %v428 = vunpack.c.h.b16 %v237
    %v429 = vunpack.c.l.b16 %v238
    %v430 = vunpack.c.h.b16 %v238
    %v431 = vunpack.c.l.b16 %v239
    %v432 = vunpack.c.l.b16 %v240
    %v433 = vunpack.c.h.b16 %v240
    %v434 = vunpack.c.l.b16 %v241
    %v435 = vunpack.c.h.b16 %v241
    %v436 = vunpack.c.l.b16 %v242
    %v437 = vpack.c.b16 %v362, %v357
    %v438 = vpack.c.b16 %v363, %v358
    %v439 = vpack.c.b16 %v364, %v359
    %v440 = vpack.c.b16 %v365, %v360
    %v441 = vpack.c.b16 %v366, %v361
    %v442 = vpack.c.b16 %v372, %v367
    %v443 = vpack.c.b16 %v373, %v368
    %v444 = vpack.c.b16 %v374, %v369
    %v445 = vpack.c.b16 %v375, %v370
    %v446 = vpack.c.b16 %v376, %v371
    %v447 = vpack.c.b16 %v382, %v377
    %v448 = vpack.c.b16 %v383, %v378
    %v449 = vpack.c.b16 %v384, %v379
    %v450 = vpack.c.b16 %v385, %v380
    %v451 = vpack.c.b16 %v386, %v381
    %v452 = vpack.c.b16 %v392, %v387
    %v453 = vpack.c.b16 %v393, %v388
    %v454 = vpack.c.b16 %v394, %v389
    %v455 = vpack.c.b16 %v395, %v390
    %v456 = vpack.c.b16 %v396, %v391
    %v457 = vpack.c.b16 %v402, %v397
    %v458 = vpack.c.b16 %v403, %v398
    %v459 = vpack.c.b16 %v404, %v399
    %v460 = vpack.c.b16 %v405, %v400
    %v461 = vpack.c.b16 %v406, %v401
    %v462 = vpack.c.b16 %v412, %v407
    %v463 = vpack.c.b16 %v413, %v408
    %v464 = vpack.c.b16 %v414, %v409
    %v465 = vpack.c.b16 %v415, %v410
    %v466 = vpack.c.b16 %v416, %v411
    %v467 = vpack.c.b16 %v422, %v417
    %v468 = vpack.c.b16 %v423, %v418
    %v469 = vpack.c.b16 %v424, %v419
    %v470 = vpack.c.b16 %v425, %v420
    %v471 = vpack.c.b16 %v426, %v421
    %v472 = vpack.c.b16 %v432, %v427
    %v473 = vpack.c.b16 %v433, %v428
    %v474 = vpack.c.b16 %v434, %v429
    %v475 = vpack.c.b16 %v435, %v430
    %v476 = vpack.c.b16 %v436, %v431
    %517 = vmatprep.subr.bf16.mxu0 %v438
    %518 = vmatpush1.bf16.msra.mxu0 %v437
    %519 = vmatprep.subr.bf16.mxu0 %v443
    %520 = vmatpush1.bf16.msra.mxu0 %v442
    %521 = vmatprep.subr.bf16.mxu0 %v448
    %522 = vmatpush1.bf16.msra.mxu0 %v447
    %523 = vmatprep.subr.bf16.mxu0 %v453
    %524 = vmatpush1.bf16.msra.mxu0 %v452
    %525 = vmatprep.subr.bf16.mxu0 %v458
    %526 = vmatpush1.bf16.msra.mxu0 %v457
    %527 = vmatprep.subr.bf16.mxu0 %v463
    %528 = vmatpush1.bf16.msra.mxu0 %v462
    %529 = vmatprep.subr.bf16.mxu0 %v468
    %530 = vmatpush1.bf16.msra.mxu0 %v467
    %531 = vmatprep.subr.bf16.mxu0 %v473
    %532 = vmatpush1.bf16.msra.mxu0 %v472
    %533 = vmatprep.subr.bf16.mxu0 0
    %534 = vmatpush1.bf16.msra.mxu0 0
    %535 = vmatprep.subr.bf16.mxu0 0
    %536 = vmatpush1.bf16.msra.mxu0 0
    %537 = vmatprep.subr.bf16.mxu0 0
    %538 = vmatpush1.bf16.msra.mxu0 0
    %539 = vmatprep.subr.bf16.mxu0 0
    %540 = vmatpush1.bf16.msra.mxu0 0
    %541 = vmatprep.subr.bf16.mxu0 0
    %542 = vmatpush1.bf16.msra.mxu0 0
    %543 = vmatprep.subr.bf16.mxu0 0
    %544 = vmatpush1.bf16.msra.mxu0 0
    %545 = vmatprep.subr.bf16.mxu0 0
    %546 = vmatpush1.bf16.msra.mxu0 0
    %547 = vmatprep.subr.bf16.mxu0 0
    %548 = vmatpush1.bf16.msra.mxu0 0
    %549 = vmatprep.mubr.bf16.mxu0 0
    %550 = vmatmul.mubr.bf16.gmra.mrb[0].mxu0 %v307
    %v551 = vpop.f32.mrb[0].mxu0
    %v552 = vadd.f32 %v248, %v551
    %v553 = vpop.f32.mrb[0].mxu0
    %v554 = vadd.f32 %v252, %v553
    %v555 = vpop.f32.mrb[0].mxu0
    %v556 = vpop.f32.mrb[0].mxu0
    %557 = vdwg.mxu0
    %558 = vmatprep.subr.bf16.mxu0 %v440
    %559 = vmatpush1.bf16.msra.mxu0 %v439
    %560 = vmatprep.subr.bf16.mxu0 %v445
    %561 = vmatpush1.bf16.msra.mxu0 %v444
    %562 = vmatprep.subr.bf16.mxu0 %v450
    %563 = vmatpush1.bf16.msra.mxu0 %v449
    %564 = vmatprep.subr.bf16.mxu0 %v455
    %565 = vmatpush1.bf16.msra.mxu0 %v454
    %566 = vmatprep.subr.bf16.mxu0 %v460
    %567 = vmatpush1.bf16.msra.mxu0 %v459
    %568 = vmatprep.subr.bf16.mxu0 %v465
    %569 = vmatpush1.bf16.msra.mxu0 %v464
    %570 = vmatprep.subr.bf16.mxu0 %v470
    %571 = vmatpush1.bf16.msra.mxu0 %v469
    %572 = vmatprep.subr.bf16.mxu0 %v475
    %573 = vmatpush1.bf16.msra.mxu0 %v474
    %574 = vmatprep.subr.bf16.mxu0 0
    %575 = vmatpush1.bf16.msra.mxu0 0
    %576 = vmatprep.subr.bf16.mxu0 0
    %577 = vmatpush1.bf16.msra.mxu0 0
    %578 = vmatprep.subr.bf16.mxu0 0
    %579 = vmatpush1.bf16.msra.mxu0 0
    %580 = vmatprep.subr.bf16.mxu0 0
    %581 = vmatpush1.bf16.msra.mxu0 0
    %582 = vmatprep.subr.bf16.mxu0 0
    %583 = vmatpush1.bf16.msra.mxu0 0
    %584 = vmatprep.subr.bf16.mxu0 0
    %585 = vmatpush1.bf16.msra.mxu0 0
    %586 = vmatprep.subr.bf16.mxu0 0
    %587 = vmatpush1.bf16.msra.mxu0 0
    %588 = vmatprep.subr.bf16.mxu0 0
    %589 = vmatpush1.bf16.msra.mxu0 0
    %590 = vmatprep.mubr.bf16.mxu0 0
    %591 = vmatmul.mubr.bf16.gmra.mrb[0].mxu0 %v307
    %v592 = vpop.f32.mrb[0].mxu0
    %v593 = vadd.f32 %v256, %v592
    %v594 = vpop.f32.mrb[0].mxu0
    %v595 = vadd.f32 %v260, %v594
    %v596 = vpop.f32.mrb[0].mxu0
    %v597 = vpop.f32.mrb[0].mxu0
    %598 = vdwg.mxu0
    %599 = vmatprep.subr.bf16.mxu0 0
    %600 = vmatpush1.bf16.msra.mxu0 %v441
    %601 = vmatprep.subr.bf16.mxu0 0
    %602 = vmatpush1.bf16.msra.mxu0 %v446
    %603 = vmatprep.subr.bf16.mxu0 0
    %604 = vmatpush1.bf16.msra.mxu0 %v451
    %605 = vmatprep.subr.bf16.mxu0 0
    %606 = vmatpush1.bf16.msra.mxu0 %v456
    %607 = vmatprep.subr.bf16.mxu0 0
    %608 = vmatpush1.bf16.msra.mxu0 %v461
    %609 = vmatprep.subr.bf16.mxu0 0
    %610 = vmatpush1.bf16.msra.mxu0 %v466
    %611 = vmatprep.subr.bf16.mxu0 0
    %612 = vmatpush1.bf16.msra.mxu0 %v471
    %613 = vmatprep.subr.bf16.mxu0 0
    %614 = vmatpush1.bf16.msra.mxu0 %v476
    %615 = vmatprep.subr.bf16.mxu0 0
    %616 = vmatpush1.bf16.msra.mxu0 0
    %617 = vmatprep.subr.bf16.mxu0 0
    %618 = vmatpush1.bf16.msra.mxu0 0
    %619 = vmatprep.subr.bf16.mxu0 0
    %620 = vmatpush1.bf16.msra.mxu0 0
    %621 = vmatprep.subr.bf16.mxu0 0
    %622 = vmatpush1.bf16.msra.mxu0 0
    %623 = vmatprep.subr.bf16.mxu0 0
    %624 = vmatpush1.bf16.msra.mxu0 0
    %625 = vmatprep.subr.bf16.mxu0 0
    %626 = vmatpush1.bf16.msra.mxu0 0
    %627 = vmatprep.subr.bf16.mxu0 0
    %628 = vmatpush1.bf16.msra.mxu0 0
    %629 = vmatprep.subr.bf16.mxu0 0
    %630 = vmatpush1.bf16.msra.mxu0 0
    %631 = vmatprep.mubr.bf16.mxu0 0
    %632 = vmatmul.mubr.bf16.gmra.mrb[0].mxu0 %v307
    %v633 = vpop.f32.mrb[0].mxu0
    %v634 = vadd.f32 %v264, %v633
    %v635 = vpop.f32.mrb[0].mxu0
    %v636 = vpop.f32.mrb[0].mxu0
    %v637 = vpop.f32.mrb[0].mxu0
    %638 = vdwg.mxu0
    %v639 = vmax.f32 %v552, 0.0
    %v640 = vmax.f32 %v554, 0.0
    %v641 = vmax.f32 %v593, 0.0
    %v642 = vmax.f32 %v595, 0.0
    %v643 = vmax.f32 %v634, 0.0
    %v644 = vpack.c.bf16 %v639, %v639
    %v645 = vpack.c.bf16 %v640, %v640
    %v646 = vpack.c.bf16 %v641, %v641
    %v647 = vpack.c.bf16 %v642, %v642
    %v648 = vpack.c.bf16 %v643, %v643
    %v649 = vld [vmem:[#allocation7] sm:$0xff]
    %v650 = vld [vmem:[#allocation7 + $0x8] sm:$0xf]
    %v651 = vld [vmem:[#allocation7 + $0xc] sm:$0xff]
    %v652 = vld [vmem:[#allocation7 + $0x14] sm:$0xf]
    %v653 = vld [vmem:[#allocation7 + $0x18] sm:$0xff]
    %v654 = vld [vmem:[#allocation7 + $0x20] sm:$0xf]
    %v655 = vld [vmem:[#allocation7 + $0x24] sm:$0xff]
    %v656 = vld [vmem:[#allocation7 + $0x2c] sm:$0xf]
    %v657 = vld [vmem:[#allocation7 + $0x30] sm:$0xff]
    %v658 = vld [vmem:[#allocation7 + $0x38] sm:$0xf]
    %v659 = vld [vmem:[#allocation7 + $0x3c] sm:$0xff]
    %v660 = vld [vmem:[#allocation7 + $0x44] sm:$0xf]
    %v661 = vld [vmem:[#allocation7 + $0x48] sm:$0xff]
    %v662 = vld [vmem:[#allocation7 + $0x50] sm:$0xf]
    %v663 = vld [vmem:[#allocation7 + $0x54] sm:$0xff]
    %v664 = vld [vmem:[#allocation7 + $0x5c] sm:$0xf]
    %v665 = vld [vmem:[#allocation7 + $0x60] sm:$0xff]
    %v666 = vld [vmem:[#allocation7 + $0x68] sm:$0xf]
    %v667 = vld [vmem:[#allocation7 + $0x6c] sm:$0xff]
    %v668 = vld [vmem:[#allocation7 + $0x74] sm:$0xf]
    %v669 = vld [vmem:[#allocation7 + $0x78] sm:$0xff]
    %v670 = vld [vmem:[#allocation7 + $0x80] sm:$0xf]
    %v671 = vld [vmem:[#allocation7 + $0x84] sm:$0xff]
    %v672 = vld [vmem:[#allocation7 + $0x8c] sm:$0xf]
    %v673 = vld [vmem:[#allocation7 + $0x90] sm:$0xff]
    %v674 = vld [vmem:[#allocation7 + $0x98] sm:$0xf]
    %v675 = vld [vmem:[#allocation7 + $0x9c] sm:$0xff]
    %v676 = vld [vmem:[#allocation7 + $0xa4] sm:$0xf]
    %v677 = vld [vmem:[#allocation7 + $0xa8] sm:$0xff]
    %v678 = vld [vmem:[#allocation7 + $0xb0] sm:$0xf]
    %v679 = vld [vmem:[#allocation7 + $0xb4] sm:$0xff]
    %v680 = vld [vmem:[#allocation7 + $0xbc] sm:$0xf]
    %v681 = vld [vmem:[#allocation7 + $0xc0] sm:$0xff]
    %v682 = vld [vmem:[#allocation7 + $0xc8] sm:$0xf]
    %v683 = vld [vmem:[#allocation7 + $0xcc] sm:$0xff]
    %v684 = vld [vmem:[#allocation7 + $0xd4] sm:$0xf]
    %v685 = vld [vmem:[#allocation7 + $0xd8] sm:$0xff]
    %v686 = vld [vmem:[#allocation7 + $0xe0] sm:$0xf]
    %v687 = vld [vmem:[#allocation7 + $0xe4] sm:$0xff]
    %v688 = vld [vmem:[#allocation7 + $0xec] sm:$0xf]
    %v689 = vld [vmem:[#allocation7 + $0xf0] sm:$0xff]
    %v690 = vld [vmem:[#allocation7 + $0xf8] sm:$0xf]
    %v691 = vld [vmem:[#allocation7 + $0xfc] sm:$0xff]
    %v692 = vld [vmem:[#allocation7 + $0x104] sm:$0xf]
    %v693 = vld [vmem:[#allocation7 + $0x108] sm:$0xff]
    %v694 = vld [vmem:[#allocation7 + $0x110] sm:$0xf]
    %v695 = vld [vmem:[#allocation7 + $0x114] sm:$0xff]
    %v696 = vld [vmem:[#allocation7 + $0x11c] sm:$0xf]
    %v697 = vld [vmem:[#allocation7 + $0x120] sm:$0xff]
    %v698 = vld [vmem:[#allocation7 + $0x128] sm:$0xf]
    %v699 = vld [vmem:[#allocation7 + $0x12c] sm:$0xff]
    %v700 = vld [vmem:[#allocation7 + $0x134] sm:$0xf]
    %v701 = vld [vmem:[#allocation7 + $0x138] sm:$0xff]
    %v702 = vld [vmem:[#allocation7 + $0x140] sm:$0xf]
    %v703 = vld [vmem:[#allocation7 + $0x144] sm:$0xff]
    %v704 = vld [vmem:[#allocation7 + $0x14c] sm:$0xf]
    %v705 = vld [vmem:[#allocation7 + $0x150] sm:$0xff]
    %v706 = vld [vmem:[#allocation7 + $0x158] sm:$0xf]
    %v707 = vld [vmem:[#allocation7 + $0x15c] sm:$0xff]
    %v708 = vld [vmem:[#allocation7 + $0x164] sm:$0xf]
    %v709 = vld [vmem:[#allocation7 + $0x168] sm:$0xff]
    %v710 = vld [vmem:[#allocation7 + $0x170] sm:$0xf]
    %v711 = vld [vmem:[#allocation7 + $0x174] sm:$0xff]
    %v712 = vld [vmem:[#allocation7 + $0x17c] sm:$0xf]
    %v713 = vld [vmem:[#allocation7 + $0x180] sm:$0xff]
    %v714 = vld [vmem:[#allocation7 + $0x188] sm:$0xf]
    %v715 = vld [vmem:[#allocation7 + $0x18c] sm:$0xff]
    %v716 = vld [vmem:[#allocation7 + $0x194] sm:$0xf]
    %v717 = vld [vmem:[#allocation7 + $0x198] sm:$0xff]
    %v718 = vld [vmem:[#allocation7 + $0x1a0] sm:$0xf]
    %v719 = vld [vmem:[#allocation7 + $0x1a4] sm:$0xff]
    %v720 = vld [vmem:[#allocation7 + $0x1ac] sm:$0xf]
    %v721 = vld [vmem:[#allocation7 + $0x1b0] sm:$0xff]
    %v722 = vld [vmem:[#allocation7 + $0x1b8] sm:$0xf]
    %v723 = vld [vmem:[#allocation7 + $0x1bc] sm:$0xff]
    %v724 = vld [vmem:[#allocation7 + $0x1c4] sm:$0xf]
    %v725 = vld [vmem:[#allocation7 + $0x1c8] sm:$0xff]
    %v726 = vld [vmem:[#allocation7 + $0x1d0] sm:$0xf]
    %v727 = vld [vmem:[#allocation7 + $0x1d4] sm:$0xff]
    %v728 = vld [vmem:[#allocation7 + $0x1dc] sm:$0xf]
    %v729 = vld [vmem:[#allocation7 + $0x1e0] sm:$0xff]
    %v730 = vld [vmem:[#allocation7 + $0x1e8] sm:$0xf]
    %v731 = vld [vmem:[#allocation7 + $0x1ec] sm:$0xff]
    %v732 = vld [vmem:[#allocation7 + $0x1f4] sm:$0xf]
    %v733 = vld [vmem:[#allocation7 + $0x1f8] sm:$0xff]
    %v734 = vld [vmem:[#allocation7 + $0x200] sm:$0xf]
    %v735 = vld [vmem:[#allocation7 + $0x204] sm:$0xff]
    %v736 = vld [vmem:[#allocation7 + $0x20c] sm:$0xf]
    %v737 = vld [vmem:[#allocation7 + $0x210] sm:$0xff]
    %v738 = vld [vmem:[#allocation7 + $0x218] sm:$0xf]
    %v739 = vld [vmem:[#allocation7 + $0x21c] sm:$0xff]
    %v740 = vld [vmem:[#allocation7 + $0x224] sm:$0xf]
    %v741 = vld [vmem:[#allocation7 + $0x228] sm:$0xff]
    %v742 = vld [vmem:[#allocation7 + $0x230] sm:$0xf]
    %v743 = vld [vmem:[#allocation7 + $0x234] sm:$0xff]
    %v744 = vld [vmem:[#allocation7 + $0x23c] sm:$0xf]
    %v745 = vld [vmem:[#allocation7 + $0x240] sm:$0xff]
    %v746 = vld [vmem:[#allocation7 + $0x248] sm:$0xf]
    %v747 = vld [vmem:[#allocation7 + $0x24c] sm:$0xff]
    %v748 = vld [vmem:[#allocation7 + $0x254] sm:$0xf]
    %v749 = vld [vmem:[#allocation7 + $0x258] sm:$0xff]
    %v750 = vld [vmem:[#allocation7 + $0x260] sm:$0xf]
    %v751 = vld [vmem:[#allocation7 + $0x264] sm:$0xff]
    %v752 = vld [vmem:[#allocation7 + $0x26c] sm:$0xf]
    %v753 = vld [vmem:[#allocation7 + $0x270] sm:$0xff]
    %v754 = vld [vmem:[#allocation7 + $0x278] sm:$0xf]
    %v755 = vld [vmem:[#allocation7 + $0x27c] sm:$0xff]
    %v756 = vld [vmem:[#allocation7 + $0x284] sm:$0xf]
    %v757 = vld [vmem:[#allocation7 + $0x288] sm:$0xff]
    %v758 = vld [vmem:[#allocation7 + $0x290] sm:$0xf]
    %v759 = vld [vmem:[#allocation7 + $0x294] sm:$0xff]
    %v760 = vld [vmem:[#allocation7 + $0x29c] sm:$0xf]
    %v761 = vld [vmem:[#allocation7 + $0x2a0] sm:$0xff]
    %v762 = vld [vmem:[#allocation7 + $0x2a8] sm:$0xf]
    %v763 = vld [vmem:[#allocation7 + $0x2ac] sm:$0xff]
    %v764 = vld [vmem:[#allocation7 + $0x2b4] sm:$0xf]
    %v765 = vld [vmem:[#allocation7 + $0x2b8] sm:$0xff]
    %v766 = vld [vmem:[#allocation7 + $0x2c0] sm:$0xf]
    %v767 = vld [vmem:[#allocation7 + $0x2c4] sm:$0xff]
    %v768 = vld [vmem:[#allocation7 + $0x2cc] sm:$0xf]
    %v769 = vld [vmem:[#allocation7 + $0x2d0] sm:$0xff]
    %v770 = vld [vmem:[#allocation7 + $0x2d8] sm:$0xf]
    %v771 = vld [vmem:[#allocation7 + $0x2dc] sm:$0xff]
    %v772 = vld [vmem:[#allocation7 + $0x2e4] sm:$0xf]
    %v773 = vld [vmem:[#allocation7 + $0x2e8] sm:$0xff]
    %v774 = vld [vmem:[#allocation7 + $0x2f0] sm:$0xf]
    %v775 = vld [vmem:[#allocation7 + $0x2f4] sm:$0xff]
    %v776 = vld [vmem:[#allocation7 + $0x2fc] sm:$0xf]
    %v777 = vld [vmem:[#allocation7 + $0x300] sm:$0xff]
    %v778 = vld [vmem:[#allocation7 + $0x308] sm:$0xf]
    %v779 = vld [vmem:[#allocation7 + $0x30c] sm:$0xff]
    %v780 = vld [vmem:[#allocation7 + $0x314] sm:$0xf]
    %v781 = vld [vmem:[#allocation7 + $0x318] sm:$0xff]
    %v782 = vld [vmem:[#allocation7 + $0x320] sm:$0xf]
    %v783 = vld [vmem:[#allocation7 + $0x324] sm:$0xff]
    %v784 = vld [vmem:[#allocation7 + $0x32c] sm:$0xf]
    %v785 = vld [vmem:[#allocation7 + $0x330] sm:$0xff]
    %v786 = vld [vmem:[#allocation7 + $0x338] sm:$0xf]
    %v787 = vld [vmem:[#allocation7 + $0x33c] sm:$0xff]
    %v788 = vld [vmem:[#allocation7 + $0x344] sm:$0xf]
    %v789 = vld [vmem:[#allocation7 + $0x348] sm:$0xff]
    %v790 = vld [vmem:[#allocation7 + $0x350] sm:$0xf]
    %v791 = vld [vmem:[#allocation7 + $0x354] sm:$0xff]
    %v792 = vld [vmem:[#allocation7 + $0x35c] sm:$0xf]
    %v793 = vld [vmem:[#allocation7 + $0x360] sm:$0xff]
    %v794 = vld [vmem:[#allocation7 + $0x368] sm:$0xf]
    %v795 = vld [vmem:[#allocation7 + $0x36c] sm:$0xff]
    %v796 = vld [vmem:[#allocation7 + $0x374] sm:$0xf]
    %v797 = vld [vmem:[#allocation7 + $0x378] sm:$0xff]
    %v798 = vld [vmem:[#allocation7 + $0x380] sm:$0xf]
    %v799 = vld [vmem:[#allocation7 + $0x384] sm:$0xff]
    %v800 = vld [vmem:[#allocation7 + $0x38c] sm:$0xf]
    %v801 = vld [vmem:[#allocation7 + $0x390] sm:$0xff]
    %v802 = vld [vmem:[#allocation7 + $0x398] sm:$0xf]
    %v803 = vld [vmem:[#allocation7 + $0x39c] sm:$0xff]
    %v804 = vld [vmem:[#allocation7 + $0x3a4] sm:$0xf]
    %v805 = vld [vmem:[#allocation7 + $0x3a8] sm:$0xff]
    %v806 = vld [vmem:[#allocation7 + $0x3b0] sm:$0xf]
    %v807 = vld [vmem:[#allocation7 + $0x3b4] sm:$0xff]
    %v808 = vld [vmem:[#allocation7 + $0x3bc] sm:$0xf]
    %v809 = vld [vmem:[%s5] sm:$0x7]
    %v811 = vlaneseq
    %v812 = vshrl.u32 %v811, 7
    %v813 = vsub.s32 0, %v812
    %v814 = vrot.slane %v809, %v813
    %v815 = vlaneseq
    %v816 = vshrl.u32 %v815, 7
    %v817 = vsub.s32 1, %v816
    %v818 = vrot.slane %v809, %v817
    %v819 = vlaneseq
    %v820 = vshrl.u32 %v819, 7
    %v821 = vsub.s32 2, %v820
    %v822 = vrot.slane %v809, %v821
    %v986 = vunpack.c.l.b16 %v649
    %v987 = vunpack.c.h.b16 %v649
    %v988 = vunpack.c.l.b16 %v650
    %v989 = vunpack.c.l.b16 %v651
    %v990 = vunpack.c.h.b16 %v651
    %v991 = vunpack.c.l.b16 %v652
    %v992 = vunpack.c.l.b16 %v653
    %v993 = vunpack.c.h.b16 %v653
    %v994 = vunpack.c.l.b16 %v654
    %v995 = vunpack.c.l.b16 %v655
    %v996 = vunpack.c.h.b16 %v655
    %v997 = vunpack.c.l.b16 %v656
    %v998 = vunpack.c.l.b16 %v657
    %v999 = vunpack.c.h.b16 %v657
    %v1000 = vunpack.c.l.b16 %v658
    %v1001 = vunpack.c.l.b16 %v659
    %v1002 = vunpack.c.h.b16 %v659
    %v1003 = vunpack.c.l.b16 %v660
    %v1004 = vunpack.c.l.b16 %v661
    %v1005 = vunpack.c.h.b16 %v661
    %v1006 = vunpack.c.l.b16 %v662
    %v1007 = vunpack.c.l.b16 %v663
    %v1008 = vunpack.c.h.b16 %v663
    %v1009 = vunpack.c.l.b16 %v664
    %v1010 = vunpack.c.l.b16 %v665
    %v1011 = vunpack.c.h.b16 %v665
    %v1012 = vunpack.c.l.b16 %v666
    %v1013 = vunpack.c.l.b16 %v667
    %v1014 = vunpack.c.h.b16 %v667
    %v1015 = vunpack.c.l.b16 %v668
    %v1016 = vunpack.c.l.b16 %v669
    %v1017 = vunpack.c.h.b16 %v669
    %v1018 = vunpack.c.l.b16 %v670
    %v1019 = vunpack.c.l.b16 %v671
    %v1020 = vunpack.c.h.b16 %v671
    %v1021 = vunpack.c.l.b16 %v672
    %v1022 = vunpack.c.l.b16 %v673
    %v1023 = vunpack.c.h.b16 %v673
    %v1024 = vunpack.c.l.b16 %v674
    %v1025 = vunpack.c.l.b16 %v675
    %v1026 = vunpack.c.h.b16 %v675
    %v1027 = vunpack.c.l.b16 %v676
    %v1028 = vunpack.c.l.b16 %v677
    %v1029 = vunpack.c.h.b16 %v677
    %v1030 = vunpack.c.l.b16 %v678
    %v1031 = vunpack.c.l.b16 %v679
    %v1032 = vunpack.c.h.b16 %v679
    %v1033 = vunpack.c.l.b16 %v680
    %v1034 = vunpack.c.l.b16 %v681
    %v1035 = vunpack.c.h.b16 %v681
    %v1036 = vunpack.c.l.b16 %v682
    %v1037 = vunpack.c.l.b16 %v683
    %v1038 = vunpack.c.h.b16 %v683
    %v1039 = vunpack.c.l.b16 %v684
    %v1040 = vunpack.c.l.b16 %v685
    %v1041 = vunpack.c.h.b16 %v685
    %v1042 = vunpack.c.l.b16 %v686
    %v1043 = vunpack.c.l.b16 %v687
    %v1044 = vunpack.c.h.b16 %v687
    %v1045 = vunpack.c.l.b16 %v688
    %v1046 = vunpack.c.l.b16 %v689
    %v1047 = vunpack.c.h.b16 %v689
    %v1048 = vunpack.c.l.b16 %v690
    %v1049 = vunpack.c.l.b16 %v691
    %v1050 = vunpack.c.h.b16 %v691
    %v1051 = vunpack.c.l.b16 %v692
    %v1052 = vunpack.c.l.b16 %v693
    %v1053 = vunpack.c.h.b16 %v693
    %v1054 = vunpack.c.l.b16 %v694
    %v1055 = vunpack.c.l.b16 %v695
    %v1056 = vunpack.c.h.b16 %v695
    %v1057 = vunpack.c.l.b16 %v696
    %v1058 = vunpack.c.l.b16 %v697
    %v1059 = vunpack.c.h.b16 %v697
    %v1060 = vunpack.c.l.b16 %v698
    %v1061 = vunpack.c.l.b16 %v699
    %v1062 = vunpack.c.h.b16 %v699
    %v1063 = vunpack.c.l.b16 %v700
    %v1064 = vunpack.c.l.b16 %v701
    %v1065 = vunpack.c.h.b16 %v701
    %v1066 = vunpack.c.l.b16 %v702
    %v1067 = vunpack.c.l.b16 %v703
    %v1068 = vunpack.c.h.b16 %v703
    %v1069 = vunpack.c.l.b16 %v704
    %v1070 = vunpack.c.l.b16 %v705
    %v1071 = vunpack.c.h.b16 %v705
    %v1072 = vunpack.c.l.b16 %v706
    %v1073 = vunpack.c.l.b16 %v707
    %v1074 = vunpack.c.h.b16 %v707
    %v1075 = vunpack.c.l.b16 %v708
    %v1076 = vunpack.c.l.b16 %v709
    %v1077 = vunpack.c.h.b16 %v709
    %v1078 = vunpack.c.l.b16 %v710
    %v1079 = vunpack.c.l.b16 %v711
    %v1080 = vunpack.c.h.b16 %v711
    %v1081 = vunpack.c.l.b16 %v712
    %v1082 = vunpack.c.l.b16 %v713
    %v1083 = vunpack.c.h.b16 %v713
    %v1084 = vunpack.c.l.b16 %v714
    %v1085 = vunpack.c.l.b16 %v715
    %v1086 = vunpack.c.h.b16 %v715
    %v1087 = vunpack.c.l.b16 %v716
    %v1088 = vunpack.c.l.b16 %v717
    %v1089 = vunpack.c.h.b16 %v717
    %v1090 = vunpack.c.l.b16 %v718
    %v1091 = vunpack.c.l.b16 %v719
    %v1092 = vunpack.c.h.b16 %v719
    %v1093 = vunpack.c.l.b16 %v720
    %v1094 = vunpack.c.l.b16 %v721
    %v1095 = vunpack.c.h.b16 %v721
    %v1096 = vunpack.c.l.b16 %v722
    %v1097 = vunpack.c.l.b16 %v723
    %v1098 = vunpack.c.h.b16 %v723
    %v1099 = vunpack.c.l.b16 %v724
    %v1100 = vunpack.c.l.b16 %v725
    %v1101 = vunpack.c.h.b16 %v725
    %v1102 = vunpack.c.l.b16 %v726
    %v1103 = vunpack.c.l.b16 %v727
    %v1104 = vunpack.c.h.b16 %v727
    %v1105 = vunpack.c.l.b16 %v728
    %v1106 = vunpack.c.l.b16 %v729
    %v1107 = vunpack.c.h.b16 %v729
    %v1108 = vunpack.c.l.b16 %v730
    %v1109 = vunpack.c.l.b16 %v731
    %v1110 = vunpack.c.h.b16 %v731
    %v1111 = vunpack.c.l.b16 %v732
    %v1112 = vunpack.c.l.b16 %v733
    %v1113 = vunpack.c.h.b16 %v733
    %v1114 = vunpack.c.l.b16 %v734
    %v1115 = vunpack.c.l.b16 %v735
    %v1116 = vunpack.c.h.b16 %v735
    %v1117 = vunpack.c.l.b16 %v736
    %v1118 = vunpack.c.l.b16 %v737
    %v1119 = vunpack.c.h.b16 %v737
    %v1120 = vunpack.c.l.b16 %v738
    %v1121 = vunpack.c.l.b16 %v739
    %v1122 = vunpack.c.h.b16 %v739
    %v1123 = vunpack.c.l.b16 %v740
    %v1124 = vunpack.c.l.b16 %v741
    %v1125 = vunpack.c.h.b16 %v741
    %v1126 = vunpack.c.l.b16 %v742
    %v1127 = vunpack.c.l.b16 %v743
    %v1128 = vunpack.c.h.b16 %v743
    %v1129 = vunpack.c.l.b16 %v744
    %v1130 = vunpack.c.l.b16 %v745
    %v1131 = vunpack.c.h.b16 %v745
    %v1132 = vunpack.c.l.b16 %v746
    %v1133 = vunpack.c.l.b16 %v747
    %v1134 = vunpack.c.h.b16 %v747
    %v1135 = vunpack.c.l.b16 %v748
    %v1136 = vunpack.c.l.b16 %v749
    %v1137 = vunpack.c.h.b16 %v749
    %v1138 = vunpack.c.l.b16 %v750
    %v1139 = vunpack.c.l.b16 %v751
    %v1140 = vunpack.c.h.b16 %v751
    %v1141 = vunpack.c.l.b16 %v752
    %v1142 = vunpack.c.l.b16 %v753
    %v1143 = vunpack.c.h.b16 %v753
    %v1144 = vunpack.c.l.b16 %v754
    %v1145 = vunpack.c.l.b16 %v755
    %v1146 = vunpack.c.h.b16 %v755
    %v1147 = vunpack.c.l.b16 %v756
    %v1148 = vunpack.c.l.b16 %v757
    %v1149 = vunpack.c.h.b16 %v757
    %v1150 = vunpack.c.l.b16 %v758
    %v1151 = vunpack.c.l.b16 %v759
    %v1152 = vunpack.c.h.b16 %v759
    %v1153 = vunpack.c.l.b16 %v760
    %v1154 = vunpack.c.l.b16 %v761
    %v1155 = vunpack.c.h.b16 %v761
    %v1156 = vunpack.c.l.b16 %v762
    %v1157 = vunpack.c.l.b16 %v763
    %v1158 = vunpack.c.h.b16 %v763
    %v1159 = vunpack.c.l.b16 %v764
    %v1160 = vunpack.c.l.b16 %v765
    %v1161 = vunpack.c.h.b16 %v765
    %v1162 = vunpack.c.l.b16 %v766
    %v1163 = vunpack.c.l.b16 %v767
    %v1164 = vunpack.c.h.b16 %v767
    %v1165 = vunpack.c.l.b16 %v768
    %v1166 = vunpack.c.l.b16 %v769
    %v1167 = vunpack.c.h.b16 %v769
    %v1168 = vunpack.c.l.b16 %v770
    %v1169 = vunpack.c.l.b16 %v771
    %v1170 = vunpack.c.h.b16 %v771
    %v1171 = vunpack.c.l.b16 %v772
    %v1172 = vunpack.c.l.b16 %v773
    %v1173 = vunpack.c.h.b16 %v773
    %v1174 = vunpack.c.l.b16 %v774
    %v1175 = vunpack.c.l.b16 %v775
    %v1176 = vunpack.c.h.b16 %v775
    %v1177 = vunpack.c.l.b16 %v776
    %v1178 = vunpack.c.l.b16 %v777
    %v1179 = vunpack.c.h.b16 %v777
    %v1180 = vunpack.c.l.b16 %v778
    %v1181 = vunpack.c.l.b16 %v779
    %v1182 = vunpack.c.h.b16 %v779
    %v1183 = vunpack.c.l.b16 %v780
    %v1184 = vunpack.c.l.b16 %v781
    %v1185 = vunpack.c.h.b16 %v781
    %v1186 = vunpack.c.l.b16 %v782
    %v1187 = vunpack.c.l.b16 %v783
    %v1188 = vunpack.c.h.b16 %v783
    %v1189 = vunpack.c.l.b16 %v784
    %v1190 = vunpack.c.l.b16 %v785
    %v1191 = vunpack.c.h.b16 %v785
    %v1192 = vunpack.c.l.b16 %v786
    %v1193 = vunpack.c.l.b16 %v787
    %v1194 = vunpack.c.h.b16 %v787
    %v1195 = vunpack.c.l.b16 %v788
    %v1196 = vunpack.c.l.b16 %v789
    %v1197 = vunpack.c.h.b16 %v789
    %v1198 = vunpack.c.l.b16 %v790
    %v1199 = vunpack.c.l.b16 %v791
    %v1200 = vunpack.c.h.b16 %v791
    %v1201 = vunpack.c.l.b16 %v792
    %v1202 = vunpack.c.l.b16 %v793
    %v1203 = vunpack.c.h.b16 %v793
    %v1204 = vunpack.c.l.b16 %v794
    %v1205 = vunpack.c.l.b16 %v795
    %v1206 = vunpack.c.h.b16 %v795
    %v1207 = vunpack.c.l.b16 %v796
    %v1208 = vunpack.c.l.b16 %v797
    %v1209 = vunpack.c.h.b16 %v797
    %v1210 = vunpack.c.l.b16 %v798
    %v1211 = vunpack.c.l.b16 %v799
    %v1212 = vunpack.c.h.b16 %v799
    %v1213 = vunpack.c.l.b16 %v800
    %v1214 = vunpack.c.l.b16 %v801
    %v1215 = vunpack.c.h.b16 %v801
    %v1216 = vunpack.c.l.b16 %v802
    %v1217 = vunpack.c.l.b16 %v803
    %v1218 = vunpack.c.h.b16 %v803
    %v1219 = vunpack.c.l.b16 %v804
    %v1220 = vunpack.c.l.b16 %v805
    %v1221 = vunpack.c.h.b16 %v805
    %v1222 = vunpack.c.l.b16 %v806
    %v1223 = vunpack.c.l.b16 %v807
    %v1224 = vunpack.c.h.b16 %v807
    %v1225 = vunpack.c.l.b16 %v808
    %v1226 = vpack.c.b16 %v989, %v986
    %v1227 = vpack.c.b16 %v990, %v987
    %v1228 = vpack.c.b16 %v991, %v988
    %v1229 = vpack.c.b16 %v995, %v992
    %v1230 = vpack.c.b16 %v996, %v993
    %v1231 = vpack.c.b16 %v997, %v994
    %v1232 = vpack.c.b16 %v1001, %v998
    %v1233 = vpack.c.b16 %v1002, %v999
    %v1234 = vpack.c.b16 %v1003, %v1000
    %v1235 = vpack.c.b16 %v1007, %v1004
    %v1236 = vpack.c.b16 %v1008, %v1005
    %v1237 = vpack.c.b16 %v1009, %v1006
    %v1238 = vpack.c.b16 %v1013, %v1010
    %v1239 = vpack.c.b16 %v1014, %v1011
    %v1240 = vpack.c.b16 %v1015, %v1012
    %v1241 = vpack.c.b16 %v1019, %v1016
    %v1242 = vpack.c.b16 %v1020, %v1017
    %v1243 = vpack.c.b16 %v1021, %v1018
    %v1244 = vpack.c.b16 %v1025, %v1022
    %v1245 = vpack.c.b16 %v1026, %v1023
    %v1246 = vpack.c.b16 %v1027, %v1024
    %v1247 = vpack.c.b16 %v1031, %v1028
    %v1248 = vpack.c.b16 %v1032, %v1029
    %v1249 = vpack.c.b16 %v1033, %v1030
    %v1250 = vpack.c.b16 %v1037, %v1034
    %v1251 = vpack.c.b16 %v1038, %v1035
    %v1252 = vpack.c.b16 %v1039, %v1036
    %v1253 = vpack.c.b16 %v1043, %v1040
    %v1254 = vpack.c.b16 %v1044, %v1041
    %v1255 = vpack.c.b16 %v1045, %v1042
    %v1256 = vpack.c.b16 %v1049, %v1046
    %v1257 = vpack.c.b16 %v1050, %v1047
    %v1258 = vpack.c.b16 %v1051, %v1048
    %v1259 = vpack.c.b16 %v1055, %v1052
    %v1260 = vpack.c.b16 %v1056, %v1053
    %v1261 = vpack.c.b16 %v1057, %v1054
    %v1262 = vpack.c.b16 %v1061, %v1058
    %v1263 = vpack.c.b16 %v1062, %v1059
    %v1264 = vpack.c.b16 %v1063, %v1060
    %v1265 = vpack.c.b16 %v1067, %v1064
    %v1266 = vpack.c.b16 %v1068, %v1065
    %v1267 = vpack.c.b16 %v1069, %v1066
    %v1268 = vpack.c.b16 %v1073, %v1070
    %v1269 = vpack.c.b16 %v1074, %v1071
    %v1270 = vpack.c.b16 %v1075, %v1072
    %v1271 = vpack.c.b16 %v1079, %v1076
    %v1272 = vpack.c.b16 %v1080, %v1077
    %v1273 = vpack.c.b16 %v1081, %v1078
    %v1274 = vpack.c.b16 %v1085, %v1082
    %v1275 = vpack.c.b16 %v1086, %v1083
    %v1276 = vpack.c.b16 %v1087, %v1084
    %v1277 = vpack.c.b16 %v1091, %v1088
    %v1278 = vpack.c.b16 %v1092, %v1089
    %v1279 = vpack.c.b16 %v1093, %v1090
    %v1280 = vpack.c.b16 %v1097, %v1094
    %v1281 = vpack.c.b16 %v1098, %v1095
    %v1282 = vpack.c.b16 %v1099, %v1096
    %v1283 = vpack.c.b16 %v1103, %v1100
    %v1284 = vpack.c.b16 %v1104, %v1101
    %v1285 = vpack.c.b16 %v1105, %v1102
    %v1286 = vpack.c.b16 %v1109, %v1106
    %v1287 = vpack.c.b16 %v1110, %v1107
    %v1288 = vpack.c.b16 %v1111, %v1108
    %v1289 = vpack.c.b16 %v1115, %v1112
    %v1290 = vpack.c.b16 %v1116, %v1113
    %v1291 = vpack.c.b16 %v1117, %v1114
    %v1292 = vpack.c.b16 %v1121, %v1118
    %v1293 = vpack.c.b16 %v1122, %v1119
    %v1294 = vpack.c.b16 %v1123, %v1120
    %v1295 = vpack.c.b16 %v1127, %v1124
    %v1296 = vpack.c.b16 %v1128, %v1125
    %v1297 = vpack.c.b16 %v1129, %v1126
    %v1298 = vpack.c.b16 %v1133, %v1130
    %v1299 = vpack.c.b16 %v1134, %v1131
    %v1300 = vpack.c.b16 %v1135, %v1132
    %v1301 = vpack.c.b16 %v1139, %v1136
    %v1302 = vpack.c.b16 %v1140, %v1137
    %v1303 = vpack.c.b16 %v1141, %v1138
    %v1304 = vpack.c.b16 %v1145, %v1142
    %v1305 = vpack.c.b16 %v1146, %v1143
    %v1306 = vpack.c.b16 %v1147, %v1144
    %v1307 = vpack.c.b16 %v1151, %v1148
    %v1308 = vpack.c.b16 %v1152, %v1149
    %v1309 = vpack.c.b16 %v1153, %v1150
    %v1310 = vpack.c.b16 %v1157, %v1154
    %v1311 = vpack.c.b16 %v1158, %v1155
    %v1312 = vpack.c.b16 %v1159, %v1156
    %v1313 = vpack.c.b16 %v1163, %v1160
    %v1314 = vpack.c.b16 %v1164, %v1161
    %v1315 = vpack.c.b16 %v1165, %v1162
    %v1316 = vpack.c.b16 %v1169, %v1166
    %v1317 = vpack.c.b16 %v1170, %v1167
    %v1318 = vpack.c.b16 %v1171, %v1168
    %v1319 = vpack.c.b16 %v1175, %v1172
    %v1320 = vpack.c.b16 %v1176, %v1173
    %v1321 = vpack.c.b16 %v1177, %v1174
    %v1322 = vpack.c.b16 %v1181, %v1178
    %v1323 = vpack.c.b16 %v1182, %v1179
    %v1324 = vpack.c.b16 %v1183, %v1180
    %v1325 = vpack.c.b16 %v1187, %v1184
    %v1326 = vpack.c.b16 %v1188, %v1185
    %v1327 = vpack.c.b16 %v1189, %v1186
    %v1328 = vpack.c.b16 %v1193, %v1190
    %v1329 = vpack.c.b16 %v1194, %v1191
    %v1330 = vpack.c.b16 %v1195, %v1192
    %v1331 = vpack.c.b16 %v1199, %v1196
    %v1332 = vpack.c.b16 %v1200, %v1197
    %v1333 = vpack.c.b16 %v1201, %v1198
    %v1334 = vpack.c.b16 %v1205, %v1202
    %v1335 = vpack.c.b16 %v1206, %v1203
    %v1336 = vpack.c.b16 %v1207, %v1204
    %v1337 = vpack.c.b16 %v1211, %v1208
    %v1338 = vpack.c.b16 %v1212, %v1209
    %v1339 = vpack.c.b16 %v1213, %v1210
    %v1340 = vpack.c.b16 %v1217, %v1214
    %v1341 = vpack.c.b16 %v1218, %v1215
    %v1342 = vpack.c.b16 %v1219, %v1216
    %v1343 = vpack.c.b16 %v1223, %v1220
    %v1344 = vpack.c.b16 %v1224, %v1221
    %v1345 = vpack.c.b16 %v1225, %v1222
    %1466 = vmatprep.subr.bf16.mxu0 %v1227
    %1467 = vmatpush1.bf16.msra.mxu0 %v1226
    %1468 = vmatprep.subr.bf16.mxu0 %v1230
    %1469 = vmatpush1.bf16.msra.mxu0 %v1229
    %1470 = vmatprep.subr.bf16.mxu0 %v1233
    %1471 = vmatpush1.bf16.msra.mxu0 %v1232
    %1472 = vmatprep.subr.bf16.mxu0 %v1236
    %1473 = vmatpush1.bf16.msra.mxu0 %v1235
    %1474 = vmatprep.subr.bf16.mxu0 %v1239
    %1475 = vmatpush1.bf16.msra.mxu0 %v1238
    %1476 = vmatprep.subr.bf16.mxu0 %v1242
    %1477 = vmatpush1.bf16.msra.mxu0 %v1241
    %1478 = vmatprep.subr.bf16.mxu0 %v1245
    %1479 = vmatpush1.bf16.msra.mxu0 %v1244
    %1480 = vmatprep.subr.bf16.mxu0 %v1248
    %1481 = vmatpush1.bf16.msra.mxu0 %v1247
    %1482 = vmatprep.subr.bf16.mxu0 %v1251
    %1483 = vmatpush1.bf16.msra.mxu0 %v1250
    %1484 = vmatprep.subr.bf16.mxu0 %v1254
    %1485 = vmatpush1.bf16.msra.mxu0 %v1253
    %1486 = vmatprep.subr.bf16.mxu0 %v1257
    %1487 = vmatpush1.bf16.msra.mxu0 %v1256
    %1488 = vmatprep.subr.bf16.mxu0 %v1260
    %1489 = vmatpush1.bf16.msra.mxu0 %v1259
    %1490 = vmatprep.subr.bf16.mxu0 %v1263
    %1491 = vmatpush1.bf16.msra.mxu0 %v1262
    %1492 = vmatprep.subr.bf16.mxu0 %v1266
    %1493 = vmatpush1.bf16.msra.mxu0 %v1265
    %1494 = vmatprep.subr.bf16.mxu0 %v1269
    %1495 = vmatpush1.bf16.msra.mxu0 %v1268
    %1496 = vmatprep.subr.bf16.mxu0 %v1272
    %1497 = vmatpush1.bf16.msra.mxu0 %v1271
    %1498 = vmatprep.mubr.bf16.mxu0 %v645
    %1499 = vmatmul.mubr.bf16.gmra.mrb[0].mxu0 %v644
    %v1500 = vpop.f32.mrb[0].mxu0
    %v1501 = vadd.f32 %v814, %v1500
    %v1502 = vpop.f32.mrb[0].mxu0
    %v1503 = vadd.f32 %v818, %v1502
    %v1504 = vpop.f32.mrb[0].mxu0
    %v1505 = vpop.f32.mrb[0].mxu0
    %1506 = vdwg.mxu0
    %1507 = vmatprep.subr.bf16.mxu0 %v1275
    %1508 = vmatpush1.bf16.msra.mxu0 %v1274
    %1509 = vmatprep.subr.bf16.mxu0 %v1278
    %1510 = vmatpush1.bf16.msra.mxu0 %v1277
    %1511 = vmatprep.subr.bf16.mxu0 %v1281
    %1512 = vmatpush1.bf16.msra.mxu0 %v1280
    %1513 = vmatprep.subr.bf16.mxu0 %v1284
    %1514 = vmatpush1.bf16.msra.mxu0 %v1283
    %1515 = vmatprep.subr.bf16.mxu0 %v1287
    %1516 = vmatpush1.bf16.msra.mxu0 %v1286
    %1517 = vmatprep.subr.bf16.mxu0 %v1290
    %1518 = vmatpush1.bf16.msra.mxu0 %v1289
    %1519 = vmatprep.subr.bf16.mxu0 %v1293
    %1520 = vmatpush1.bf16.msra.mxu0 %v1292
    %1521 = vmatprep.subr.bf16.mxu0 %v1296
    %1522 = vmatpush1.bf16.msra.mxu0 %v1295
    %1523 = vmatprep.subr.bf16.mxu0 %v1299
    %1524 = vmatpush1.bf16.msra.mxu0 %v1298
    %1525 = vmatprep.subr.bf16.mxu0 %v1302
    %1526 = vmatpush1.bf16.msra.mxu0 %v1301
    %1527 = vmatprep.subr.bf16.mxu0 %v1305
    %1528 = vmatpush1.bf16.msra.mxu0 %v1304
    %1529 = vmatprep.subr.bf16.mxu0 %v1308
    %1530 = vmatpush1.bf16.msra.mxu0 %v1307
    %1531 = vmatprep.subr.bf16.mxu0 %v1311
    %1532 = vmatpush1.bf16.msra.mxu0 %v1310
    %1533 = vmatprep.subr.bf16.mxu0 %v1314
    %1534 = vmatpush1.bf16.msra.mxu0 %v1313
    %1535 = vmatprep.subr.bf16.mxu0 %v1317
    %1536 = vmatpush1.bf16.msra.mxu0 %v1316
    %1537 = vmatprep.subr.bf16.mxu0 %v1320
    %1538 = vmatpush1.bf16.msra.mxu0 %v1319
    %1539 = vmatprep.mubr.bf16.mxu0 %v647
    %1540 = vmatmul.mubr.bf16.gmra.mrb[0].mxu0 %v646
    %v1541 = vpop.f32.mrb[0].mxu0
    %v1542 = vadd.f32 %v1501, %v1541
    %v1543 = vpop.f32.mrb[0].mxu0
    %v1544 = vadd.f32 %v1503, %v1543
    %v1545 = vpop.f32.mrb[0].mxu0
    %v1546 = vpop.f32.mrb[0].mxu0
    %1547 = vdwg.mxu0
    %1548 = vmatprep.subr.bf16.mxu0 %v1323
    %1549 = vmatpush1.bf16.msra.mxu0 %v1322
    %1550 = vmatprep.subr.bf16.mxu0 %v1326
    %1551 = vmatpush1.bf16.msra.mxu0 %v1325
    %1552 = vmatprep.subr.bf16.mxu0 %v1329
    %1553 = vmatpush1.bf16.msra.mxu0 %v1328
    %1554 = vmatprep.subr.bf16.mxu0 %v1332
    %1555 = vmatpush1.bf16.msra.mxu0 %v1331
    %1556 = vmatprep.subr.bf16.mxu0 %v1335
    %1557 = vmatpush1.bf16.msra.mxu0 %v1334
    %1558 = vmatprep.subr.bf16.mxu0 %v1338
    %1559 = vmatpush1.bf16.msra.mxu0 %v1337
    %1560 = vmatprep.subr.bf16.mxu0 %v1341
    %1561 = vmatpush1.bf16.msra.mxu0 %v1340
    %1562 = vmatprep.subr.bf16.mxu0 %v1344
    %1563 = vmatpush1.bf16.msra.mxu0 %v1343
    %1564 = vmatprep.subr.bf16.mxu0 0
    %1565 = vmatpush1.bf16.msra.mxu0 0
    %1566 = vmatprep.subr.bf16.mxu0 0
    %1567 = vmatpush1.bf16.msra.mxu0 0
    %1568 = vmatprep.subr.bf16.mxu0 0
    %1569 = vmatpush1.bf16.msra.mxu0 0
    %1570 = vmatprep.subr.bf16.mxu0 0
    %1571 = vmatpush1.bf16.msra.mxu0 0
    %1572 = vmatprep.subr.bf16.mxu0 0
    %1573 = vmatpush1.bf16.msra.mxu0 0
    %1574 = vmatprep.subr.bf16.mxu0 0
    %1575 = vmatpush1.bf16.msra.mxu0 0
    %1576 = vmatprep.subr.bf16.mxu0 0
    %1577 = vmatpush1.bf16.msra.mxu0 0
    %1578 = vmatprep.subr.bf16.mxu0 0
    %1579 = vmatpush1.bf16.msra.mxu0 0
    %1580 = vmatprep.mubr.bf16.mxu0 0
    %1581 = vmatmul.mubr.bf16.gmra.mrb[0].mxu0 %v648
    %v1582 = vpop.f32.mrb[0].mxu0
    %v1583 = vadd.f32 %v1542, %v1582
    %v1584 = vpop.f32.mrb[0].mxu0
    %v1585 = vadd.f32 %v1544, %v1584
    %v1586 = vpop.f32.mrb[0].mxu0
    %v1587 = vpop.f32.mrb[0].mxu0
    %1588 = vdwg.mxu0
    %1589 = vmatprep.subr.bf16.mxu0 0
    %1590 = vmatpush1.bf16.msra.mxu0 %v1228
    %1591 = vmatprep.subr.bf16.mxu0 0
    %1592 = vmatpush1.bf16.msra.mxu0 %v1231
    %1593 = vmatprep.subr.bf16.mxu0 0
    %1594 = vmatpush1.bf16.msra.mxu0 %v1234
    %1595 = vmatprep.subr.bf16.mxu0 0
    %1596 = vmatpush1.bf16.msra.mxu0 %v1237
    %1597 = vmatprep.subr.bf16.mxu0 0
    %1598 = vmatpush1.bf16.msra.mxu0 %v1240
    %1599 = vmatprep.subr.bf16.mxu0 0
    %1600 = vmatpush1.bf16.msra.mxu0 %v1243
    %1601 = vmatprep.subr.bf16.mxu0 0
    %1602 = vmatpush1.bf16.msra.mxu0 %v1246
    %1603 = vmatprep.subr.bf16.mxu0 0
    %1604 = vmatpush1.bf16.msra.mxu0 %v1249
    %1605 = vmatprep.subr.bf16.mxu0 0
    %1606 = vmatpush1.bf16.msra.mxu0 %v1252
    %1607 = vmatprep.subr.bf16.mxu0 0
    %1608 = vmatpush1.bf16.msra.mxu0 %v1255
    %1609 = vmatprep.subr.bf16.mxu0 0
    %1610 = vmatpush1.bf16.msra.mxu0 %v1258
    %1611 = vmatprep.subr.bf16.mxu0 0
    %1612 = vmatpush1.bf16.msra.mxu0 %v1261
    %1613 = vmatprep.subr.bf16.mxu0 0
    %1614 = vmatpush1.bf16.msra.mxu0 %v1264
    %1615 = vmatprep.subr.bf16.mxu0 0
    %1616 = vmatpush1.bf16.msra.mxu0 %v1267
    %1617 = vmatprep.subr.bf16.mxu0 0
    %1618 = vmatpush1.bf16.msra.mxu0 %v1270
    %1619 = vmatprep.subr.bf16.mxu0 0
    %1620 = vmatpush1.bf16.msra.mxu0 %v1273
    %1621 = vmatprep.mubr.bf16.mxu0 %v645
    %1622 = vmatmul.mubr.bf16.gmra.mrb[0].mxu0 %v644
    %v1623 = vpop.f32.mrb[0].mxu0
    %v1624 = vadd.f32 %v822, %v1623
    %v1625 = vpop.f32.mrb[0].mxu0
    %v1626 = vpop.f32.mrb[0].mxu0
    %v1627 = vpop.f32.mrb[0].mxu0
    %1628 = vdwg.mxu0
    %1629 = vmatprep.subr.bf16.mxu0 0
    %1630 = vmatpush1.bf16.msra.mxu0 %v1276
    %1631 = vmatprep.subr.bf16.mxu0 0
    %1632 = vmatpush1.bf16.msra.mxu0 %v1279
    %1633 = vmatprep.subr.bf16.mxu0 0
    %1634 = vmatpush1.bf16.msra.mxu0 %v1282
    %1635 = vmatprep.subr.bf16.mxu0 0
    %1636 = vmatpush1.bf16.msra.mxu0 %v1285
    %1637 = vmatprep.subr.bf16.mxu0 0
    %1638 = vmatpush1.bf16.msra.mxu0 %v1288
    %1639 = vmatprep.subr.bf16.mxu0 0
    %1640 = vmatpush1.bf16.msra.mxu0 %v1291
    %1641 = vmatprep.subr.bf16.mxu0 0
    %1642 = vmatpush1.bf16.msra.mxu0 %v1294
    %1643 = vmatprep.subr.bf16.mxu0 0
    %1644 = vmatpush1.bf16.msra.mxu0 %v1297
    %1645 = vmatprep.subr.bf16.mxu0 0
    %1646 = vmatpush1.bf16.msra.mxu0 %v1300
    %1647 = vmatprep.subr.bf16.mxu0 0
    %1648 = vmatpush1.bf16.msra.mxu0 %v1303
    %1649 = vmatprep.subr.bf16.mxu0 0
    %1650 = vmatpush1.bf16.msra.mxu0 %v1306
    %1651 = vmatprep.subr.bf16.mxu0 0
    %1652 = vmatpush1.bf16.msra.mxu0 %v1309
    %1653 = vmatprep.subr.bf16.mxu0 0
    %1654 = vmatpush1.bf16.msra.mxu0 %v1312
    %1655 = vmatprep.subr.bf16.mxu0 0
    %1656 = vmatpush1.bf16.msra.mxu0 %v1315
    %1657 = vmatprep.subr.bf16.mxu0 0
    %1658 = vmatpush1.bf16.msra.mxu0 %v1318
    %1659 = vmatprep.subr.bf16.mxu0 0
    %1660 = vmatpush1.bf16.msra.mxu0 %v1321
    %1661 = vmatprep.mubr.bf16.mxu0 %v647
    %1662 = vmatmul.mubr.bf16.gmra.mrb[0].mxu0 %v646
    %v1663 = vpop.f32.mrb[0].mxu0
    %v1664 = vadd.f32 %v1624, %v1663
    %v1665 = vpop.f32.mrb[0].mxu0
    %v1666 = vpop.f32.mrb[0].mxu0
    %v1667 = vpop.f32.mrb[0].mxu0
    %1668 = vdwg.mxu0
    %1669 = vmatprep.subr.bf16.mxu0 0
    %1670 = vmatpush1.bf16.msra.mxu0 %v1324
    %1671 = vmatprep.subr.bf16.mxu0 0
    %1672 = vmatpush1.bf16.msra.mxu0 %v1327
    %1673 = vmatprep.subr.bf16.mxu0 0
    %1674 = vmatpush1.bf16.msra.mxu0 %v1330
    %1675 = vmatprep.subr.bf16.mxu0 0
    %1676 = vmatpush1.bf16.msra.mxu0 %v1333
    %1677 = vmatprep.subr.bf16.mxu0 0
    %1678 = vmatpush1.bf16.msra.mxu0 %v1336
    %1679 = vmatprep.subr.bf16.mxu0 0
    %1680 = vmatpush1.bf16.msra.mxu0 %v1339
    %1681 = vmatprep.subr.bf16.mxu0 0
    %1682 = vmatpush1.bf16.msra.mxu0 %v1342
    %1683 = vmatprep.subr.bf16.mxu0 0
    %1684 = vmatpush1.bf16.msra.mxu0 %v1345
    %1685 = vmatprep.subr.bf16.mxu0 0
    %1686 = vmatpush1.bf16.msra.mxu0 0
    %1687 = vmatprep.subr.bf16.mxu0 0
    %1688 = vmatpush1.bf16.msra.mxu0 0
    %1689 = vmatprep.subr.bf16.mxu0 0
    %1690 = vmatpush1.bf16.msra.mxu0 0
    %1691 = vmatprep.subr.bf16.mxu0 0
    %1692 = vmatpush1.bf16.msra.mxu0 0
    %1693 = vmatprep.subr.bf16.mxu0 0
    %1694 = vmatpush1.bf16.msra.mxu0 0
    %1695 = vmatprep.subr.bf16.mxu0 0
    %1696 = vmatpush1.bf16.msra.mxu0 0
    %1697 = vmatprep.subr.bf16.mxu0 0
    %1698 = vmatpush1.bf16.msra.mxu0 0
    %1699 = vmatprep.subr.bf16.mxu0 0
    %1700 = vmatpush1.bf16.msra.mxu0 0
    %1701 = vmatprep.mubr.bf16.mxu0 0
    %1702 = vmatmul.mubr.bf16.gmra.mrb[0].mxu0 %v648
    %v1703 = vpop.f32.mrb[0].mxu0
    %v1704 = vadd.f32 %v1664, %v1703
    %v1705 = vpop.f32.mrb[0].mxu0
    %v1706 = vpop.f32.mrb[0].mxu0
    %v1707 = vpop.f32.mrb[0].mxu0
    %1708 = vdwg.mxu0
    %v1709 = vmax.f32 %v1583, 0.0
    %v1710 = vmax.f32 %v1585, 0.0
    %v1711 = vmax.f32 %v1704, 0.0
    %v1712 = vpack.c.bf16 %v1709, %v1709
    %v1713 = vpack.c.bf16 %v1710, %v1710
    %v1714 = vpack.c.bf16 %v1711, %v1711
    %v1715 = vld [vmem:[#allocation8] sm:$0xf]
    %v1716 = vld [vmem:[#allocation8 + $0x4] sm:$0xf]
    %v1717 = vld [vmem:[#allocation8 + $0x8] sm:$0xf]
    %v1718 = vld [vmem:[#allocation8 + $0xc] sm:$0xf]
    %v1719 = vld [vmem:[#allocation8 + $0x10] sm:$0xf]
    %v1720 = vld [vmem:[#allocation8 + $0x14] sm:$0xf]
    %v1721 = vld [vmem:[#allocation8 + $0x18] sm:$0xf]
    %v1722 = vld [vmem:[#allocation8 + $0x1c] sm:$0xf]
    %v1723 = vld [vmem:[#allocation8 + $0x20] sm:$0xf]
    %v1724 = vld [vmem:[#allocation8 + $0x24] sm:$0xf]
    %v1725 = vld [vmem:[#allocation8 + $0x28] sm:$0xf]
    %v1726 = vld [vmem:[#allocation8 + $0x2c] sm:$0xf]
    %v1727 = vld [vmem:[#allocation8 + $0x30] sm:$0xf]
    %v1728 = vld [vmem:[#allocation8 + $0x34] sm:$0xf]
    %v1729 = vld [vmem:[#allocation8 + $0x38] sm:$0xf]
    %v1730 = vld [vmem:[#allocation8 + $0x3c] sm:$0xf]
    %v1731 = vld [vmem:[#allocation8 + $0x40] sm:$0xf]
    %v1732 = vld [vmem:[#allocation8 + $0x44] sm:$0xf]
    %v1733 = vld [vmem:[#allocation8 + $0x48] sm:$0xf]
    %v1734 = vld [vmem:[#allocation8 + $0x4c] sm:$0xf]
    %v1735 = vld [vmem:[#allocation8 + $0x50] sm:$0xf]
    %v1736 = vld [vmem:[#allocation8 + $0x54] sm:$0xf]
    %v1737 = vld [vmem:[#allocation8 + $0x58] sm:$0xf]
    %v1738 = vld [vmem:[#allocation8 + $0x5c] sm:$0xf]
    %v1739 = vld [vmem:[#allocation8 + $0x60] sm:$0xf]
    %v1740 = vld [vmem:[#allocation8 + $0x64] sm:$0xf]
    %v1741 = vld [vmem:[#allocation8 + $0x68] sm:$0xf]
    %v1742 = vld [vmem:[#allocation8 + $0x6c] sm:$0xf]
    %v1743 = vld [vmem:[#allocation8 + $0x70] sm:$0xf]
    %v1744 = vld [vmem:[#allocation8 + $0x74] sm:$0xf]
    %v1745 = vld [vmem:[#allocation8 + $0x78] sm:$0xf]
    %v1746 = vld [vmem:[#allocation8 + $0x7c] sm:$0xf]
    %v1747 = vld [vmem:[#allocation8 + $0x80] sm:$0xf]
    %v1748 = vld [vmem:[#allocation8 + $0x84] sm:$0xf]
    %v1749 = vld [vmem:[#allocation8 + $0x88] sm:$0xf]
    %v1750 = vld [vmem:[#allocation8 + $0x8c] sm:$0xf]
    %v1751 = vld [vmem:[#allocation8 + $0x90] sm:$0xf]
    %v1752 = vld [vmem:[#allocation8 + $0x94] sm:$0xf]
    %v1753 = vld [vmem:[#allocation8 + $0x98] sm:$0xf]
    %v1754 = vld [vmem:[#allocation8 + $0x9c] sm:$0xf]
    %v1755 = vld [vmem:[#allocation8 + $0xa0] sm:$0xf]
    %v1756 = vld [vmem:[#allocation8 + $0xa4] sm:$0xf]
    %v1757 = vld [vmem:[#allocation8 + $0xa8] sm:$0xf]
    %v1758 = vld [vmem:[#allocation8 + $0xac] sm:$0xf]
    %v1759 = vld [vmem:[#allocation8 + $0xb0] sm:$0xf]
    %v1760 = vld [vmem:[#allocation8 + $0xb4] sm:$0xf]
    %v1761 = vld [vmem:[#allocation8 + $0xb8] sm:$0xf]
    %v1762 = vld [vmem:[#allocation8 + $0xbc] sm:$0xf]
    %v1763 = vld [vmem:[%s7] sm:$0x1]
    %v1765 = vlaneseq
    %v1766 = vshrl.u32 %v1765, 7
    %v1767 = vsub.s32 0, %v1766
    %v1768 = vrot.slane %v1763, %v1767
    %v1818 = vunpack.c.l.b16 %v1715
    %v1819 = vunpack.c.l.b16 %v1716
    %v1820 = vunpack.c.l.b16 %v1717
    %v1821 = vunpack.c.l.b16 %v1718
    %v1822 = vunpack.c.l.b16 %v1719
    %v1823 = vunpack.c.l.b16 %v1720
    %v1824 = vunpack.c.l.b16 %v1721
    %v1825 = vunpack.c.l.b16 %v1722
    %v1826 = vunpack.c.l.b16 %v1723
    %v1827 = vunpack.c.l.b16 %v1724
    %v1828 = vunpack.c.l.b16 %v1725
    %v1829 = vunpack.c.l.b16 %v1726
    %v1830 = vunpack.c.l.b16 %v1727
    %v1831 = vunpack.c.l.b16 %v1728
    %v1832 = vunpack.c.l.b16 %v1729
    %v1833 = vunpack.c.l.b16 %v1730
    %v1834 = vunpack.c.l.b16 %v1731
    %v1835 = vunpack.c.l.b16 %v1732
    %v1836 = vunpack.c.l.b16 %v1733
    %v1837 = vunpack.c.l.b16 %v1734
    %v1838 = vunpack.c.l.b16 %v1735
    %v1839 = vunpack.c.l.b16 %v1736
    %v1840 = vunpack.c.l.b16 %v1737
    %v1841 = vunpack.c.l.b16 %v1738
    %v1842 = vunpack.c.l.b16 %v1739
    %v1843 = vunpack.c.l.b16 %v1740
    %v1844 = vunpack.c.l.b16 %v1741
    %v1845 = vunpack.c.l.b16 %v1742
    %v1846 = vunpack.c.l.b16 %v1743
    %v1847 = vunpack.c.l.b16 %v1744
    %v1848 = vunpack.c.l.b16 %v1745
    %v1849 = vunpack.c.l.b16 %v1746
    %v1850 = vunpack.c.l.b16 %v1747
    %v1851 = vunpack.c.l.b16 %v1748
    %v1852 = vunpack.c.l.b16 %v1749
    %v1853 = vunpack.c.l.b16 %v1750
    %v1854 = vunpack.c.l.b16 %v1751
    %v1855 = vunpack.c.l.b16 %v1752
    %v1856 = vunpack.c.l.b16 %v1753
    %v1857 = vunpack.c.l.b16 %v1754
    %v1858 = vunpack.c.l.b16 %v1755
    %v1859 = vunpack.c.l.b16 %v1756
    %v1860 = vunpack.c.l.b16 %v1757
    %v1861 = vunpack.c.l.b16 %v1758
    %v1862 = vunpack.c.l.b16 %v1759
    %v1863 = vunpack.c.l.b16 %v1760
    %v1864 = vunpack.c.l.b16 %v1761
    %v1865 = vunpack.c.l.b16 %v1762
    %v1866 = vpack.c.b16 %v1819, %v1818
    %v1867 = vpack.c.b16 %v1821, %v1820
    %v1868 = vpack.c.b16 %v1823, %v1822
    %v1869 = vpack.c.b16 %v1825, %v1824
    %v1870 = vpack.c.b16 %v1827, %v1826
    %v1871 = vpack.c.b16 %v1829, %v1828
    %v1872 = vpack.c.b16 %v1831, %v1830
    %v1873 = vpack.c.b16 %v1833, %v1832
    %v1874 = vpack.c.b16 %v1835, %v1834
    %v1875 = vpack.c.b16 %v1837, %v1836
    %v1876 = vpack.c.b16 %v1839, %v1838
    %v1877 = vpack.c.b16 %v1841, %v1840
    %v1878 = vpack.c.b16 %v1843, %v1842
    %v1879 = vpack.c.b16 %v1845, %v1844
    %v1880 = vpack.c.b16 %v1847, %v1846
    %v1881 = vpack.c.b16 %v1849, %v1848
    %v1882 = vpack.c.b16 %v1851, %v1850
    %v1883 = vpack.c.b16 %v1853, %v1852
    %v1884 = vpack.c.b16 %v1855, %v1854
    %v1885 = vpack.c.b16 %v1857, %v1856
    %v1886 = vpack.c.b16 %v1859, %v1858
    %v1887 = vpack.c.b16 %v1861, %v1860
    %v1888 = vpack.c.b16 %v1863, %v1862
    %v1889 = vpack.c.b16 %v1865, %v1864
    %1914 = vmatprep.subr.bf16.mxu0 0
    %1915 = vmatpush1.bf16.msra.mxu0 %v1866
    %1916 = vmatprep.subr.bf16.mxu0 0
    %1917 = vmatpush1.bf16.msra.mxu0 %v1867
    %1918 = vmatprep.subr.bf16.mxu0 0
    %1919 = vmatpush1.bf16.msra.mxu0 %v1868
    %1920 = vmatprep.subr.bf16.mxu0 0
    %1921 = vmatpush1.bf16.msra.mxu0 %v1869
    %1922 = vmatprep.subr.bf16.mxu0 0
    %1923 = vmatpush1.bf16.msra.mxu0 %v1870
    %1924 = vmatprep.subr.bf16.mxu0 0
    %1925 = vmatpush1.bf16.msra.mxu0 %v1871
    %1926 = vmatprep.subr.bf16.mxu0 0
    %1927 = vmatpush1.bf16.msra.mxu0 %v1872
    %1928 = vmatprep.subr.bf16.mxu0 0
    %1929 = vmatpush1.bf16.msra.mxu0 %v1873
    %1930 = vmatprep.subr.bf16.mxu0 0
    %1931 = vmatpush1.bf16.msra.mxu0 %v1874
    %1932 = vmatprep.subr.bf16.mxu0 0
    %1933 = vmatpush1.bf16.msra.mxu0 %v1875
    %1934 = vmatprep.subr.bf16.mxu0 0
    %1935 = vmatpush1.bf16.msra.mxu0 %v1876
    %1936 = vmatprep.subr.bf16.mxu0 0
    %1937 = vmatpush1.bf16.msra.mxu0 %v1877
    %1938 = vmatprep.subr.bf16.mxu0 0
    %1939 = vmatpush1.bf16.msra.mxu0 %v1878
    %1940 = vmatprep.subr.bf16.mxu0 0
    %1941 = vmatpush1.bf16.msra.mxu0 %v1879
    %1942 = vmatprep.subr.bf16.mxu0 0
    %1943 = vmatpush1.bf16.msra.mxu0 %v1880
    %1944 = vmatprep.subr.bf16.mxu0 0
    %1945 = vmatpush1.bf16.msra.mxu0 %v1881
    %1946 = vmatprep.mubr.bf16.mxu0 %v1713
    %1947 = vmatmul.mubr.bf16.gmra.mrb[0].mxu0 %v1712
    %v1948 = vpop.f32.mrb[0].mxu0
    %v1949 = vadd.f32 %v1768, %v1948
    %v1950 = vpop.f32.mrb[0].mxu0
    %v1951 = vpop.f32.mrb[0].mxu0
    %v1952 = vpop.f32.mrb[0].mxu0
    %1953 = vdwg.mxu0
    %1954 = vmatprep.subr.bf16.mxu0 0
    %1955 = vmatpush1.bf16.msra.mxu0 %v1882
    %1956 = vmatprep.subr.bf16.mxu0 0
    %1957 = vmatpush1.bf16.msra.mxu0 %v1883
    %1958 = vmatprep.subr.bf16.mxu0 0
    %1959 = vmatpush1.bf16.msra.mxu0 %v1884
    %1960 = vmatprep.subr.bf16.mxu0 0
    %1961 = vmatpush1.bf16.msra.mxu0 %v1885
    %1962 = vmatprep.subr.bf16.mxu0 0
    %1963 = vmatpush1.bf16.msra.mxu0 %v1886
    %1964 = vmatprep.subr.bf16.mxu0 0
    %1965 = vmatpush1.bf16.msra.mxu0 %v1887
    %1966 = vmatprep.subr.bf16.mxu0 0
    %1967 = vmatpush1.bf16.msra.mxu0 %v1888
    %1968 = vmatprep.subr.bf16.mxu0 0
    %1969 = vmatpush1.bf16.msra.mxu0 %v1889
    %1970 = vmatprep.subr.bf16.mxu0 0
    %1971 = vmatpush1.bf16.msra.mxu0 0
    %1972 = vmatprep.subr.bf16.mxu0 0
    %1973 = vmatpush1.bf16.msra.mxu0 0
    %1974 = vmatprep.subr.bf16.mxu0 0
    %1975 = vmatpush1.bf16.msra.mxu0 0
    %1976 = vmatprep.subr.bf16.mxu0 0
    %1977 = vmatpush1.bf16.msra.mxu0 0
    %1978 = vmatprep.subr.bf16.mxu0 0
    %1979 = vmatpush1.bf16.msra.mxu0 0
    %1980 = vmatprep.subr.bf16.mxu0 0
    %1981 = vmatpush1.bf16.msra.mxu0 0
    %1982 = vmatprep.subr.bf16.mxu0 0
    %1983 = vmatpush1.bf16.msra.mxu0 0
    %1984 = vmatprep.subr.bf16.mxu0 0
    %1985 = vmatpush1.bf16.msra.mxu0 0
    %1986 = vmatprep.mubr.bf16.mxu0 0
    %1987 = vmatmul.mubr.bf16.gmra.mrb[0].mxu0 %v1714
    %v1988 = vpop.f32.mrb[0].mxu0
    %v1989 = vadd.f32 %v1949, %v1988
    %v1990 = vpop.f32.mrb[0].mxu0
    %v1991 = vpop.f32.mrb[0].mxu0
    %v1992 = vpop.f32.mrb[0].mxu0
    %1993 = vdwg.mxu0
    %v1994 = vpack.c.bf16 %v1989, %v1989
    %1995 = vst [vmem:[#allocation10] sm:$0xf] %v1994
    // Predicated region
    $region50: #{tpu_custom_call.1} parent=1 // pred_check
      _
    $region51: #{tpu_custom_call.1} parent=1 // pred_check_branch
      %1997 = sbr.rel (0) target = $region53
    $region52: #{tpu_custom_call.1} parent=1 // pred_region
      %s1999 = ssub.s32 64, 64
      %2000 = vsyncadd [#allocation4], %s1999
      %s2002 = sshll.u32 [#allocation10], 4
      %s2003 = int_to_ptr.vmem [resolvable:$true] %s2002
      %2005 = dma.vmem_to_hbm [thread:$0]  %s2003, 64, %s8, [#allocation4]
    $region53: #{tpu_custom_call.1} parent=1 // pred_fallthru
      _
    // Predicated region
    $region54: #{tpu_custom_call.1} parent=1 // pred_check
      _
    $region55: #{tpu_custom_call.1} parent=1 // pred_check_branch
      %2007 = sbr.rel (0) target = $region57
    $region56: #{tpu_custom_call.1} parent=1 // pred_region
      %2008 = dma.done [#allocation4], 64
    $region57: #{tpu_custom_call.1} parent=1 // pred_fallthru
      _
    %2009 = vsyncpa [#allocation3], 1
    %2010 = vsyncpa [#allocation6], 1
    %2011 = vsyncpa [#allocation9], 1
    %2012 = vsyncpa [#allocation4], 1

// kernel: tpu_custom_call.1
$region0: #{tpu_custom_call.1}
  #allocation0 [shape = 'u32[]', space=smem, size = 0x4, offset = 0x4, fixed_abs, tag = 'smem constant byte address 0x4 - core index']
  #allocation1 [shape = 'u32[144,128]{1,0:T(1,128)}', space=vmem, size = 0x12000, scoped, tag = 'internal scratch']
  %s0 = inlined_call_operand.hbm [shape: bf16[8,4,128], index: 0, kind: input, shape index: {}]
  %s1 = inlined_call_operand.vmem [shape: f32[8,1], index: 1, kind: input, shape index: {}]
  %s2 = inlined_call_operand.hbm [shape: bf16[128,640], index: 2, kind: input, shape index: {}]
  %s3 = inlined_call_operand.vmem [shape: f32[1,640], index: 3, kind: input, shape index: {}]
  %s4 = inlined_call_operand.hbm [shape: bf16[640,384], index: 4, kind: input, shape index: {}]
  %s5 = inlined_call_operand.vmem [shape: f32[1,384], index: 5, kind: input, shape index: {}]
  %s6 = inlined_call_operand.hbm [shape: bf16[384,128], index: 6, kind: input, shape index: {}]
  %s7 = inlined_call_operand.vmem [shape: f32[1,128], index: 7, kind: input, shape index: {}]
  %s8 = inlined_call_operand.hbm [shape: bf16[8,128], index: 8, kind: output, shape index: {}]
  %s9 = sld [smem:[#allocation0]]
  $region58: #{tpu_custom_call.1} parent=0
    _
  %s11 = ssub.s32 1, %s9
  %s12 = scalar_select 0, %s11, %s9
  $region1: #{tpu_custom_call.1} parent=0
    #allocation2 [shape = 'u8[8192]{0}', space=vmem, size = 0x2000, scoped, tag = 'input window, operand 0, single buffered']
    #allocation3 [shape = 's32[1]{0}', space=sflag, size = 0x4, scoped, tag = 'scoped memory for tpu_custom_call.1']
    #allocation4 [shape = 's32[1]{0}', space=sflag, size = 0x4, scoped, tag = 'scoped memory for tpu_custom_call.1']
    #allocation5 [shape = 'u8[163840]{0}', space=vmem, size = 0x28000, scoped, tag = 'input window, operand 2, single buffered']
    #allocation6 [shape = 's32[1]{0}', space=sflag, size = 0x4, scoped, tag = 'scoped memory for tpu_custom_call.1']
    #allocation7 [shape = 'u8[491520]{0}', space=vmem, size = 0x78000, scoped, tag = 'input window, operand 4, single buffered']
    #allocation8 [shape = 'u8[98304]{0}', space=vmem, size = 0x18000, scoped, tag = 'input window, operand 6, single buffered']
    #allocation9 [shape = 's32[1]{0}', space=sflag, size = 0x4, scoped, tag = 'scoped memory for tpu_custom_call.1']
    #allocation10 [shape = 'u8[2048]{0}', space=vmem, size = 0x800, scoped, tag = 'output window, operand 0, single buffered']
    %13 = vsyncpa [#allocation3], 0
    %14 = vsyncpa [#allocation6], 0
    %15 = vsyncpa [#allocation9], 0
    %16 = vsyncpa [#allocation4], 0
    // Predicated region
    $region2: #{tpu_custom_call.1} parent=1 // pred_check
      _
    $region3: #{tpu_custom_call.1} parent=1 // pred_check_branch
      %18 = sbr.rel (0) target = $region5
    $region4: #{tpu_custom_call.1} parent=1 // pred_region
      %s20 = ssub.s32 256, 256
      %21 = vsyncadd [#allocation3], %s20
      %s22 = sshll.u32 [#allocation2], 4
      %s23 = int_to_ptr.vmem [resolvable:$true] %s22
      %28 = dma.hbm_to_vmem [thread:$0]  %s0, 256, %s23, [#allocation3], 32, 32, 2
    $region5: #{tpu_custom_call.1} parent=1 // pred_fallthru
      _
    // Predicated region
    $region6: #{tpu_custom_call.1} parent=1 // pred_check
      _
    $region7: #{tpu_custom_call.1} parent=1 // pred_check_branch
      %30 = sbr.rel (0) target = $region9
    $region8: #{tpu_custom_call.1} parent=1 // pred_region
      _
    $region9: #{tpu_custom_call.1} parent=1 // pred_fallthru
      _
    // Predicated region
    $region10: #{tpu_custom_call.1} parent=1 // pred_check
      _
    $region11: #{tpu_custom_call.1} parent=1 // pred_check_branch
      %32 = sbr.rel (0) target = $region13
    $region12: #{tpu_custom_call.1} parent=1 // pred_region
      %s34 = ssub.s32 5120, 5120
      %35 = vsyncadd [#allocation6], %s34
      %s36 = sshll.u32 [#allocation5], 4
      %s37 = int_to_ptr.vmem [resolvable:$true] %s36
      %42 = dma.hbm_to_vmem [thread:$0]  %s2, 5120, %s37, [#allocation6], 320, 320, 20
    $region13: #{tpu_custom_call.1} parent=1 // pred_fallthru
      _
    // Predicated region
    $region14: #{tpu_custom_call.1} parent=1 // pred_check
      _
    $region15: #{tpu_custom_call.1} parent=1 // pred_check_branch
      %44 = sbr.rel (0) target = $region17
    $region16: #{tpu_custom_call.1} parent=1 // pred_region
      _
    $region17: #{tpu_custom_call.1} parent=1 // pred_fallthru
      _
    // Predicated region
    $region18: #{tpu_custom_call.1} parent=1 // pred_check
      _
    $region19: #{tpu_custom_call.1} parent=1 // pred_check_branch
      %46 = sbr.rel (0) target = $region21
    $region20: #{tpu_custom_call.1} parent=1 // pred_region
      %s48 = ssub.s32 15360, 15360
      %49 = vsyncadd [#allocation6], %s48
      %s50 = sshll.u32 [#allocation7], 4
      %s51 = int_to_ptr.vmem [resolvable:$true] %s50
      %56 = dma.hbm_to_vmem [thread:$0]  %s4, 15360, %s51, [#allocation6], 192, 192, 12
    $region21: #{tpu_custom_call.1} parent=1 // pred_fallthru
      _
    // Predicated region
    $region22: #{tpu_custom_call.1} parent=1 // pred_check
      _
    $region23: #{tpu_custom_call.1} parent=1 // pred_check_branch
      %58 = sbr.rel (0) target = $region25
    $region24: #{tpu_custom_call.1} parent=1 // pred_region
      _
    $region25: #{tpu_custom_call.1} parent=1 // pred_fallthru
      _
    // Predicated region
    $region26: #{tpu_custom_call.1} parent=1 // pred_check
      _
    $region27: #{tpu_custom_call.1} parent=1 // pred_check_branch
      %60 = sbr.rel (0) target = $region29
    $region28: #{tpu_custom_call.1} parent=1 // pred_region
      %s62 = ssub.s32 3072, 3072
      %63 = vsyncadd [#allocation9], %s62
      %s64 = sshll.u32 [#allocation8], 4
      %s65 = int_to_ptr.vmem [resolvable:$true] %s64
      %70 = dma.hbm_to_vmem [thread:$0]  %s6, 3072, %s65, [#allocation9], 64, 64, 4
    $region29: #{tpu_custom_call.1} parent=1 // pred_fallthru
      _
    // Predicated region
    $region30: #{tpu_custom_call.1} parent=1 // pred_check
      _
    $region31: #{tpu_custom_call.1} parent=1 // pred_check_branch
      %72 = sbr.rel (0) target = $region33
    $region32: #{tpu_custom_call.1} parent=1 // pred_region
      _
    $region33: #{tpu_custom_call.1} parent=1 // pred_fallthru
      _
    // Predicated region
    $region34: #{tpu_custom_call.1} parent=1 // pred_check
      _
    $region35: #{tpu_custom_call.1} parent=1 // pred_check_branch
      %74 = sbr.rel (0) target = $region37
    $region36: #{tpu_custom_call.1} parent=1 // pred_region
      %75 = dma.done [#allocation3], 256
    $region37: #{tpu_custom_call.1} parent=1 // pred_fallthru
      _
    // Predicated region
    $region38: #{tpu_custom_call.1} parent=1 // pred_check
      _
    $region39: #{tpu_custom_call.1} parent=1 // pred_check_branch
      %77 = sbr.rel (0) target = $region41
    $region40: #{tpu_custom_call.1} parent=1 // pred_region
      %78 = dma.done [#allocation6], 5120
    $region41: #{tpu_custom_call.1} parent=1 // pred_fallthru
      _
    // Predicated region
    $region42: #{tpu_custom_call.1} parent=1 // pred_check
      _
    $region43: #{tpu_custom_call.1} parent=1 // pred_check_branch
      %80 = sbr.rel (0) target = $region45
    $region44: #{tpu_custom_call.1} parent=1 // pred_region
      %81 = dma.done [#allocation6], 15360
    $region45: #{tpu_custom_call.1} parent=1 // pred_fallthru
      _
    // Predicated region
    $region46: #{tpu_custom_call.1} parent=1 // pred_check
      _
    $region47: #{tpu_custom_call.1} parent=1 // pred_check_branch
      %83 = sbr.rel (0) target = $region49
    $region48: #{tpu_custom_call.1} parent=1 // pred_region
      %84 = dma.done [#allocation9], 3072
    $region49: #{tpu_custom_call.1} parent=1 // pred_fallthru
      _
    %v86 = vld [vmem:[#allocation2] sm:$0x3]
    %v87 = vld [vmem:[#allocation2 + $0x2] sm:$0x3]
    %v88 = vld [vmem:[#allocation2 + $0x4] sm:$0x3]
    %v89 = vld [vmem:[#allocation2 + $0x6] sm:$0x3]
    %v90 = vld [vmem:[#allocation2 + $0x8] sm:$0x3]
    %v91 = vld [vmem:[#allocation2 + $0xa] sm:$0x3]
    %v92 = vld [vmem:[#allocation2 + $0xc] sm:$0x3]
    %v93 = vld [vmem:[#allocation2 + $0xe] sm:$0x3]
    %v94 = vunpack.c.l.bf16 %v86
    %v95 = vunpack.c.l.bf16 %v87
    %v96 = vunpack.c.l.bf16 %v88
    %v97 = vunpack.c.l.bf16 %v89
    %v98 = vunpack.c.l.bf16 %v90
    %v99 = vunpack.c.l.bf16 %v91
    %v100 = vunpack.c.l.bf16 %v92
    %v101 = vunpack.c.l.bf16 %v93
    %vm102 = vcmask 1043456
    %v103 = vsel %vm102, %v94, 0.0
    %v104 = vrot.slane %v103, 4
    %v105 = vadd.f32 %v103, %v104
    %v106 = vrot.slane %v105, 2
    %v107 = vadd.f32 %v105, %v106
    %v108 = vrot.slane %v107, 1
    %v109 = vadd.f32 %v107, %v108
    %v110 = vsel %vm102, %v95, 0.0
    %v111 = vrot.slane %v110, 4
    %v112 = vadd.f32 %v110, %v111
    %v113 = vrot.slane %v112, 2
    %v114 = vadd.f32 %v112, %v113
    %v115 = vrot.slane %v114, 1
    %v116 = vadd.f32 %v114, %v115
    %v117 = vsel %vm102, %v96, 0.0
    %v118 = vrot.slane %v117, 4
    %v119 = vadd.f32 %v117, %v118
    %v120 = vrot.slane %v119, 2
    %v121 = vadd.f32 %v119, %v120
    %v122 = vrot.slane %v121, 1
    %v123 = vadd.f32 %v121, %v122
    %v124 = vsel %vm102, %v97, 0.0
    %v125 = vrot.slane %v124, 4
    %v126 = vadd.f32 %v124, %v125
    %v127 = vrot.slane %v126, 2
    %v128 = vadd.f32 %v126, %v127
    %v129 = vrot.slane %v128, 1
    %v130 = vadd.f32 %v128, %v129
    %v131 = vsel %vm102, %v98, 0.0
    %v132 = vrot.slane %v131, 4
    %v133 = vadd.f32 %v131, %v132
    %v134 = vrot.slane %v133, 2
    %v135 = vadd.f32 %v133, %v134
    %v136 = vrot.slane %v135, 1
    %v137 = vadd.f32 %v135, %v136
    %v138 = vsel %vm102, %v99, 0.0
    %v139 = vrot.slane %v138, 4
    %v140 = vadd.f32 %v138, %v139
    %v141 = vrot.slane %v140, 2
    %v142 = vadd.f32 %v140, %v141
    %v143 = vrot.slane %v142, 1
    %v144 = vadd.f32 %v142, %v143
    %v145 = vsel %vm102, %v100, 0.0
    %v146 = vrot.slane %v145, 4
    %v147 = vadd.f32 %v145, %v146
    %v148 = vrot.slane %v147, 2
    %v149 = vadd.f32 %v147, %v148
    %v150 = vrot.slane %v149, 1
    %v151 = vadd.f32 %v149, %v150
    %v152 = vsel %vm102, %v101, 0.0
    %v153 = vrot.slane %v152, 4
    %v154 = vadd.f32 %v152, %v153
    %v155 = vrot.slane %v154, 2
    %v156 = vadd.f32 %v154, %v155
    %v157 = vrot.slane %v156, 1
    %v158 = vadd.f32 %v156, %v157
    %v159 = vld [vmem:[%s1] sm:$0xff]
    %161 = vset.pattern.permute.xlu0 0
    %162 = vperm.xlu0 %161, %v159
    %v163 = vpop.permute.xlu0 %162
    %v164 = vrot.slane %v163, 1
    %v165 = vrot.slane %v163, 2
    %v166 = vrot.slane %v163, 3
    %v167 = vrot.slane %v163, 4
    %v168 = vrot.slane %v163, 5
    %v169 = vrot.slane %v163, 6
    %v170 = vrot.slane %v163, 7
    %v179 = vmul.f32 %v109, %v163
    %v180 = vmul.f32 %v116, %v164
    %v181 = vmul.f32 %v123, %v165
    %v182 = vmul.f32 %v130, %v166
    %v183 = vmul.f32 %v137, %v167
    %v184 = vmul.f32 %v144, %v168
    %v185 = vmul.f32 %v151, %v169
    %v186 = vmul.f32 %v158, %v170
    %v187 = vpack.c.bf16 %v179, %v179
    %v188 = vpack.c.bf16 %v180, %v180
    %v189 = vpack.c.bf16 %v181, %v181
    %v190 = vpack.c.bf16 %v182, %v182
    %v191 = vpack.c.bf16 %v183, %v183
    %v192 = vpack.c.bf16 %v184, %v184
    %v193 = vpack.c.bf16 %v185, %v185
    %v194 = vpack.c.bf16 %v186, %v186
    %v195 = vld [vmem:[#allocation5] sm:$0xff]
    %v196 = vld [vmem:[#allocation5 + $0x8] sm:$0xff]
    %v197 = vld [vmem:[#allocation5 + $0x10] sm:$0xf]
    %v198 = vld [vmem:[#allocation5 + $0x14] sm:$0xff]
    %v199 = vld [vmem:[#allocation5 + $0x1c] sm:$0xff]
    %v200 = vld [vmem:[#allocation5 + $0x24] sm:$0xf]
    %v201 = vld [vmem:[#allocation5 + $0x28] sm:$0xff]
    %v202 = vld [vmem:[#allocation5 + $0x30] sm:$0xff]
    %v203 = vld [vmem:[#allocation5 + $0x38] sm:$0xf]
    %v204 = vld [vmem:[#allocation5 + $0x3c] sm:$0xff]
    %v205 = vld [vmem:[#allocation5 + $0x44] sm:$0xff]
    %v206 = vld [vmem:[#allocation5 + $0x4c] sm:$0xf]
    %v207 = vld [vmem:[#allocation5 + $0x50] sm:$0xff]
    %v208 = vld [vmem:[#allocation5 + $0x58] sm:$0xff]
    %v209 = vld [vmem:[#allocation5 + $0x60] sm:$0xf]
    %v210 = vld [vmem:[#allocation5 + $0x64] sm:$0xff]
    %v211 = vld [vmem:[#allocation5 + $0x6c] sm:$0xff]
    %v212 = vld [vmem:[#allocation5 + $0x74] sm:$0xf]
    %v213 = vld [vmem:[#allocation5 + $0x78] sm:$0xff]
    %v214 = vld [vmem:[#allocation5 + $0x80] sm:$0xff]
    %v215 = vld [vmem:[#allocation5 + $0x88] sm:$0xf]
    %v216 = vld [vmem:[#allocation5 + $0x8c] sm:$0xff]
    %v217 = vld [vmem:[#allocation5 + $0x94] sm:$0xff]
    %v218 = vld [vmem:[#allocation5 + $0x9c] sm:$0xf]
    %v219 = vld [vmem:[#allocation5 + $0xa0] sm:$0xff]
    %v220 = vld [vmem:[#allocation5 + $0xa8] sm:$0xff]
    %v221 = vld [vmem:[#allocation5 + $0xb0] sm:$0xf]
    %v222 = vld [vmem:[#allocation5 + $0xb4] sm:$0xff]
    %v223 = vld [vmem:[#allocation5 + $0xbc] sm:$0xff]
    %v224 = vld [vmem:[#allocation5 + $0xc4] sm:$0xf]
    %v225 = vld [vmem:[#allocation5 + $0xc8] sm:$0xff]
    %v226 = vld [vmem:[#allocation5 + $0xd0] sm:$0xff]
    %v227 = vld [vmem:[#allocation5 + $0xd8] sm:$0xf]
    %v228 = vld [vmem:[#allocation5 + $0xdc] sm:$0xff]
    %v229 = vld [vmem:[#allocation5 + $0xe4] sm:$0xff]
    %v230 = vld [vmem:[#allocation5 + $0xec] sm:$0xf]
    %v231 = vld [vmem:[#allocation5 + $0xf0] sm:$0xff]
    %v232 = vld [vmem:[#allocation5 + $0xf8] sm:$0xff]
    %v233 = vld [vmem:[#allocation5 + $0x100] sm:$0xf]
    %v234 = vld [vmem:[#allocation5 + $0x104] sm:$0xff]
    %v235 = vld [vmem:[#allocation5 + $0x10c] sm:$0xff]
    %v236 = vld [vmem:[#allocation5 + $0x114] sm:$0xf]
    %v237 = vld [vmem:[#allocation5 + $0x118] sm:$0xff]
    %v238 = vld [vmem:[#allocation5 + $0x120] sm:$0xff]
    %v239 = vld [vmem:[#allocation5 + $0x128] sm:$0xf]
    %v240 = vld [vmem:[#allocation5 + $0x12c] sm:$0xff]
    %v241 = vld [vmem:[#allocation5 + $0x134] sm:$0xff]
    %v242 = vld [vmem:[#allocation5 + $0x13c] sm:$0xf]
    %v243 = vld [vmem:[%s3] sm:$0x1f]
    %v245 = vlaneseq
    %v246 = vshrl.u32 %v245, 7
    %v247 = vsub.s32 0, %v246
    %v248 = vrot.slane %v243, %v247
    %v249 = vlaneseq
    %v250 = vshrl.u32 %v249, 7
    %v251 = vsub.s32 1, %v250
    %v252 = vrot.slane %v243, %v251
    %v253 = vlaneseq
    %v254 = vshrl.u32 %v253, 7
    %v255 = vsub.s32 2, %v254
    %v256 = vrot.slane %v243, %v255
    %v257 = vlaneseq
    %v258 = vshrl.u32 %v257, 7
    %v259 = vsub.s32 3, %v258
    %v260 = vrot.slane %v243, %v259
    %v261 = vlaneseq
    %v262 = vshrl.u32 %v261, 7
    %v263 = vsub.s32 4, %v262
    %v264 = vrot.slane %v243, %v263
    %v278 = vunpack.c.l.b16 %v187
    %v279 = vunpack.c.l.b16 %v188
    %v280 = vunpack.c.l.b16 %v189
    %v281 = vunpack.c.l.b16 %v190
    %v282 = vunpack.c.l.b16 %v191
    %v283 = vunpack.c.l.b16 %v192
    %v284 = vunpack.c.l.b16 %v193
    %v285 = vunpack.c.l.b16 %v194
    %v286 = vrot.slane %v279, 7
    %vm287 = vcmask 1041409
    %v288 = vsel %vm287, %v286, %v278
    %v289 = vrot.slane %v280, 6
    %vm290 = vcmask 1042434
    %v291 = vsel %vm290, %v289, %v288
    %v292 = vrot.slane %v281, 5
    %vm293 = vcmask 1043459
    %v294 = vsel %vm293, %v292, %v291
    %v295 = vrot.slane %v282, 4
    %vm296 = vcmask 1044484
    %v297 = vsel %vm296, %v295, %v294
    %v298 = vrot.slane %v283, 3
    %vm299 = vcmask 1045509
    %v300 = vsel %vm299, %v298, %v297
    %v301 = vrot.slane %v284, 2
    %vm302 = vcmask 1046534
    %v303 = vsel %vm302, %v301, %v300
    %v304 = vrot.slane %v285, 1
    %vm305 = vcmask 1047559
    %v306 = vsel %vm305, %v304, %v303
    %v307 = vpack.c.b16 %v306, %v306
    %v357 = vunpack.c.l.b16 %v195
    %v358 = vunpack.c.h.b16 %v195
    %v359 = vunpack.c.l.b16 %v196
    %v360 = vunpack.c.h.b16 %v196
    %v361 = vunpack.c.l.b16 %v197
    %v362 = vunpack.c.l.b16 %v198
    %v363 = vunpack.c.h.b16 %v198
    %v364 = vunpack.c.l.b16 %v199
    %v365 = vunpack.c.h.b16 %v199
    %v366 = vunpack.c.l.b16 %v200
    %v367 = vunpack.c.l.b16 %v201
    %v368 = vunpack.c.h.b16 %v201
    %v369 = vunpack.c.l.b16 %v202
    %v370 = vunpack.c.h.b16 %v202
    %v371 = vunpack.c.l.b16 %v203
    %v372 = vunpack.c.l.b16 %v204
    %v373 = vunpack.c.h.b16 %v204
    %v374 = vunpack.c.l.b16 %v205
    %v375 = vunpack.c.h.b16 %v205
    %v376 = vunpack.c.l.b16 %v206
    %v377 = vunpack.c.l.b16 %v207
    %v378 = vunpack.c.h.b16 %v207
    %v379 = vunpack.c.l.b16 %v208
    %v380 = vunpack.c.h.b16 %v208
    %v381 = vunpack.c.l.b16 %v209
    %v382 = vunpack.c.l.b16 %v210
    %v383 = vunpack.c.h.b16 %v210
    %v384 = vunpack.c.l.b16 %v211
    %v385 = vunpack.c.h.b16 %v211
    %v386 = vunpack.c.l.b16 %v212
    %v387 = vunpack.c.l.b16 %v213
    %v388 = vunpack.c.h.b16 %v213
    %v389 = vunpack.c.l.b16 %v214
    %v390 = vunpack.c.h.b16 %v214
    %v391 = vunpack.c.l.b16 %v215
    %v392 = vunpack.c.l.b16 %v216
    %v393 = vunpack.c.h.b16 %v216
    %v394 = vunpack.c.l.b16 %v217
    %v395 = vunpack.c.h.b16 %v217
    %v396 = vunpack.c.l.b16 %v218
    %v397 = vunpack.c.l.b16 %v219
    %v398 = vunpack.c.h.b16 %v219
    %v399 = vunpack.c.l.b16 %v220
    %v400 = vunpack.c.h.b16 %v220
    %v401 = vunpack.c.l.b16 %v221
    %v402 = vunpack.c.l.b16 %v222
    %v403 = vunpack.c.h.b16 %v222
    %v404 = vunpack.c.l.b16 %v223
    %v405 = vunpack.c.h.b16 %v223
    %v406 = vunpack.c.l.b16 %v224
    %v407 = vunpack.c.l.b16 %v225
    %v408 = vunpack.c.h.b16 %v225
    %v409 = vunpack.c.l.b16 %v226
    %v410 = vunpack.c.h.b16 %v226
    %v411 = vunpack.c.l.b16 %v227
    %v412 = vunpack.c.l.b16 %v228
    %v413 = vunpack.c.h.b16 %v228
    %v414 = vunpack.c.l.b16 %v229
    %v415 = vunpack.c.h.b16 %v229
    %v416 = vunpack.c.l.b16 %v230
    %v417 = vunpack.c.l.b16 %v231
    %v418 = vunpack.c.h.b16 %v231
    %v419 = vunpack.c.l.b16 %v232
    %v420 = vunpack.c.h.b16 %v232
    %v421 = vunpack.c.l.b16 %v233
    %v422 = vunpack.c.l.b16 %v234
    %v423 = vunpack.c.h.b16 %v234
    %v424 = vunpack.c.l.b16 %v235
    %v425 = vunpack.c.h.b16 %v235
    %v426 = vunpack.c.l.b16 %v236
    %v427 = vunpack.c.l.b16 %v237
    %v428 = vunpack.c.h.b16 %v237
    %v429 = vunpack.c.l.b16 %v238
    %v430 = vunpack.c.h.b16 %v238
    %v431 = vunpack.c.l.b16 %v239
    %v432 = vunpack.c.l.b16 %v240
    %v433 = vunpack.c.h.b16 %v240
    %v434 = vunpack.c.l.b16 %v241
    %v435 = vunpack.c.h.b16 %v241
    %v436 = vunpack.c.l.b16 %v242
    %v437 = vpack.c.b16 %v362, %v357
    %v438 = vpack.c.b16 %v363, %v358
    %v439 = vpack.c.b16 %v364, %v359
    %v440 = vpack.c.b16 %v365, %v360
    %v441 = vpack.c.b16 %v366, %v361
    %v442 = vpack.c.b16 %v372, %v367
    %v443 = vpack.c.b16 %v373, %v368
    %v444 = vpack.c.b16 %v374, %v369
    %v445 = vpack.c.b16 %v375, %v370
    %v446 = vpack.c.b16 %v376, %v371
    %v447 = vpack.c.b16 %v382, %v377
    %v448 = vpack.c.b16 %v383, %v378
    %v449 = vpack.c.b16 %v384, %v379
    %v450 = vpack.c.b16 %v385, %v380
    %v451 = vpack.c.b16 %v386, %v381
    %v452 = vpack.c.b16 %v392, %v387
    %v453 = vpack.c.b16 %v393, %v388
    %v454 = vpack.c.b16 %v394, %v389
    %v455 = vpack.c.b16 %v395, %v390
    %v456 = vpack.c.b16 %v396, %v391
    %v457 = vpack.c.b16 %v402, %v397
    %v458 = vpack.c.b16 %v403, %v398
    %v459 = vpack.c.b16 %v404, %v399
    %v460 = vpack.c.b16 %v405, %v400
    %v461 = vpack.c.b16 %v406, %v401
    %v462 = vpack.c.b16 %v412, %v407
    %v463 = vpack.c.b16 %v413, %v408
    %v464 = vpack.c.b16 %v414, %v409
    %v465 = vpack.c.b16 %v415, %v410
    %v466 = vpack.c.b16 %v416, %v411
    %v467 = vpack.c.b16 %v422, %v417
    %v468 = vpack.c.b16 %v423, %v418
    %v469 = vpack.c.b16 %v424, %v419
    %v470 = vpack.c.b16 %v425, %v420
    %v471 = vpack.c.b16 %v426, %v421
    %v472 = vpack.c.b16 %v432, %v427
    %v473 = vpack.c.b16 %v433, %v428
    %v474 = vpack.c.b16 %v434, %v429
    %v475 = vpack.c.b16 %v435, %v430
    %v476 = vpack.c.b16 %v436, %v431
    %517 = vmatprep.subr.bf16.mxu0 %v438
    %518 = vmatpush1.bf16.msra.mxu0 %v437
    %519 = vmatprep.subr.bf16.mxu0 %v443
    %520 = vmatpush1.bf16.msra.mxu0 %v442
    %521 = vmatprep.subr.bf16.mxu0 %v448
    %522 = vmatpush1.bf16.msra.mxu0 %v447
    %523 = vmatprep.subr.bf16.mxu0 %v453
    %524 = vmatpush1.bf16.msra.mxu0 %v452
    %525 = vmatprep.subr.bf16.mxu0 %v458
    %526 = vmatpush1.bf16.msra.mxu0 %v457
    %527 = vmatprep.subr.bf16.mxu0 %v463
    %528 = vmatpush1.bf16.msra.mxu0 %v462
    %529 = vmatprep.subr.bf16.mxu0 %v468
    %530 = vmatpush1.bf16.msra.mxu0 %v467
    %531 = vmatprep.subr.bf16.mxu0 %v473
    %532 = vmatpush1.bf16.msra.mxu0 %v472
    %533 = vmatprep.subr.bf16.mxu0 0
    %534 = vmatpush1.bf16.msra.mxu0 0
    %535 = vmatprep.subr.bf16.mxu0 0
    %536 = vmatpush1.bf16.msra.mxu0 0
    %537 = vmatprep.subr.bf16.mxu0 0
    %538 = vmatpush1.bf16.msra.mxu0 0
    %539 = vmatprep.subr.bf16.mxu0 0
    %540 = vmatpush1.bf16.msra.mxu0 0
    %541 = vmatprep.subr.bf16.mxu0 0
    %542 = vmatpush1.bf16.msra.mxu0 0
    %543 = vmatprep.subr.bf16.mxu0 0
    %544 = vmatpush1.bf16.msra.mxu0 0
    %545 = vmatprep.subr.bf16.mxu0 0
    %546 = vmatpush1.bf16.msra.mxu0 0
    %547 = vmatprep.subr.bf16.mxu0 0
    %548 = vmatpush1.bf16.msra.mxu0 0
    %549 = vmatprep.mubr.bf16.mxu0 0
    %550 = vmatmul.mubr.bf16.gmra.mrb[0].mxu0 %v307
    %v551 = vpop.f32.mrb[0].mxu0
    %v552 = vadd.f32 %v248, %v551
    %v553 = vpop.f32.mrb[0].mxu0
    %v554 = vadd.f32 %v252, %v553
    %v555 = vpop.f32.mrb[0].mxu0
    %v556 = vpop.f32.mrb[0].mxu0
    %557 = vdwg.mxu0
    %558 = vmatprep.subr.bf16.mxu0 %v440
    %559 = vmatpush1.bf16.msra.mxu0 %v439
    %560 = vmatprep.subr.bf16.mxu0 %v445
    %561 = vmatpush1.bf16.msra.mxu0 %v444
    %562 = vmatprep.subr.bf16.mxu0 %v450
    %563 = vmatpush1.bf16.msra.mxu0 %v449
    %564 = vmatprep.subr.bf16.mxu0 %v455
    %565 = vmatpush1.bf16.msra.mxu0 %v454
    %566 = vmatprep.subr.bf16.mxu0 %v460
    %567 = vmatpush1.bf16.msra.mxu0 %v459
    %568 = vmatprep.subr.bf16.mxu0 %v465
    %569 = vmatpush1.bf16.msra.mxu0 %v464
    %570 = vmatprep.subr.bf16.mxu0 %v470
    %571 = vmatpush1.bf16.msra.mxu0 %v469
    %572 = vmatprep.subr.bf16.mxu0 %v475
    %573 = vmatpush1.bf16.msra.mxu0 %v474
    %574 = vmatprep.subr.bf16.mxu0 0
    %575 = vmatpush1.bf16.msra.mxu0 0
    %576 = vmatprep.subr.bf16.mxu0 0
    %577 = vmatpush1.bf16.msra.mxu0 0
    %578 = vmatprep.subr.bf16.mxu0 0
    %579 = vmatpush1.bf16.msra.mxu0 0
    %580 = vmatprep.subr.bf16.mxu0 0
    %581 = vmatpush1.bf16.msra.mxu0 0
    %582 = vmatprep.subr.bf16.mxu0 0
    %583 = vmatpush1.bf16.msra.mxu0 0
    %584 = vmatprep.subr.bf16.mxu0 0
    %585 = vmatpush1.bf16.msra.mxu0 0
    %586 = vmatprep.subr.bf16.mxu0 0
    %587 = vmatpush1.bf16.msra.mxu0 0
    %588 = vmatprep.subr.bf16.mxu0 0
    %589 = vmatpush1.bf16.msra.mxu0 0
    %590 = vmatprep.mubr.bf16.mxu0 0
    %591 = vmatmul.mubr.bf16.gmra.mrb[0].mxu0 %v307
    %v592 = vpop.f32.mrb[0].mxu0
    %v593 = vadd.f32 %v256, %v592
    %v594 = vpop.f32.mrb[0].mxu0
    %v595 = vadd.f32 %v260, %v594
    %v596 = vpop.f32.mrb[0].mxu0
    %v597 = vpop.f32.mrb[0].mxu0
    %598 = vdwg.mxu0
    %599 = vmatprep.subr.bf16.mxu0 0
    %600 = vmatpush1.bf16.msra.mxu0 %v441
    %601 = vmatprep.subr.bf16.mxu0 0
    %602 = vmatpush1.bf16.msra.mxu0 %v446
    %603 = vmatprep.subr.bf16.mxu0 0
    %604 = vmatpush1.bf16.msra.mxu0 %v451
    %605 = vmatprep.subr.bf16.mxu0 0
    %606 = vmatpush1.bf16.msra.mxu0 %v456
    %607 = vmatprep.subr.bf16.mxu0 0
    %608 = vmatpush1.bf16.msra.mxu0 %v461
    %609 = vmatprep.subr.bf16.mxu0 0
    %610 = vmatpush1.bf16.msra.mxu0 %v466
    %611 = vmatprep.subr.bf16.mxu0 0
    %612 = vmatpush1.bf16.msra.mxu0 %v471
    %613 = vmatprep.subr.bf16.mxu0 0
    %614 = vmatpush1.bf16.msra.mxu0 %v476
    %615 = vmatprep.subr.bf16.mxu0 0
    %616 = vmatpush1.bf16.msra.mxu0 0
    %617 = vmatprep.subr.bf16.mxu0 0
    %618 = vmatpush1.bf16.msra.mxu0 0
    %619 = vmatprep.subr.bf16.mxu0 0
    %620 = vmatpush1.bf16.msra.mxu0 0
    %621 = vmatprep.subr.bf16.mxu0 0
    %622 = vmatpush1.bf16.msra.mxu0 0
    %623 = vmatprep.subr.bf16.mxu0 0
    %624 = vmatpush1.bf16.msra.mxu0 0
    %625 = vmatprep.subr.bf16.mxu0 0
    %626 = vmatpush1.bf16.msra.mxu0 0
    %627 = vmatprep.subr.bf16.mxu0 0
    %628 = vmatpush1.bf16.msra.mxu0 0
    %629 = vmatprep.subr.bf16.mxu0 0
    %630 = vmatpush1.bf16.msra.mxu0 0
    %631 = vmatprep.mubr.bf16.mxu0 0
    %632 = vmatmul.mubr.bf16.gmra.mrb[0].mxu0 %v307
    %v633 = vpop.f32.mrb[0].mxu0
    %v634 = vadd.f32 %v264, %v633
    %v635 = vpop.f32.mrb[0].mxu0
    %v636 = vpop.f32.mrb[0].mxu0
    %v637 = vpop.f32.mrb[0].mxu0
    %638 = vdwg.mxu0
    %v639 = vmax.f32 %v552, 0.0
    %v640 = vmax.f32 %v554, 0.0
    %v641 = vmax.f32 %v593, 0.0
    %v642 = vmax.f32 %v595, 0.0
    %v643 = vmax.f32 %v634, 0.0
    %v644 = vpack.c.bf16 %v639, %v639
    %v645 = vpack.c.bf16 %v640, %v640
    %v646 = vpack.c.bf16 %v641, %v641
    %v647 = vpack.c.bf16 %v642, %v642
    %v648 = vpack.c.bf16 %v643, %v643
    %v649 = vld [vmem:[#allocation7] sm:$0xff]
    %v650 = vld [vmem:[#allocation7 + $0x8] sm:$0xf]
    %v651 = vld [vmem:[#allocation7 + $0xc] sm:$0xff]
    %v652 = vld [vmem:[#allocation7 + $0x14] sm:$0xf]
    %v653 = vld [vmem:[#allocation7 + $0x18] sm:$0xff]
    %v654 = vld [vmem:[#allocation7 + $0x20] sm:$0xf]
    %v655 = vld [vmem:[#allocation7 + $0x24] sm:$0xff]
    %v656 = vld [vmem:[#allocation7 + $0x2c] sm:$0xf]
    %v657 = vld [vmem:[#allocation7 + $0x30] sm:$0xff]
    %v658 = vld [vmem:[#allocation7 + $0x38] sm:$0xf]
    %v659 = vld [vmem:[#allocation7 + $0x3c] sm:$0xff]
    %v660 = vld [vmem:[#allocation7 + $0x44] sm:$0xf]
    %v661 = vld [vmem:[#allocation7 + $0x48] sm:$0xff]
    %v662 = vld [vmem:[#allocation7 + $0x50] sm:$0xf]
    %v663 = vld [vmem:[#allocation7 + $0x54] sm:$0xff]
    %v664 = vld [vmem:[#allocation7 + $0x5c] sm:$0xf]
    %v665 = vld [vmem:[#allocation7 + $0x60] sm:$0xff]
    %v666 = vld [vmem:[#allocation7 + $0x68] sm:$0xf]
    %v667 = vld [vmem:[#allocation7 + $0x6c] sm:$0xff]
    %v668 = vld [vmem:[#allocation7 + $0x74] sm:$0xf]
    %v669 = vld [vmem:[#allocation7 + $0x78] sm:$0xff]
    %v670 = vld [vmem:[#allocation7 + $0x80] sm:$0xf]
    %v671 = vld [vmem:[#allocation7 + $0x84] sm:$0xff]
    %v672 = vld [vmem:[#allocation7 + $0x8c] sm:$0xf]
    %v673 = vld [vmem:[#allocation7 + $0x90] sm:$0xff]
    %v674 = vld [vmem:[#allocation7 + $0x98] sm:$0xf]
    %v675 = vld [vmem:[#allocation7 + $0x9c] sm:$0xff]
    %v676 = vld [vmem:[#allocation7 + $0xa4] sm:$0xf]
    %v677 = vld [vmem:[#allocation7 + $0xa8] sm:$0xff]
    %v678 = vld [vmem:[#allocation7 + $0xb0] sm:$0xf]
    %v679 = vld [vmem:[#allocation7 + $0xb4] sm:$0xff]
    %v680 = vld [vmem:[#allocation7 + $0xbc] sm:$0xf]
    %v681 = vld [vmem:[#allocation7 + $0xc0] sm:$0xff]
    %v682 = vld [vmem:[#allocation7 + $0xc8] sm:$0xf]
    %v683 = vld [vmem:[#allocation7 + $0xcc] sm:$0xff]
    %v684 = vld [vmem:[#allocation7 + $0xd4] sm:$0xf]
    %v685 = vld [vmem:[#allocation7 + $0xd8] sm:$0xff]
    %v686 = vld [vmem:[#allocation7 + $0xe0] sm:$0xf]
    %v687 = vld [vmem:[#allocation7 + $0xe4] sm:$0xff]
    %v688 = vld [vmem:[#allocation7 + $0xec] sm:$0xf]
    %v689 = vld [vmem:[#allocation7 + $0xf0] sm:$0xff]
    %v690 = vld [vmem:[#allocation7 + $0xf8] sm:$0xf]
    %v691 = vld [vmem:[#allocation7 + $0xfc] sm:$0xff]
    %v692 = vld [vmem:[#allocation7 + $0x104] sm:$0xf]
    %v693 = vld [vmem:[#allocation7 + $0x108] sm:$0xff]
    %v694 = vld [vmem:[#allocation7 + $0x110] sm:$0xf]
    %v695 = vld [vmem:[#allocation7 + $0x114] sm:$0xff]
    %v696 = vld [vmem:[#allocation7 + $0x11c] sm:$0xf]
    %v697 = vld [vmem:[#allocation7 + $0x120] sm:$0xff]
    %v698 = vld [vmem:[#allocation7 + $0x128] sm:$0xf]
    %v699 = vld [vmem:[#allocation7 + $0x12c] sm:$0xff]
    %v700 = vld [vmem:[#allocation7 + $0x134] sm:$0xf]
    %v701 = vld [vmem:[#allocation7 + $0x138] sm:$0xff]
    %v702 = vld [vmem:[#allocation7 + $0x140] sm:$0xf]
    %v703 = vld [vmem:[#allocation7 + $0x144] sm:$0xff]
    %v704 = vld [vmem:[#allocation7 + $0x14c] sm:$0xf]
    %v705 = vld [vmem:[#allocation7 + $0x150] sm:$0xff]
    %v706 = vld [vmem:[#allocation7 + $0x158] sm:$0xf]
    %v707 = vld [vmem:[#allocation7 + $0x15c] sm:$0xff]
    %v708 = vld [vmem:[#allocation7 + $0x164] sm:$0xf]
    %v709 = vld [vmem:[#allocation7 + $0x168] sm:$0xff]
    %v710 = vld [vmem:[#allocation7 + $0x170] sm:$0xf]
    %v711 = vld [vmem:[#allocation7 + $0x174] sm:$0xff]
    %v712 = vld [vmem:[#allocation7 + $0x17c] sm:$0xf]
    %v713 = vld [vmem:[#allocation7 + $0x180] sm:$0xff]
    %v714 = vld [vmem:[#allocation7 + $0x188] sm:$0xf]
    %v715 = vld [vmem:[#allocation7 + $0x18c] sm:$0xff]
    %v716 = vld [vmem:[#allocation7 + $0x194] sm:$0xf]
    %v717 = vld [vmem:[#allocation7 + $0x198] sm:$0xff]
    %v718 = vld [vmem:[#allocation7 + $0x1a0] sm:$0xf]
    %v719 = vld [vmem:[#allocation7 + $0x1a4] sm:$0xff]
    %v720 = vld [vmem:[#allocation7 + $0x1ac] sm:$0xf]
    %v721 = vld [vmem:[#allocation7 + $0x1b0] sm:$0xff]
    %v722 = vld [vmem:[#allocation7 + $0x1b8] sm:$0xf]
    %v723 = vld [vmem:[#allocation7 + $0x1bc] sm:$0xff]
    %v724 = vld [vmem:[#allocation7 + $0x1c4] sm:$0xf]
    %v725 = vld [vmem:[#allocation7 + $0x1c8] sm:$0xff]
    %v726 = vld [vmem:[#allocation7 + $0x1d0] sm:$0xf]
    %v727 = vld [vmem:[#allocation7 + $0x1d4] sm:$0xff]
    %v728 = vld [vmem:[#allocation7 + $0x1dc] sm:$0xf]
    %v729 = vld [vmem:[#allocation7 + $0x1e0] sm:$0xff]
    %v730 = vld [vmem:[#allocation7 + $0x1e8] sm:$0xf]
    %v731 = vld [vmem:[#allocation7 + $0x1ec] sm:$0xff]
    %v732 = vld [vmem:[#allocation7 + $0x1f4] sm:$0xf]
    %v733 = vld [vmem:[#allocation7 + $0x1f8] sm:$0xff]
    %v734 = vld [vmem:[#allocation7 + $0x200] sm:$0xf]
    %v735 = vld [vmem:[#allocation7 + $0x204] sm:$0xff]
    %v736 = vld [vmem:[#allocation7 + $0x20c] sm:$0xf]
    %v737 = vld [vmem:[#allocation7 + $0x210] sm:$0xff]
    %v738 = vld [vmem:[#allocation7 + $0x218] sm:$0xf]
    %v739 = vld [vmem:[#allocation7 + $0x21c] sm:$0xff]
    %v740 = vld [vmem:[#allocation7 + $0x224] sm:$0xf]
    %v741 = vld [vmem:[#allocation7 + $0x228] sm:$0xff]
    %v742 = vld [vmem:[#allocation7 + $0x230] sm:$0xf]
    %v743 = vld [vmem:[#allocation7 + $0x234] sm:$0xff]
    %v744 = vld [vmem:[#allocation7 + $0x23c] sm:$0xf]
    %v745 = vld [vmem:[#allocation7 + $0x240] sm:$0xff]
    %v746 = vld [vmem:[#allocation7 + $0x248] sm:$0xf]
    %v747 = vld [vmem:[#allocation7 + $0x24c] sm:$0xff]
    %v748 = vld [vmem:[#allocation7 + $0x254] sm:$0xf]
    %v749 = vld [vmem:[#allocation7 + $0x258] sm:$0xff]
    %v750 = vld [vmem:[#allocation7 + $0x260] sm:$0xf]
    %v751 = vld [vmem:[#allocation7 + $0x264] sm:$0xff]
    %v752 = vld [vmem:[#allocation7 + $0x26c] sm:$0xf]
    %v753 = vld [vmem:[#allocation7 + $0x270] sm:$0xff]
    %v754 = vld [vmem:[#allocation7 + $0x278] sm:$0xf]
    %v755 = vld [vmem:[#allocation7 + $0x27c] sm:$0xff]
    %v756 = vld [vmem:[#allocation7 + $0x284] sm:$0xf]
    %v757 = vld [vmem:[#allocation7 + $0x288] sm:$0xff]
    %v758 = vld [vmem:[#allocation7 + $0x290] sm:$0xf]
    %v759 = vld [vmem:[#allocation7 + $0x294] sm:$0xff]
    %v760 = vld [vmem:[#allocation7 + $0x29c] sm:$0xf]
    %v761 = vld [vmem:[#allocation7 + $0x2a0] sm:$0xff]
    %v762 = vld [vmem:[#allocation7 + $0x2a8] sm:$0xf]
    %v763 = vld [vmem:[#allocation7 + $0x2ac] sm:$0xff]
    %v764 = vld [vmem:[#allocation7 + $0x2b4] sm:$0xf]
    %v765 = vld [vmem:[#allocation7 + $0x2b8] sm:$0xff]
    %v766 = vld [vmem:[#allocation7 + $0x2c0] sm:$0xf]
    %v767 = vld [vmem:[#allocation7 + $0x2c4] sm:$0xff]
    %v768 = vld [vmem:[#allocation7 + $0x2cc] sm:$0xf]
    %v769 = vld [vmem:[#allocation7 + $0x2d0] sm:$0xff]
    %v770 = vld [vmem:[#allocation7 + $0x2d8] sm:$0xf]
    %v771 = vld [vmem:[#allocation7 + $0x2dc] sm:$0xff]
    %v772 = vld [vmem:[#allocation7 + $0x2e4] sm:$0xf]
    %v773 = vld [vmem:[#allocation7 + $0x2e8] sm:$0xff]
    %v774 = vld [vmem:[#allocation7 + $0x2f0] sm:$0xf]
    %v775 = vld [vmem:[#allocation7 + $0x2f4] sm:$0xff]
    %v776 = vld [vmem:[#allocation7 + $0x2fc] sm:$0xf]
    %v777 = vld [vmem:[#allocation7 + $0x300] sm:$0xff]
    %v778 = vld [vmem:[#allocation7 + $0x308] sm:$0xf]
    %v779 = vld [vmem:[#allocation7 + $0x30c] sm:$0xff]
    %v780 = vld [vmem:[#allocation7 + $0x314] sm:$0xf]
    %v781 = vld [vmem:[#allocation7 + $0x318] sm:$0xff]
    %v782 = vld [vmem:[#allocation7 + $0x320] sm:$0xf]
    %v783 = vld [vmem:[#allocation7 + $0x324] sm:$0xff]
    %v784 = vld [vmem:[#allocation7 + $0x32c] sm:$0xf]
    %v785 = vld [vmem:[#allocation7 + $0x330] sm:$0xff]
    %v786 = vld [vmem:[#allocation7 + $0x338] sm:$0xf]
    %v787 = vld [vmem:[#allocation7 + $0x33c] sm:$0xff]
    %v788 = vld [vmem:[#allocation7 + $0x344] sm:$0xf]
    %v789 = vld [vmem:[#allocation7 + $0x348] sm:$0xff]
    %v790 = vld [vmem:[#allocation7 + $0x350] sm:$0xf]
    %v791 = vld [vmem:[#allocation7 + $0x354] sm:$0xff]
    %v792 = vld [vmem:[#allocation7 + $0x35c] sm:$0xf]
    %v793 = vld [vmem:[#allocation7 + $0x360] sm:$0xff]
    %v794 = vld [vmem:[#allocation7 + $0x368] sm:$0xf]
    %v795 = vld [vmem:[#allocation7 + $0x36c] sm:$0xff]
    %v796 = vld [vmem:[#allocation7 + $0x374] sm:$0xf]
    %v797 = vld [vmem:[#allocation7 + $0x378] sm:$0xff]
    %v798 = vld [vmem:[#allocation7 + $0x380] sm:$0xf]
    %v799 = vld [vmem:[#allocation7 + $0x384] sm:$0xff]
    %v800 = vld [vmem:[#allocation7 + $0x38c] sm:$0xf]
    %v801 = vld [vmem:[#allocation7 + $0x390] sm:$0xff]
    %v802 = vld [vmem:[#allocation7 + $0x398] sm:$0xf]
    %v803 = vld [vmem:[#allocation7 + $0x39c] sm:$0xff]
    %v804 = vld [vmem:[#allocation7 + $0x3a4] sm:$0xf]
    %v805 = vld [vmem:[#allocation7 + $0x3a8] sm:$0xff]
    %v806 = vld [vmem:[#allocation7 + $0x3b0] sm:$0xf]
    %v807 = vld [vmem:[#allocation7 + $0x3b4] sm:$0xff]
    %v808 = vld [vmem:[#allocation7 + $0x3bc] sm:$0xf]
    %v809 = vld [vmem:[%s5] sm:$0x7]
    %v811 = vlaneseq
    %v812 = vshrl.u32 %v811, 7
    %v813 = vsub.s32 0, %v812
    %v814 = vrot.slane %v809, %v813
    %v815 = vlaneseq
    %v816 = vshrl.u32 %v815, 7
    %v817 = vsub.s32 1, %v816
    %v818 = vrot.slane %v809, %v817
    %v819 = vlaneseq
    %v820 = vshrl.u32 %v819, 7
    %v821 = vsub.s32 2, %v820
    %v822 = vrot.slane %v809, %v821
    %v986 = vunpack.c.l.b16 %v649
    %v987 = vunpack.c.h.b16 %v649
    %v988 = vunpack.c.l.b16 %v650
    %v989 = vunpack.c.l.b16 %v651
    %v990 = vunpack.c.h.b16 %v651
    %v991 = vunpack.c.l.b16 %v652
    %v992 = vunpack.c.l.b16 %v653
    %v993 = vunpack.c.h.b16 %v653
    %v994 = vunpack.c.l.b16 %v654
    %v995 = vunpack.c.l.b16 %v655
    %v996 = vunpack.c.h.b16 %v655
    %v997 = vunpack.c.l.b16 %v656
    %v998 = vunpack.c.l.b16 %v657
    %v999 = vunpack.c.h.b16 %v657
    %v1000 = vunpack.c.l.b16 %v658
    %v1001 = vunpack.c.l.b16 %v659
    %v1002 = vunpack.c.h.b16 %v659
    %v1003 = vunpack.c.l.b16 %v660
    %v1004 = vunpack.c.l.b16 %v661
    %v1005 = vunpack.c.h.b16 %v661
    %v1006 = vunpack.c.l.b16 %v662
    %v1007 = vunpack.c.l.b16 %v663
    %v1008 = vunpack.c.h.b16 %v663
    %v1009 = vunpack.c.l.b16 %v664
    %v1010 = vunpack.c.l.b16 %v665
    %v1011 = vunpack.c.h.b16 %v665
    %v1012 = vunpack.c.l.b16 %v666
    %v1013 = vunpack.c.l.b16 %v667
    %v1014 = vunpack.c.h.b16 %v667
    %v1015 = vunpack.c.l.b16 %v668
    %v1016 = vunpack.c.l.b16 %v669
    %v1017 = vunpack.c.h.b16 %v669
    %v1018 = vunpack.c.l.b16 %v670
    %v1019 = vunpack.c.l.b16 %v671
    %v1020 = vunpack.c.h.b16 %v671
    %v1021 = vunpack.c.l.b16 %v672
    %v1022 = vunpack.c.l.b16 %v673
    %v1023 = vunpack.c.h.b16 %v673
    %v1024 = vunpack.c.l.b16 %v674
    %v1025 = vunpack.c.l.b16 %v675
    %v1026 = vunpack.c.h.b16 %v675
    %v1027 = vunpack.c.l.b16 %v676
    %v1028 = vunpack.c.l.b16 %v677
    %v1029 = vunpack.c.h.b16 %v677
    %v1030 = vunpack.c.l.b16 %v678
    %v1031 = vunpack.c.l.b16 %v679
    %v1032 = vunpack.c.h.b16 %v679
    %v1033 = vunpack.c.l.b16 %v680
    %v1034 = vunpack.c.l.b16 %v681
    %v1035 = vunpack.c.h.b16 %v681
    %v1036 = vunpack.c.l.b16 %v682
    %v1037 = vunpack.c.l.b16 %v683
    %v1038 = vunpack.c.h.b16 %v683
    %v1039 = vunpack.c.l.b16 %v684
    %v1040 = vunpack.c.l.b16 %v685
    %v1041 = vunpack.c.h.b16 %v685
    %v1042 = vunpack.c.l.b16 %v686
    %v1043 = vunpack.c.l.b16 %v687
    %v1044 = vunpack.c.h.b16 %v687
    %v1045 = vunpack.c.l.b16 %v688
    %v1046 = vunpack.c.l.b16 %v689
    %v1047 = vunpack.c.h.b16 %v689
    %v1048 = vunpack.c.l.b16 %v690
    %v1049 = vunpack.c.l.b16 %v691
    %v1050 = vunpack.c.h.b16 %v691
    %v1051 = vunpack.c.l.b16 %v692
    %v1052 = vunpack.c.l.b16 %v693
    %v1053 = vunpack.c.h.b16 %v693
    %v1054 = vunpack.c.l.b16 %v694
    %v1055 = vunpack.c.l.b16 %v695
    %v1056 = vunpack.c.h.b16 %v695
    %v1057 = vunpack.c.l.b16 %v696
    %v1058 = vunpack.c.l.b16 %v697
    %v1059 = vunpack.c.h.b16 %v697
    %v1060 = vunpack.c.l.b16 %v698
    %v1061 = vunpack.c.l.b16 %v699
    %v1062 = vunpack.c.h.b16 %v699
    %v1063 = vunpack.c.l.b16 %v700
    %v1064 = vunpack.c.l.b16 %v701
    %v1065 = vunpack.c.h.b16 %v701
    %v1066 = vunpack.c.l.b16 %v702
    %v1067 = vunpack.c.l.b16 %v703
    %v1068 = vunpack.c.h.b16 %v703
    %v1069 = vunpack.c.l.b16 %v704
    %v1070 = vunpack.c.l.b16 %v705
    %v1071 = vunpack.c.h.b16 %v705
    %v1072 = vunpack.c.l.b16 %v706
    %v1073 = vunpack.c.l.b16 %v707
    %v1074 = vunpack.c.h.b16 %v707
    %v1075 = vunpack.c.l.b16 %v708
    %v1076 = vunpack.c.l.b16 %v709
    %v1077 = vunpack.c.h.b16 %v709
    %v1078 = vunpack.c.l.b16 %v710
    %v1079 = vunpack.c.l.b16 %v711
    %v1080 = vunpack.c.h.b16 %v711
    %v1081 = vunpack.c.l.b16 %v712
    %v1082 = vunpack.c.l.b16 %v713
    %v1083 = vunpack.c.h.b16 %v713
    %v1084 = vunpack.c.l.b16 %v714
    %v1085 = vunpack.c.l.b16 %v715
    %v1086 = vunpack.c.h.b16 %v715
    %v1087 = vunpack.c.l.b16 %v716
    %v1088 = vunpack.c.l.b16 %v717
    %v1089 = vunpack.c.h.b16 %v717
    %v1090 = vunpack.c.l.b16 %v718
    %v1091 = vunpack.c.l.b16 %v719
    %v1092 = vunpack.c.h.b16 %v719
    %v1093 = vunpack.c.l.b16 %v720
    %v1094 = vunpack.c.l.b16 %v721
    %v1095 = vunpack.c.h.b16 %v721
    %v1096 = vunpack.c.l.b16 %v722
    %v1097 = vunpack.c.l.b16 %v723
    %v1098 = vunpack.c.h.b16 %v723
    %v1099 = vunpack.c.l.b16 %v724
    %v1100 = vunpack.c.l.b16 %v725
    %v1101 = vunpack.c.h.b16 %v725
    %v1102 = vunpack.c.l.b16 %v726
    %v1103 = vunpack.c.l.b16 %v727
    %v1104 = vunpack.c.h.b16 %v727
    %v1105 = vunpack.c.l.b16 %v728
    %v1106 = vunpack.c.l.b16 %v729
    %v1107 = vunpack.c.h.b16 %v729
    %v1108 = vunpack.c.l.b16 %v730
    %v1109 = vunpack.c.l.b16 %v731
    %v1110 = vunpack.c.h.b16 %v731
    %v1111 = vunpack.c.l.b16 %v732
    %v1112 = vunpack.c.l.b16 %v733
    %v1113 = vunpack.c.h.b16 %v733
    %v1114 = vunpack.c.l.b16 %v734
    %v1115 = vunpack.c.l.b16 %v735
    %v1116 = vunpack.c.h.b16 %v735
    %v1117 = vunpack.c.l.b16 %v736
    %v1118 = vunpack.c.l.b16 %v737
    %v1119 = vunpack.c.h.b16 %v737
    %v1120 = vunpack.c.l.b16 %v738
    %v1121 = vunpack.c.l.b16 %v739
    %v1122 = vunpack.c.h.b16 %v739
    %v1123 = vunpack.c.l.b16 %v740
    %v1124 = vunpack.c.l.b16 %v741
    %v1125 = vunpack.c.h.b16 %v741
    %v1126 = vunpack.c.l.b16 %v742
    %v1127 = vunpack.c.l.b16 %v743
    %v1128 = vunpack.c.h.b16 %v743
    %v1129 = vunpack.c.l.b16 %v744
    %v1130 = vunpack.c.l.b16 %v745
    %v1131 = vunpack.c.h.b16 %v745
    %v1132 = vunpack.c.l.b16 %v746
    %v1133 = vunpack.c.l.b16 %v747
    %v1134 = vunpack.c.h.b16 %v747
    %v1135 = vunpack.c.l.b16 %v748
    %v1136 = vunpack.c.l.b16 %v749
    %v1137 = vunpack.c.h.b16 %v749
    %v1138 = vunpack.c.l.b16 %v750
    %v1139 = vunpack.c.l.b16 %v751
    %v1140 = vunpack.c.h.b16 %v751
    %v1141 = vunpack.c.l.b16 %v752
    %v1142 = vunpack.c.l.b16 %v753
    %v1143 = vunpack.c.h.b16 %v753
    %v1144 = vunpack.c.l.b16 %v754
    %v1145 = vunpack.c.l.b16 %v755
    %v1146 = vunpack.c.h.b16 %v755
    %v1147 = vunpack.c.l.b16 %v756
    %v1148 = vunpack.c.l.b16 %v757
    %v1149 = vunpack.c.h.b16 %v757
    %v1150 = vunpack.c.l.b16 %v758
    %v1151 = vunpack.c.l.b16 %v759
    %v1152 = vunpack.c.h.b16 %v759
    %v1153 = vunpack.c.l.b16 %v760
    %v1154 = vunpack.c.l.b16 %v761
    %v1155 = vunpack.c.h.b16 %v761
    %v1156 = vunpack.c.l.b16 %v762
    %v1157 = vunpack.c.l.b16 %v763
    %v1158 = vunpack.c.h.b16 %v763
    %v1159 = vunpack.c.l.b16 %v764
    %v1160 = vunpack.c.l.b16 %v765
    %v1161 = vunpack.c.h.b16 %v765
    %v1162 = vunpack.c.l.b16 %v766
    %v1163 = vunpack.c.l.b16 %v767
    %v1164 = vunpack.c.h.b16 %v767
    %v1165 = vunpack.c.l.b16 %v768
    %v1166 = vunpack.c.l.b16 %v769
    %v1167 = vunpack.c.h.b16 %v769
    %v1168 = vunpack.c.l.b16 %v770
    %v1169 = vunpack.c.l.b16 %v771
    %v1170 = vunpack.c.h.b16 %v771
    %v1171 = vunpack.c.l.b16 %v772
    %v1172 = vunpack.c.l.b16 %v773
    %v1173 = vunpack.c.h.b16 %v773
    %v1174 = vunpack.c.l.b16 %v774
    %v1175 = vunpack.c.l.b16 %v775
    %v1176 = vunpack.c.h.b16 %v775
    %v1177 = vunpack.c.l.b16 %v776
    %v1178 = vunpack.c.l.b16 %v777
    %v1179 = vunpack.c.h.b16 %v777
    %v1180 = vunpack.c.l.b16 %v778
    %v1181 = vunpack.c.l.b16 %v779
    %v1182 = vunpack.c.h.b16 %v779
    %v1183 = vunpack.c.l.b16 %v780
    %v1184 = vunpack.c.l.b16 %v781
    %v1185 = vunpack.c.h.b16 %v781
    %v1186 = vunpack.c.l.b16 %v782
    %v1187 = vunpack.c.l.b16 %v783
    %v1188 = vunpack.c.h.b16 %v783
    %v1189 = vunpack.c.l.b16 %v784
    %v1190 = vunpack.c.l.b16 %v785
    %v1191 = vunpack.c.h.b16 %v785
    %v1192 = vunpack.c.l.b16 %v786
    %v1193 = vunpack.c.l.b16 %v787
    %v1194 = vunpack.c.h.b16 %v787
    %v1195 = vunpack.c.l.b16 %v788
    %v1196 = vunpack.c.l.b16 %v789
    %v1197 = vunpack.c.h.b16 %v789
    %v1198 = vunpack.c.l.b16 %v790
    %v1199 = vunpack.c.l.b16 %v791
    %v1200 = vunpack.c.h.b16 %v791
    %v1201 = vunpack.c.l.b16 %v792
    %v1202 = vunpack.c.l.b16 %v793
    %v1203 = vunpack.c.h.b16 %v793
    %v1204 = vunpack.c.l.b16 %v794
    %v1205 = vunpack.c.l.b16 %v795
    %v1206 = vunpack.c.h.b16 %v795
    %v1207 = vunpack.c.l.b16 %v796
    %v1208 = vunpack.c.l.b16 %v797
    %v1209 = vunpack.c.h.b16 %v797
    %v1210 = vunpack.c.l.b16 %v798
    %v1211 = vunpack.c.l.b16 %v799
    %v1212 = vunpack.c.h.b16 %v799
    %v1213 = vunpack.c.l.b16 %v800
    %v1214 = vunpack.c.l.b16 %v801
    %v1215 = vunpack.c.h.b16 %v801
    %v1216 = vunpack.c.l.b16 %v802
    %v1217 = vunpack.c.l.b16 %v803
    %v1218 = vunpack.c.h.b16 %v803
    %v1219 = vunpack.c.l.b16 %v804
    %v1220 = vunpack.c.l.b16 %v805
    %v1221 = vunpack.c.h.b16 %v805
    %v1222 = vunpack.c.l.b16 %v806
    %v1223 = vunpack.c.l.b16 %v807
    %v1224 = vunpack.c.h.b16 %v807
    %v1225 = vunpack.c.l.b16 %v808
    %v1226 = vpack.c.b16 %v989, %v986
    %v1227 = vpack.c.b16 %v990, %v987
    %v1228 = vpack.c.b16 %v991, %v988
    %v1229 = vpack.c.b16 %v995, %v992
    %v1230 = vpack.c.b16 %v996, %v993
    %v1231 = vpack.c.b16 %v997, %v994
    %v1232 = vpack.c.b16 %v1001, %v998
    %v1233 = vpack.c.b16 %v1002, %v999
    %v1234 = vpack.c.b16 %v1003, %v1000
    %v1235 = vpack.c.b16 %v1007, %v1004
    %v1236 = vpack.c.b16 %v1008, %v1005
    %v1237 = vpack.c.b16 %v1009, %v1006
    %v1238 = vpack.c.b16 %v1013, %v1010
    %v1239 = vpack.c.b16 %v1014, %v1011
    %v1240 = vpack.c.b16 %v1015, %v1012
    %v1241 = vpack.c.b16 %v1019, %v1016
    %v1242 = vpack.c.b16 %v1020, %v1017
    %v1243 = vpack.c.b16 %v1021, %v1018
    %v1244 = vpack.c.b16 %v1025, %v1022
    %v1245 = vpack.c.b16 %v1026, %v1023
    %v1246 = vpack.c.b16 %v1027, %v1024
    %v1247 = vpack.c.b16 %v1031, %v1028
    %v1248 = vpack.c.b16 %v1032, %v1029
    %v1249 = vpack.c.b16 %v1033, %v1030
    %v1250 = vpack.c.b16 %v1037, %v1034
    %v1251 = vpack.c.b16 %v1038, %v1035
    %v1252 = vpack.c.b16 %v1039, %v1036
    %v1253 = vpack.c.b16 %v1043, %v1040
    %v1254 = vpack.c.b16 %v1044, %v1041
    %v1255 = vpack.c.b16 %v1045, %v1042
    %v1256 = vpack.c.b16 %v1049, %v1046
    %v1257 = vpack.c.b16 %v1050, %v1047
    %v1258 = vpack.c.b16 %v1051, %v1048
    %v1259 = vpack.c.b16 %v1055, %v1052
    %v1260 = vpack.c.b16 %v1056, %v1053
    %v1261 = vpack.c.b16 %v1057, %v1054
    %v1262 = vpack.c.b16 %v1061, %v1058
    %v1263 = vpack.c.b16 %v1062, %v1059
    %v1264 = vpack.c.b16 %v1063, %v1060
    %v1265 = vpack.c.b16 %v1067, %v1064
    %v1266 = vpack.c.b16 %v1068, %v1065
    %v1267 = vpack.c.b16 %v1069, %v1066
    %v1268 = vpack.c.b16 %v1073, %v1070
    %v1269 = vpack.c.b16 %v1074, %v1071
    %v1270 = vpack.c.b16 %v1075, %v1072
    %v1271 = vpack.c.b16 %v1079, %v1076
    %v1272 = vpack.c.b16 %v1080, %v1077
    %v1273 = vpack.c.b16 %v1081, %v1078
    %v1274 = vpack.c.b16 %v1085, %v1082
    %v1275 = vpack.c.b16 %v1086, %v1083
    %v1276 = vpack.c.b16 %v1087, %v1084
    %v1277 = vpack.c.b16 %v1091, %v1088
    %v1278 = vpack.c.b16 %v1092, %v1089
    %v1279 = vpack.c.b16 %v1093, %v1090
    %v1280 = vpack.c.b16 %v1097, %v1094
    %v1281 = vpack.c.b16 %v1098, %v1095
    %v1282 = vpack.c.b16 %v1099, %v1096
    %v1283 = vpack.c.b16 %v1103, %v1100
    %v1284 = vpack.c.b16 %v1104, %v1101
    %v1285 = vpack.c.b16 %v1105, %v1102
    %v1286 = vpack.c.b16 %v1109, %v1106
    %v1287 = vpack.c.b16 %v1110, %v1107
    %v1288 = vpack.c.b16 %v1111, %v1108
    %v1289 = vpack.c.b16 %v1115, %v1112
    %v1290 = vpack.c.b16 %v1116, %v1113
    %v1291 = vpack.c.b16 %v1117, %v1114
    %v1292 = vpack.c.b16 %v1121, %v1118
    %v1293 = vpack.c.b16 %v1122, %v1119
    %v1294 = vpack.c.b16 %v1123, %v1120
    %v1295 = vpack.c.b16 %v1127, %v1124
    %v1296 = vpack.c.b16 %v1128, %v1125
    %v1297 = vpack.c.b16 %v1129, %v1126
    %v1298 = vpack.c.b16 %v1133, %v1130
    %v1299 = vpack.c.b16 %v1134, %v1131
    %v1300 = vpack.c.b16 %v1135, %v1132
    %v1301 = vpack.c.b16 %v1139, %v1136
    %v1302 = vpack.c.b16 %v1140, %v1137
    %v1303 = vpack.c.b16 %v1141, %v1138
    %v1304 = vpack.c.b16 %v1145, %v1142
    %v1305 = vpack.c.b16 %v1146, %v1143
    %v1306 = vpack.c.b16 %v1147, %v1144
    %v1307 = vpack.c.b16 %v1151, %v1148
    %v1308 = vpack.c.b16 %v1152, %v1149
    %v1309 = vpack.c.b16 %v1153, %v1150
    %v1310 = vpack.c.b16 %v1157, %v1154
    %v1311 = vpack.c.b16 %v1158, %v1155
    %v1312 = vpack.c.b16 %v1159, %v1156
    %v1313 = vpack.c.b16 %v1163, %v1160
    %v1314 = vpack.c.b16 %v1164, %v1161
    %v1315 = vpack.c.b16 %v1165, %v1162
    %v1316 = vpack.c.b16 %v1169, %v1166
    %v1317 = vpack.c.b16 %v1170, %v1167
    %v1318 = vpack.c.b16 %v1171, %v1168
    %v1319 = vpack.c.b16 %v1175, %v1172
    %v1320 = vpack.c.b16 %v1176, %v1173
    %v1321 = vpack.c.b16 %v1177, %v1174
    %v1322 = vpack.c.b16 %v1181, %v1178
    %v1323 = vpack.c.b16 %v1182, %v1179
    %v1324 = vpack.c.b16 %v1183, %v1180
    %v1325 = vpack.c.b16 %v1187, %v1184
    %v1326 = vpack.c.b16 %v1188, %v1185
    %v1327 = vpack.c.b16 %v1189, %v1186
    %v1328 = vpack.c.b16 %v1193, %v1190
    %v1329 = vpack.c.b16 %v1194, %v1191
    %v1330 = vpack.c.b16 %v1195, %v1192
    %v1331 = vpack.c.b16 %v1199, %v1196
    %v1332 = vpack.c.b16 %v1200, %v1197
    %v1333 = vpack.c.b16 %v1201, %v1198
    %v1334 = vpack.c.b16 %v1205, %v1202
    %v1335 = vpack.c.b16 %v1206, %v1203
    %v1336 = vpack.c.b16 %v1207, %v1204
    %v1337 = vpack.c.b16 %v1211, %v1208
    %v1338 = vpack.c.b16 %v1212, %v1209
    %v1339 = vpack.c.b16 %v1213, %v1210
    %v1340 = vpack.c.b16 %v1217, %v1214
    %v1341 = vpack.c.b16 %v1218, %v1215
    %v1342 = vpack.c.b16 %v1219, %v1216
    %v1343 = vpack.c.b16 %v1223, %v1220
    %v1344 = vpack.c.b16 %v1224, %v1221
    %v1345 = vpack.c.b16 %v1225, %v1222
    %1466 = vmatprep.subr.bf16.mxu0 %v1227
    %1467 = vmatpush1.bf16.msra.mxu0 %v1226
    %1468 = vmatprep.subr.bf16.mxu0 %v1230
    %1469 = vmatpush1.bf16.msra.mxu0 %v1229
    %1470 = vmatprep.subr.bf16.mxu0 %v1233
    %1471 = vmatpush1.bf16.msra.mxu0 %v1232
    %1472 = vmatprep.subr.bf16.mxu0 %v1236
    %1473 = vmatpush1.bf16.msra.mxu0 %v1235
    %1474 = vmatprep.subr.bf16.mxu0 %v1239
    %1475 = vmatpush1.bf16.msra.mxu0 %v1238
    %1476 = vmatprep.subr.bf16.mxu0 %v1242
    %1477 = vmatpush1.bf16.msra.mxu0 %v1241
    %1478 = vmatprep.subr.bf16.mxu0 %v1245
    %1479 = vmatpush1.bf16.msra.mxu0 %v1244
    %1480 = vmatprep.subr.bf16.mxu0 %v1248
    %1481 = vmatpush1.bf16.msra.mxu0 %v1247
    %1482 = vmatprep.subr.bf16.mxu0 %v1251
    %1483 = vmatpush1.bf16.msra.mxu0 %v1250
    %1484 = vmatprep.subr.bf16.mxu0 %v1254
    %1485 = vmatpush1.bf16.msra.mxu0 %v1253
    %1486 = vmatprep.subr.bf16.mxu0 %v1257
    %1487 = vmatpush1.bf16.msra.mxu0 %v1256
    %1488 = vmatprep.subr.bf16.mxu0 %v1260
    %1489 = vmatpush1.bf16.msra.mxu0 %v1259
    %1490 = vmatprep.subr.bf16.mxu0 %v1263
    %1491 = vmatpush1.bf16.msra.mxu0 %v1262
    %1492 = vmatprep.subr.bf16.mxu0 %v1266
    %1493 = vmatpush1.bf16.msra.mxu0 %v1265
    %1494 = vmatprep.subr.bf16.mxu0 %v1269
    %1495 = vmatpush1.bf16.msra.mxu0 %v1268
    %1496 = vmatprep.subr.bf16.mxu0 %v1272
    %1497 = vmatpush1.bf16.msra.mxu0 %v1271
    %1498 = vmatprep.mubr.bf16.mxu0 %v645
    %1499 = vmatmul.mubr.bf16.gmra.mrb[0].mxu0 %v644
    %v1500 = vpop.f32.mrb[0].mxu0
    %v1501 = vadd.f32 %v814, %v1500
    %v1502 = vpop.f32.mrb[0].mxu0
    %v1503 = vadd.f32 %v818, %v1502
    %v1504 = vpop.f32.mrb[0].mxu0
    %v1505 = vpop.f32.mrb[0].mxu0
    %1506 = vdwg.mxu0
    %1507 = vmatprep.subr.bf16.mxu0 %v1275
    %1508 = vmatpush1.bf16.msra.mxu0 %v1274
    %1509 = vmatprep.subr.bf16.mxu0 %v1278
    %1510 = vmatpush1.bf16.msra.mxu0 %v1277
    %1511 = vmatprep.subr.bf16.mxu0 %v1281
    %1512 = vmatpush1.bf16.msra.mxu0 %v1280
    %1513 = vmatprep.subr.bf16.mxu0 %v1284
    %1514 = vmatpush1.bf16.msra.mxu0 %v1283
    %1515 = vmatprep.subr.bf16.mxu0 %v1287
    %1516 = vmatpush1.bf16.msra.mxu0 %v1286
    %1517 = vmatprep.subr.bf16.mxu0 %v1290
    %1518 = vmatpush1.bf16.msra.mxu0 %v1289
    %1519 = vmatprep.subr.bf16.mxu0 %v1293
    %1520 = vmatpush1.bf16.msra.mxu0 %v1292
    %1521 = vmatprep.subr.bf16.mxu0 %v1296
    %1522 = vmatpush1.bf16.msra.mxu0 %v1295
    %1523 = vmatprep.subr.bf16.mxu0 %v1299
    %1524 = vmatpush1.bf16.msra.mxu0 %v1298
    %1525 = vmatprep.subr.bf16.mxu0 %v1302
    %1526 = vmatpush1.bf16.msra.mxu0 %v1301
    %1527 = vmatprep.subr.bf16.mxu0 %v1305
    %1528 = vmatpush1.bf16.msra.mxu0 %v1304
    %1529 = vmatprep.subr.bf16.mxu0 %v1308
    %1530 = vmatpush1.bf16.msra.mxu0 %v1307
    %1531 = vmatprep.subr.bf16.mxu0 %v1311
    %1532 = vmatpush1.bf16.msra.mxu0 %v1310
    %1533 = vmatprep.subr.bf16.mxu0 %v1314
    %1534 = vmatpush1.bf16.msra.mxu0 %v1313
    %1535 = vmatprep.subr.bf16.mxu0 %v1317
    %1536 = vmatpush1.bf16.msra.mxu0 %v1316
    %1537 = vmatprep.subr.bf16.mxu0 %v1320
    %1538 = vmatpush1.bf16.msra.mxu0 %v1319
    %1539 = vmatprep.mubr.bf16.mxu0 %v647
    %1540 = vmatmul.mubr.bf16.gmra.mrb[0].mxu0 %v646
    %v1541 = vpop.f32.mrb[0].mxu0
    %v1542 = vadd.f32 %v1501, %v1541
    %v1543 = vpop.f32.mrb[0].mxu0
    %v1544 = vadd.f32 %v1503, %v1543
    %v1545 = vpop.f32.mrb[0].mxu0
    %v1546 = vpop.f32.mrb[0].mxu0
    %1547 = vdwg.mxu0
    %1548 = vmatprep.subr.bf16.mxu0 %v1323
    %1549 = vmatpush1.bf16.msra.mxu0 %v1322
    %1550 = vmatprep.subr.bf16.mxu0 %v1326
    %1551 = vmatpush1.bf16.msra.mxu0 %v1325
    %1552 = vmatprep.subr.bf16.mxu0 %v1329
    %1553 = vmatpush1.bf16.msra.mxu0 %v1328
    %1554 = vmatprep.subr.bf16.mxu0 %v1332
    %1555 = vmatpush1.bf16.msra.mxu0 %v1331
    %1556 = vmatprep.subr.bf16.mxu0 %v1335
    %1557 = vmatpush1.bf16.msra.mxu0 %v1334
    %1558 = vmatprep.subr.bf16.mxu0 %v1338
    %1559 = vmatpush1.bf16.msra.mxu0 %v1337
    %1560 = vmatprep.subr.bf16.mxu0 %v1341
    %1561 = vmatpush1.bf16.msra.mxu0 %v1340
    %1562 = vmatprep.subr.bf16.mxu0 %v1344
    %1563 = vmatpush1.bf16.msra.mxu0 %v1343
    %1564 = vmatprep.subr.bf16.mxu0 0
    %1565 = vmatpush1.bf16.msra.mxu0 0
    %1566 = vmatprep.subr.bf16.mxu0 0
    %1567 = vmatpush1.bf16.msra.mxu0 0
    %1568 = vmatprep.subr.bf16.mxu0 0
    %1569 = vmatpush1.bf16.msra.mxu0 0
    %1570 = vmatprep.subr.bf16.mxu0 0
    %1571 = vmatpush1.bf16.msra.mxu0 0
    %1572 = vmatprep.subr.bf16.mxu0 0
    %1573 = vmatpush1.bf16.msra.mxu0 0
    %1574 = vmatprep.subr.bf16.mxu0 0
    %1575 = vmatpush1.bf16.msra.mxu0 0
    %1576 = vmatprep.subr.bf16.mxu0 0
    %1577 = vmatpush1.bf16.msra.mxu0 0
    %1578 = vmatprep.subr.bf16.mxu0 0
    %1579 = vmatpush1.bf16.msra.mxu0 0
    %1580 = vmatprep.mubr.bf16.mxu0 0
    %1581 = vmatmul.mubr.bf16.gmra.mrb[0].mxu0 %v648
    %v1582 = vpop.f32.mrb[0].mxu0
    %v1583 = vadd.f32 %v1542, %v1582
    %v1584 = vpop.f32.mrb[0].mxu0
    %v1585 = vadd.f32 %v1544, %v1584
    %v1586 = vpop.f32.mrb[0].mxu0
    %v1587 = vpop.f32.mrb[0].mxu0
    %1588 = vdwg.mxu0
    %1589 = vmatprep.subr.bf16.mxu0 0
    %1590 = vmatpush1.bf16.msra.mxu0 %v1228
    %1591 = vmatprep.subr.bf16.mxu0 0
    %1592 = vmatpush1.bf16.msra.mxu0 %v1231
    %1593 = vmatprep.subr.bf16.mxu0 0
    %1594 = vmatpush1.bf16.msra.mxu0 %v1234
    %1595 = vmatprep.subr.bf16.mxu0 0
    %1596 = vmatpush1.bf16.msra.mxu0 %v1237
    %1597 = vmatprep.subr.bf16.mxu0 0
    %1598 = vmatpush1.bf16.msra.mxu0 %v1240
    %1599 = vmatprep.subr.bf16.mxu0 0
    %1600 = vmatpush1.bf16.msra.mxu0 %v1243
    %1601 = vmatprep.subr.bf16.mxu0 0
    %1602 = vmatpush1.bf16.msra.mxu0 %v1246
    %1603 = vmatprep.subr.bf16.mxu0 0
    %1604 = vmatpush1.bf16.msra.mxu0 %v1249
    %1605 = vmatprep.subr.bf16.mxu0 0
    %1606 = vmatpush1.bf16.msra.mxu0 %v1252
    %1607 = vmatprep.subr.bf16.mxu0 0
    %1608 = vmatpush1.bf16.msra.mxu0 %v1255
    %1609 = vmatprep.subr.bf16.mxu0 0
    %1610 = vmatpush1.bf16.msra.mxu0 %v1258
    %1611 = vmatprep.subr.bf16.mxu0 0
    %1612 = vmatpush1.bf16.msra.mxu0 %v1261
    %1613 = vmatprep.subr.bf16.mxu0 0
    %1614 = vmatpush1.bf16.msra.mxu0 %v1264
    %1615 = vmatprep.subr.bf16.mxu0 0
    %1616 = vmatpush1.bf16.msra.mxu0 %v1267
    %1617 = vmatprep.subr.bf16.mxu0 0
    %1618 = vmatpush1.bf16.msra.mxu0 %v1270
    %1619 = vmatprep.subr.bf16.mxu0 0
    %1620 = vmatpush1.bf16.msra.mxu0 %v1273
    %1621 = vmatprep.mubr.bf16.mxu0 %v645
    %1622 = vmatmul.mubr.bf16.gmra.mrb[0].mxu0 %v644
    %v1623 = vpop.f32.mrb[0].mxu0
    %v1624 = vadd.f32 %v822, %v1623
    %v1625 = vpop.f32.mrb[0].mxu0
    %v1626 = vpop.f32.mrb[0].mxu0
    %v1627 = vpop.f32.mrb[0].mxu0
    %1628 = vdwg.mxu0
    %1629 = vmatprep.subr.bf16.mxu0 0
    %1630 = vmatpush1.bf16.msra.mxu0 %v1276
    %1631 = vmatprep.subr.bf16.mxu0 0
    %1632 = vmatpush1.bf16.msra.mxu0 %v1279
    %1633 = vmatprep.subr.bf16.mxu0 0
    %1634 = vmatpush1.bf16.msra.mxu0 %v1282
    %1635 = vmatprep.subr.bf16.mxu0 0
    %1636 = vmatpush1.bf16.msra.mxu0 %v1285
    %1637 = vmatprep.subr.bf16.mxu0 0
    %1638 = vmatpush1.bf16.msra.mxu0 %v1288
    %1639 = vmatprep.subr.bf16.mxu0 0
    %1640 = vmatpush1.bf16.msra.mxu0 %v1291
    %1641 = vmatprep.subr.bf16.mxu0 0
    %1642 = vmatpush1.bf16.msra.mxu0 %v1294
    %1643 = vmatprep.subr.bf16.mxu0 0
    %1644 = vmatpush1.bf16.msra.mxu0 %v1297
    %1645 = vmatprep.subr.bf16.mxu0 0
    %1646 = vmatpush1.bf16.msra.mxu0 %v1300
    %1647 = vmatprep.subr.bf16.mxu0 0
    %1648 = vmatpush1.bf16.msra.mxu0 %v1303
    %1649 = vmatprep.subr.bf16.mxu0 0
    %1650 = vmatpush1.bf16.msra.mxu0 %v1306
    %1651 = vmatprep.subr.bf16.mxu0 0
    %1652 = vmatpush1.bf16.msra.mxu0 %v1309
    %1653 = vmatprep.subr.bf16.mxu0 0
    %1654 = vmatpush1.bf16.msra.mxu0 %v1312
    %1655 = vmatprep.subr.bf16.mxu0 0
    %1656 = vmatpush1.bf16.msra.mxu0 %v1315
    %1657 = vmatprep.subr.bf16.mxu0 0
    %1658 = vmatpush1.bf16.msra.mxu0 %v1318
    %1659 = vmatprep.subr.bf16.mxu0 0
    %1660 = vmatpush1.bf16.msra.mxu0 %v1321
    %1661 = vmatprep.mubr.bf16.mxu0 %v647
    %1662 = vmatmul.mubr.bf16.gmra.mrb[0].mxu0 %v646
    %v1663 = vpop.f32.mrb[0].mxu0
    %v1664 = vadd.f32 %v1624, %v1663
    %v1665 = vpop.f32.mrb[0].mxu0
    %v1666 = vpop.f32.mrb[0].mxu0
    %v1667 = vpop.f32.mrb[0].mxu0
    %1668 = vdwg.mxu0
    %1669 = vmatprep.subr.bf16.mxu0 0
    %1670 = vmatpush1.bf16.msra.mxu0 %v1324
    %1671 = vmatprep.subr.bf16.mxu0 0
    %1672 = vmatpush1.bf16.msra.mxu0 %v1327
    %1673 = vmatprep.subr.bf16.mxu0 0
    %1674 = vmatpush1.bf16.msra.mxu0 %v1330
    %1675 = vmatprep.subr.bf16.mxu0 0
    %1676 = vmatpush1.bf16.msra.mxu0 %v1333
    %1677 = vmatprep.subr.bf16.mxu0 0
    %1678 = vmatpush1.bf16.msra.mxu0 %v1336
    %1679 = vmatprep.subr.bf16.mxu0 0
    %1680 = vmatpush1.bf16.msra.mxu0 %v1339
    %1681 = vmatprep.subr.bf16.mxu0 0
    %1682 = vmatpush1.bf16.msra.mxu0 %v1342
    %1683 = vmatprep.subr.bf16.mxu0 0
    %1684 = vmatpush1.bf16.msra.mxu0 %v1345
    %1685 = vmatprep.subr.bf16.mxu0 0
    %1686 = vmatpush1.bf16.msra.mxu0 0
    %1687 = vmatprep.subr.bf16.mxu0 0
    %1688 = vmatpush1.bf16.msra.mxu0 0
    %1689 = vmatprep.subr.bf16.mxu0 0
    %1690 = vmatpush1.bf16.msra.mxu0 0
    %1691 = vmatprep.subr.bf16.mxu0 0
    %1692 = vmatpush1.bf16.msra.mxu0 0
    %1693 = vmatprep.subr.bf16.mxu0 0
    %1694 = vmatpush1.bf16.msra.mxu0 0
    %1695 = vmatprep.subr.bf16.mxu0 0
    %1696 = vmatpush1.bf16.msra.mxu0 0
    %1697 = vmatprep.subr.bf16.mxu0 0
    %1698 = vmatpush1.bf16.msra.mxu0 0
    %1699 = vmatprep.subr.bf16.mxu0 0
    %1700 = vmatpush1.bf16.msra.mxu0 0
    %1701 = vmatprep.mubr.bf16.mxu0 0
    %1702 = vmatmul.mubr.bf16.gmra.mrb[0].mxu0 %v648
    %v1703 = vpop.f32.mrb[0].mxu0
    %v1704 = vadd.f32 %v1664, %v1703
    %v1705 = vpop.f32.mrb[0].mxu0
    %v1706 = vpop.f32.mrb[0].mxu0
    %v1707 = vpop.f32.mrb[0].mxu0
    %1708 = vdwg.mxu0
    %v1709 = vmax.f32 %v1583, 0.0
    %v1710 = vmax.f32 %v1585, 0.0
    %v1711 = vmax.f32 %v1704, 0.0
    %v1712 = vpack.c.bf16 %v1709, %v1709
    %v1713 = vpack.c.bf16 %v1710, %v1710
    %v1714 = vpack.c.bf16 %v1711, %v1711
    %v1715 = vld [vmem:[#allocation8] sm:$0xf]
    %v1716 = vld [vmem:[#allocation8 + $0x4] sm:$0xf]
    %v1717 = vld [vmem:[#allocation8 + $0x8] sm:$0xf]
    %v1718 = vld [vmem:[#allocation8 + $0xc] sm:$0xf]
    %v1719 = vld [vmem:[#allocation8 + $0x10] sm:$0xf]
    %v1720 = vld [vmem:[#allocation8 + $0x14] sm:$0xf]
    %v1721 = vld [vmem:[#allocation8 + $0x18] sm:$0xf]
    %v1722 = vld [vmem:[#allocation8 + $0x1c] sm:$0xf]
    %v1723 = vld [vmem:[#allocation8 + $0x20] sm:$0xf]
    %v1724 = vld [vmem:[#allocation8 + $0x24] sm:$0xf]
    %v1725 = vld [vmem:[#allocation8 + $0x28] sm:$0xf]
    %v1726 = vld [vmem:[#allocation8 + $0x2c] sm:$0xf]
    %v1727 = vld [vmem:[#allocation8 + $0x30] sm:$0xf]
    %v1728 = vld [vmem:[#allocation8 + $0x34] sm:$0xf]
    %v1729 = vld [vmem:[#allocation8 + $0x38] sm:$0xf]
    %v1730 = vld [vmem:[#allocation8 + $0x3c] sm:$0xf]
    %v1731 = vld [vmem:[#allocation8 + $0x40] sm:$0xf]
    %v1732 = vld [vmem:[#allocation8 + $0x44] sm:$0xf]
    %v1733 = vld [vmem:[#allocation8 + $0x48] sm:$0xf]
    %v1734 = vld [vmem:[#allocation8 + $0x4c] sm:$0xf]
    %v1735 = vld [vmem:[#allocation8 + $0x50] sm:$0xf]
    %v1736 = vld [vmem:[#allocation8 + $0x54] sm:$0xf]
    %v1737 = vld [vmem:[#allocation8 + $0x58] sm:$0xf]
    %v1738 = vld [vmem:[#allocation8 + $0x5c] sm:$0xf]
    %v1739 = vld [vmem:[#allocation8 + $0x60] sm:$0xf]
    %v1740 = vld [vmem:[#allocation8 + $0x64] sm:$0xf]
    %v1741 = vld [vmem:[#allocation8 + $0x68] sm:$0xf]
    %v1742 = vld [vmem:[#allocation8 + $0x6c] sm:$0xf]
    %v1743 = vld [vmem:[#allocation8 + $0x70] sm:$0xf]
    %v1744 = vld [vmem:[#allocation8 + $0x74] sm:$0xf]
    %v1745 = vld [vmem:[#allocation8 + $0x78] sm:$0xf]
    %v1746 = vld [vmem:[#allocation8 + $0x7c] sm:$0xf]
    %v1747 = vld [vmem:[#allocation8 + $0x80] sm:$0xf]
    %v1748 = vld [vmem:[#allocation8 + $0x84] sm:$0xf]
    %v1749 = vld [vmem:[#allocation8 + $0x88] sm:$0xf]
    %v1750 = vld [vmem:[#allocation8 + $0x8c] sm:$0xf]
    %v1751 = vld [vmem:[#allocation8 + $0x90] sm:$0xf]
    %v1752 = vld [vmem:[#allocation8 + $0x94] sm:$0xf]
    %v1753 = vld [vmem:[#allocation8 + $0x98] sm:$0xf]
    %v1754 = vld [vmem:[#allocation8 + $0x9c] sm:$0xf]
    %v1755 = vld [vmem:[#allocation8 + $0xa0] sm:$0xf]
    %v1756 = vld [vmem:[#allocation8 + $0xa4] sm:$0xf]
    %v1757 = vld [vmem:[#allocation8 + $0xa8] sm:$0xf]
    %v1758 = vld [vmem:[#allocation8 + $0xac] sm:$0xf]
    %v1759 = vld [vmem:[#allocation8 + $0xb0] sm:$0xf]
    %v1760 = vld [vmem:[#allocation8 + $0xb4] sm:$0xf]
    %v1761 = vld [vmem:[#allocation8 + $0xb8] sm:$0xf]
    %v1762 = vld [vmem:[#allocation8 + $0xbc] sm:$0xf]
    %v1763 = vld [vmem:[%s7] sm:$0x1]
    %v1765 = vlaneseq
    %v1766 = vshrl.u32 %v1765, 7
    %v1767 = vsub.s32 0, %v1766
    %v1768 = vrot.slane %v1763, %v1767
    %v1818 = vunpack.c.l.b16 %v1715
    %v1819 = vunpack.c.l.b16 %v1716
    %v1820 = vunpack.c.l.b16 %v1717
    %v1821 = vunpack.c.l.b16 %v1718
    %v1822 = vunpack.c.l.b16 %v1719
    %v1823 = vunpack.c.l.b16 %v1720
    %v1824 = vunpack.c.l.b16 %v1721
    %v1825 = vunpack.c.l.b16 %v1722
    %v1826 = vunpack.c.l.b16 %v1723
    %v1827 = vunpack.c.l.b16 %v1724
    %v1828 = vunpack.c.l.b16 %v1725
    %v1829 = vunpack.c.l.b16 %v1726
    %v1830 = vunpack.c.l.b16 %v1727
    %v1831 = vunpack.c.l.b16 %v1728
    %v1832 = vunpack.c.l.b16 %v1729
    %v1833 = vunpack.c.l.b16 %v1730
    %v1834 = vunpack.c.l.b16 %v1731
    %v1835 = vunpack.c.l.b16 %v1732
    %v1836 = vunpack.c.l.b16 %v1733
    %v1837 = vunpack.c.l.b16 %v1734
    %v1838 = vunpack.c.l.b16 %v1735
    %v1839 = vunpack.c.l.b16 %v1736
    %v1840 = vunpack.c.l.b16 %v1737
    %v1841 = vunpack.c.l.b16 %v1738
    %v1842 = vunpack.c.l.b16 %v1739
    %v1843 = vunpack.c.l.b16 %v1740
    %v1844 = vunpack.c.l.b16 %v1741
    %v1845 = vunpack.c.l.b16 %v1742
    %v1846 = vunpack.c.l.b16 %v1743
    %v1847 = vunpack.c.l.b16 %v1744
    %v1848 = vunpack.c.l.b16 %v1745
    %v1849 = vunpack.c.l.b16 %v1746
    %v1850 = vunpack.c.l.b16 %v1747
    %v1851 = vunpack.c.l.b16 %v1748
    %v1852 = vunpack.c.l.b16 %v1749
    %v1853 = vunpack.c.l.b16 %v1750
    %v1854 = vunpack.c.l.b16 %v1751
    %v1855 = vunpack.c.l.b16 %v1752
    %v1856 = vunpack.c.l.b16 %v1753
    %v1857 = vunpack.c.l.b16 %v1754
    %v1858 = vunpack.c.l.b16 %v1755
    %v1859 = vunpack.c.l.b16 %v1756
    %v1860 = vunpack.c.l.b16 %v1757
    %v1861 = vunpack.c.l.b16 %v1758
    %v1862 = vunpack.c.l.b16 %v1759
    %v1863 = vunpack.c.l.b16 %v1760
    %v1864 = vunpack.c.l.b16 %v1761
    %v1865 = vunpack.c.l.b16 %v1762
    %v1866 = vpack.c.b16 %v1819, %v1818
    %v1867 = vpack.c.b16 %v1821, %v1820
    %v1868 = vpack.c.b16 %v1823, %v1822
    %v1869 = vpack.c.b16 %v1825, %v1824
    %v1870 = vpack.c.b16 %v1827, %v1826
    %v1871 = vpack.c.b16 %v1829, %v1828
    %v1872 = vpack.c.b16 %v1831, %v1830
    %v1873 = vpack.c.b16 %v1833, %v1832
    %v1874 = vpack.c.b16 %v1835, %v1834
    %v1875 = vpack.c.b16 %v1837, %v1836
    %v1876 = vpack.c.b16 %v1839, %v1838
    %v1877 = vpack.c.b16 %v1841, %v1840
    %v1878 = vpack.c.b16 %v1843, %v1842
    %v1879 = vpack.c.b16 %v1845, %v1844
    %v1880 = vpack.c.b16 %v1847, %v1846
    %v1881 = vpack.c.b16 %v1849, %v1848
    %v1882 = vpack.c.b16 %v1851, %v1850
    %v1883 = vpack.c.b16 %v1853, %v1852
    %v1884 = vpack.c.b16 %v1855, %v1854
    %v1885 = vpack.c.b16 %v1857, %v1856
    %v1886 = vpack.c.b16 %v1859, %v1858
    %v1887 = vpack.c.b16 %v1861, %v1860
    %v1888 = vpack.c.b16 %v1863, %v1862
    %v1889 = vpack.c.b16 %v1865, %v1864
    %1914 = vmatprep.subr.bf16.mxu0 0
    %1915 = vmatpush1.bf16.msra.mxu0 %v1866
    %1916 = vmatprep.subr.bf16.mxu0 0
    %1917 = vmatpush1.bf16.msra.mxu0 %v1867
    %1918 = vmatprep.subr.bf16.mxu0 0
    %1919 = vmatpush1.bf16.msra.mxu0 %v1868
    %1920 = vmatprep.subr.bf16.mxu0 0
    %1921 = vmatpush1.bf16.msra.mxu0 %v1869
    %1922 = vmatprep.subr.bf16.mxu0 0
    %1923 = vmatpush1.bf16.msra.mxu0 %v1870
    %1924 = vmatprep.subr.bf16.mxu0 0
    %1925 = vmatpush1.bf16.msra.mxu0 %v1871
    %1926 = vmatprep.subr.bf16.mxu0 0
    %1927 = vmatpush1.bf16.msra.mxu0 %v1872
    %1928 = vmatprep.subr.bf16.mxu0 0
    %1929 = vmatpush1.bf16.msra.mxu0 %v1873
    %1930 = vmatprep.subr.bf16.mxu0 0
    %1931 = vmatpush1.bf16.msra.mxu0 %v1874
    %1932 = vmatprep.subr.bf16.mxu0 0
    %1933 = vmatpush1.bf16.msra.mxu0 %v1875
    %1934 = vmatprep.subr.bf16.mxu0 0
    %1935 = vmatpush1.bf16.msra.mxu0 %v1876
    %1936 = vmatprep.subr.bf16.mxu0 0
    %1937 = vmatpush1.bf16.msra.mxu0 %v1877
    %1938 = vmatprep.subr.bf16.mxu0 0
    %1939 = vmatpush1.bf16.msra.mxu0 %v1878
    %1940 = vmatprep.subr.bf16.mxu0 0
    %1941 = vmatpush1.bf16.msra.mxu0 %v1879
    %1942 = vmatprep.subr.bf16.mxu0 0
    %1943 = vmatpush1.bf16.msra.mxu0 %v1880
    %1944 = vmatprep.subr.bf16.mxu0 0
    %1945 = vmatpush1.bf16.msra.mxu0 %v1881
    %1946 = vmatprep.mubr.bf16.mxu0 %v1713
    %1947 = vmatmul.mubr.bf16.gmra.mrb[0].mxu0 %v1712
    %v1948 = vpop.f32.mrb[0].mxu0
    %v1949 = vadd.f32 %v1768, %v1948
    %v1950 = vpop.f32.mrb[0].mxu0
    %v1951 = vpop.f32.mrb[0].mxu0
    %v1952 = vpop.f32.mrb[0].mxu0
    %1953 = vdwg.mxu0
    %1954 = vmatprep.subr.bf16.mxu0 0
    %1955 = vmatpush1.bf16.msra.mxu0 %v1882
    %1956 = vmatprep.subr.bf16.mxu0 0
    %1957 = vmatpush1.bf16.msra.mxu0 %v1883
    %1958 = vmatprep.subr.bf16.mxu0 0
    %1959 = vmatpush1.bf16.msra.mxu0 %v1884
    %1960 = vmatprep.subr.bf16.mxu0 0
    %1961 = vmatpush1.bf16.msra.mxu0 %v1885
    %1962 = vmatprep.subr.bf16.mxu0 0
    %1963 = vmatpush1.bf16.msra.mxu0 %v1886
    %1964 = vmatprep.subr.bf16.mxu0 0
    %1965 = vmatpush1.bf16.msra.mxu0 %v1887
    %1966 = vmatprep.subr.bf16.mxu0 0
    %1967 = vmatpush1.bf16.msra.mxu0 %v1888
    %1968 = vmatprep.subr.bf16.mxu0 0
    %1969 = vmatpush1.bf16.msra.mxu0 %v1889
    %1970 = vmatprep.subr.bf16.mxu0 0
    %1971 = vmatpush1.bf16.msra.mxu0 0
    %1972 = vmatprep.subr.bf16.mxu0 0
    %1973 = vmatpush1.bf16.msra.mxu0 0
    %1974 = vmatprep.subr.bf16.mxu0 0
    %1975 = vmatpush1.bf16.msra.mxu0 0
    %1976 = vmatprep.subr.bf16.mxu0 0
    %1977 = vmatpush1.bf16.msra.mxu0 0
    %1978 = vmatprep.subr.bf16.mxu0 0
    %1979 = vmatpush1.bf16.msra.mxu0 0
    %1980 = vmatprep.subr.bf16.mxu0 0
    %1981 = vmatpush1.bf16.msra.mxu0 0
    %1982 = vmatprep.subr.bf16.mxu0 0
    %1983 = vmatpush1.bf16.msra.mxu0 0
    %1984 = vmatprep.subr.bf16.mxu0 0
    %1985 = vmatpush1.bf16.msra.mxu0 0
    %1986 = vmatprep.mubr.bf16.mxu0 0
    %1987 = vmatmul.mubr.bf16.gmra.mrb[0].mxu0 %v1714
    %v1988 = vpop.f32.mrb[0].mxu0
    %v1989 = vadd.f32 %v1949, %v1988
    %v1990 = vpop.f32.mrb[0].mxu0
    %v1991 = vpop.f32.mrb[0].mxu0
    %v1992 = vpop.f32.mrb[0].mxu0
    %1993 = vdwg.mxu0
    %v1994 = vpack.c.bf16 %v1989, %v1989
    %1995 = vst [vmem:[#allocation10] sm:$0xf] %v1994
    // Predicated region
    $region50: #{tpu_custom_call.1} parent=1 // pred_check
      _
    $region51: #{tpu_custom_call.1} parent=1 // pred_check_branch
      %1997 = sbr.rel (0) target = $region53
    $region52: #{tpu_custom_call.1} parent=1 // pred_region
      %s1999 = ssub.s32 64, 64
      %2000 = vsyncadd [#allocation4], %s1999
      %s2002 = sshll.u32 [#allocation10], 4
      %s2003 = int_to_ptr.vmem [resolvable:$true] %s2002
      %2005 = dma.vmem_to_hbm [thread:$0]  %s2003, 64, %s8, [#allocation4]
    $region53: #{tpu_custom_call.1} parent=1 // pred_fallthru
      _
    // Predicated region
    $region54: #{tpu_custom_call.1} parent=1 // pred_check
      _
    $region55: #{tpu_custom_call.1} parent=1 // pred_check_branch
      %2007 = sbr.rel (0) target = $region57
    $region56: #{tpu_custom_call.1} parent=1 // pred_region
      %2008 = dma.done [#allocation4], 64
    $region57: #{tpu_custom_call.1} parent=1 // pred_fallthru
      _
    %2009 = vsyncpa [#allocation3], 1
    %2010 = vsyncpa [#allocation6], 1
    %2011 = vsyncpa [#allocation9], 1
    %2012 = vsyncpa [#allocation4], 1

</llo_original>
